<compile_context>
chip_gen: v5e
topology: v5e:2x2
jax: 0.10.0
libtpu: 0.0.40
codegen_flags: <defaults>
</compile_context>

<pallas_src>
import math
import jax
import jax.numpy as jnp
from jax import lax
from jax.experimental import pallas as pl
from jax.experimental.pallas import tpu as pltpu


# ----------------------------------------------------------------------------
# Fused Pallas kernel: per-sample rotated 3x3 conv + BN1 + ReLU + 1x1 conv
#                      + BN2 + ReLU, one (batch, row-tile) grid step each.
#
#   x_ref  : (1, 1, ROWS+2, W+2, Cin)  bf16  padded row tile (with halo)
#   w_ref  : (1, 3, 3, Cin, Cmid)      bf16  per-sample rotated weight
#   s1/b1  : (1, Cmid)                 f32   folded eval-mode BN1
#   pwt_ref: (Cout, Cmid)              bf16  1x1 conv weight, transposed
#   s2/b2  : (Cout, 1)                 f32   folded eval-mode BN2
#   o_ref  : (1, 1, Cout, ROWS*W)      f32   channel-major, lane-dense store
# ----------------------------------------------------------------------------
def _mic_fused_kernel(x_ref, w_ref, s1_ref, b1_ref, pwt_ref, s2_ref, b2_ref,
                      o_ref):
    rows_p2 = x_ref.shape[2]
    Wp = x_ref.shape[3]
    Cin = x_ref.shape[4]
    ROWS = rows_p2 - 2
    W = Wp - 2
    M = ROWS * W
    Cmid = w_ref.shape[4]

    # Stage 1: rotated 3x3 conv as 9 accumulating matmuls with M = ROWS*W.
    acc = jnp.zeros((M, Cmid), jnp.float32)
    for dy in range(3):
        for dx in range(3):
            patch = x_ref[0, 0, dy:dy + ROWS, dx:dx + W, :]   # (ROWS, W, Cin)
            # leading-dim merge only (lane dim Cin unchanged); W % 8 == 0 so
            # this is a pure vreg re-index, no data movement.
            patch = patch.reshape(M, Cin)
            acc = acc + jnp.dot(patch, w_ref[0, dy, dx, :, :],
                                preferred_element_type=jnp.float32)
    y1 = jnp.maximum(acc * s1_ref[...] + b1_ref[...], 0.0)     # BN1 + ReLU, f32

    # Stage 2: 1x1 conv + BN2 + ReLU, computed channel-major so the output
    # block's last dim is ROWS*W (lane-dense, unmasked stores).
    y2 = lax.dot_general(pwt_ref[...], y1.astype(pwt_ref.dtype),
                         dimension_numbers=(((1,), (1,)), ((), ())),
                         preferred_element_type=jnp.float32)    # (Cout, M)
    y2 = jnp.maximum(y2 * s2_ref[...] + b2_ref[...], 0.0)
    o_ref[0, 0] = y2.astype(o_ref.dtype)


def _pick_rows(H, W, target_m=512):
    """Largest divisor of H whose row tile has at most ~target_m pixels."""
    rows = 1
    for r in range(1, H + 1):
        if H % r == 0 and r * W <= max(target_m, W):
            rows = r
    return rows


def mic_fused(x_tiles, w_rot, s1, b1, pw_t, s2, b2, out_dtype):
    """x_tiles: (B, T, ROWS+2, W+2, Cin) bf16; returns (B, T, Cout, ROWS*W)."""
    B, T, rows_p2, Wp, Cin = x_tiles.shape
    ROWS, W = rows_p2 - 2, Wp - 2
    M = ROWS * W
    Cmid = w_rot.shape[-1]
    Cout = pw_t.shape[0]
    return pl.pallas_call(
        _mic_fused_kernel,
        out_shape=jax.ShapeDtypeStruct((B, T, Cout, M), out_dtype),
        grid=(B, T),
        in_specs=[
            pl.BlockSpec((1, 1, rows_p2, Wp, Cin), lambda b, t: (b, t, 0, 0, 0)),
            pl.BlockSpec((1, 3, 3, Cin, Cmid), lambda b, t: (b, 0, 0, 0, 0)),
            pl.BlockSpec((1, Cmid), lambda b, t: (0, 0)),
            pl.BlockSpec((1, Cmid), lambda b, t: (0, 0)),
            pl.BlockSpec((Cout, Cmid), lambda b, t: (0, 0)),
            pl.BlockSpec((Cout, 1), lambda b, t: (0, 0)),
            pl.BlockSpec((Cout, 1), lambda b, t: (0, 0)),
        ],
        out_specs=pl.BlockSpec((1, 1, Cout, M), lambda b, t: (b, t, 0, 0)),
        compiler_params=pltpu.CompilerParams(
            dimension_semantics=("parallel", "parallel"),
            vmem_limit_bytes=32 * 1024 * 1024),
    )(x_tiles, w_rot, s1, b1, pw_t, s2, b2)


# ----------------------------------------------------------------------------
# Plain-JAX glue: rotation matrix, weight rotation, routing function, BN fold.
# ----------------------------------------------------------------------------
def _get_rotation_matrix(thetas):
    """thetas: (b, n) -> (b, n, 9, 9); faithful port of the torch version."""
    bsz, g = thetas.shape
    t = thetas.reshape(-1)
    x = jnp.cos(t)
    y = jnp.sin(t)
    a = x - y
    b = x * y
    c = x + y
    z = jnp.zeros_like(x)
    o = jnp.ones_like(x)

    def mat(rows):
        return jnp.stack([jnp.stack(r, axis=0) for r in rows], axis=0)  # (9,9,N)

    pos = mat([
        [a, 1 - a, z, z, z, z, z, z, z],
        [z, x - b, b, z, 1 - c + b, y - b, z, z, z],
        [z, z, a, z, z, 1 - a, z, z, z],
        [b, y - b, z, x - b, 1 - c + b, z, z, z, z],
        [z, z, z, z, o, z, z, z, z],
        [z, z, z, z, 1 - c + b, x - b, z, y - b, b],
        [z, z, z, 1 - a, z, z, a, z, z],
        [z, z, z, y - b, 1 - c + b, z, b, x - b, z],
        [z, z, z, z, z, z, z, 1 - a, a],
    ])
    neg = mat([
        [c, z, z, 1 - c, z, z, z, z, z],
        [-b, x + b, z, b - y, 1 - a - b, z, z, z, z],
        [z, 1 - c, c, z, z, z, z, z, z],
        [z, z, z, x + b, 1 - a - b, z, -b, b - y, z],
        [z, z, z, z, o, z, z, z, z],
        [z, b - y, -b, z, 1 - a - b, x + b, z, z, z],
        [z, z, z, z, z, z, c, 1 - c, z],
        [z, z, z, z, 1 - a - b, b - y, z, x + b, -b],
        [z, z, z, z, z, 1 - c, z, z, c],
    ])
    mask = (t >= 0).astype(thetas.dtype)
    rot = mask * pos + (1.0 - mask) * neg                    # (9, 9, N)
    rot = jnp.transpose(rot, (2, 0, 1)).reshape(bsz, g, 9, 9)
    return rot


def batch_rotate_multiweight(weights, lambdas, thetas):
    """weights: (n, Cout, Cin, 3, 3) -> per-sample (b, 3, 3, Cin, Cout)."""
    b, n = thetas.shape
    _, Cout, Cin, k, _ = weights.shape
    rot = _get_rotation_matrix(thetas)                       # (b, n, 9, 9)
    rot = rot * lambdas[:, :, None, None]
    rot = jnp.transpose(rot, (0, 2, 1, 3)).reshape(b * 9, n * 9)
    w = jnp.transpose(weights, (0, 3, 4, 1, 2)).reshape(n * 9, Cout * Cin)
    w = rot @ w                                              # (b*9, Cout*Cin)
    w = w.reshape(b, 3, 3, Cout, Cin)
    return jnp.transpose(w, (0, 1, 2, 4, 3))                 # (b, 3, 3, Cin, Cout)


def routing_forward(x_nchw, p):
    """Standard ARC routing: dwc3x3 -> LayerNorm(C) -> ReLU -> GAP -> FCs."""
    B, Cin, H, W = x_nchw.shape
    x = jnp.transpose(x_nchw, (0, 2, 3, 1))                  # NHWC
    y = lax.conv_general_dilated(
        x, p["dwc_w"], window_strides=(1, 1), padding="SAME",
        dimension_numbers=("NHWC", "HWIO", "NHWC"), feature_group_count=Cin)
    mu = y.mean(-1, keepdims=True)
    var = ((y - mu) ** 2).mean(-1, keepdims=True)
    y = (y - mu) / jnp.sqrt(var + 1e-5) * p["ln_w"] + p["ln_b"]
    y = jnp.maximum(y, 0.0)
    y = y.mean(axis=(1, 2))                                  # (B, Cin)
    alphas = jax.nn.sigmoid(y @ p["fc_alpha_w"].T + p["fc_alpha_b"])
    thetas = jax.nn.soft_sign(y @ p["fc_theta_w"].T) * (40.0 / 180.0 * math.pi)
    return alphas, thetas


def fold_bn(gamma, beta, mean, var, eps=1e-5):
    s = gamma / jnp.sqrt(var + eps)
    return s, beta - mean * s


def init_params(key, inplanes, outplanes, kernel_number=3):
    Cin = inplanes
    keys = jax.random.split(key, 5)
    p = {}
    p["dwc_w"] = jax.random.normal(keys[0], (3, 3, 1, Cin), jnp.float32) * math.sqrt(2.0 / 9.0)
    p["ln_w"] = jnp.ones((Cin,), jnp.float32)
    p["ln_b"] = jnp.zeros((Cin,), jnp.float32)
    p["fc_alpha_w"] = jax.random.normal(keys[1], (kernel_number, Cin), jnp.float32) * math.sqrt(2.0 / Cin)
    p["fc_alpha_b"] = jnp.zeros((kernel_number,), jnp.float32)
    p["fc_theta_w"] = jax.random.normal(keys[2], (kernel_number, Cin), jnp.float32) * math.sqrt(2.0 / Cin)
    p["arc_weight"] = jax.random.normal(keys[3], (kernel_number, Cin, Cin, 3, 3), jnp.float32) * math.sqrt(2.0 / (Cin * 9))
    s1, b1 = fold_bn(jnp.ones((Cin,)), jnp.zeros((Cin,)), jnp.zeros((Cin,)), jnp.ones((Cin,)))
    p["bn1_scale"], p["bn1_bias"] = s1.reshape(1, Cin), b1.reshape(1, Cin)
    p["pw_w"] = jax.random.normal(keys[4], (Cin, outplanes), jnp.float32) * math.sqrt(2.0 / Cin)
    s2, b2 = fold_bn(jnp.ones((outplanes,)), jnp.zeros((outplanes,)), jnp.zeros((outplanes,)), jnp.ones((outplanes,)))
    p["bn2_scale"], p["bn2_bias"] = s2.reshape(1, outplanes), b2.reshape(1, outplanes)
    return p


# ----------------------------------------------------------------------------
# Full module forward
# ----------------------------------------------------------------------------
def intensity_position_module_forward(x_nchw, params):
    B, Cin, H, W = x_nchw.shape
    Cout = params["pw_w"].shape[1]

    # routing + per-sample rotated weights (tiny glue, plain JAX)
    alphas, thetas = routing_forward(x_nchw, params)                        # (B, 3)
    w_rot = batch_rotate_multiweight(params["arc_weight"], alphas, thetas)  # (B,3,3,Cin,Cin)

    # NHWC, zero-pad, and build halo row tiles: (B, T, ROWS+2, W+2, Cin)
    x = jnp.transpose(x_nchw, (0, 2, 3, 1))
    xp = jnp.pad(x, ((0, 0), (1, 1), (1, 1), (0, 0)))
    ROWS = _pick_rows(H, W)
    T = H // ROWS
    x_tiles = jnp.stack(
        [xp[:, t * ROWS:t * ROWS + ROWS + 2] for t in range(T)], axis=1)

    # bf16 matmul operands; BN epilogues stay f32.
    x_tiles = x_tiles.astype(jnp.bfloat16)
    w_rot = w_rot.astype(jnp.bfloat16)
    pw_t = jnp.transpose(params["pw_w"]).astype(jnp.bfloat16)   # (Cout, Cin)
    s2 = params["bn2_scale"].reshape(Cout, 1)
    b2 = params["bn2_bias"].reshape(Cout, 1)

    out_cm = mic_fused(x_tiles, w_rot, params["bn1_scale"], params["bn1_bias"],
                       pw_t, s2, b2, out_dtype=x_nchw.dtype)     # (B,T,Cout,ROWS*W)

    # channel-major kernel output -> NCHW (pure layout plumbing, host side)
    out = out_cm.reshape(B, T, Cout, ROWS, W)
    out = jnp.transpose(out, (0, 2, 1, 3, 4)).reshape(B, Cout, H, W)
    return out


if __name__ == "__main__":
    inplanes, outplanes = 4, 8
    B, H, W = 2, 16, 16

    key = jax.random.PRNGKey(0)
    k_in, k_par = jax.random.split(key)
    x = jax.random.normal(k_in, (B, inplanes, H, W), jnp.float32)   # NCHW like PyTorch
    params = init_params(k_par, inplanes, outplanes, kernel_number=3)

    fwd = jax.jit(intensity_position_module_forward)
    out = jax.block_until_ready(fwd(x, params))
    assert out.shape == (B, outplanes, H, W)
    assert bool(jnp.all(jnp.isfinite(out)))
    print("KERNEL_OK")
</pallas_src>

<mosaic_0001>
module attributes {stable_mosaic.version = 11 : i64} {
  func.func @_mic_fused_kernel(%arg0: i32, %arg1: i32, %arg2: memref<1x1x18x18x4xbf16, #tpu.memory_space<vmem>>, %arg3: memref<1x3x3x4x4xbf16, #tpu.memory_space<vmem>>, %arg4: memref<1x4xf32, #tpu.memory_space<vmem>>, %arg5: memref<1x4xf32, #tpu.memory_space<vmem>>, %arg6: memref<8x4xbf16, #tpu.memory_space<vmem>>, %arg7: memref<8x1xf32, #tpu.memory_space<vmem>>, %arg8: memref<8x1xf32, #tpu.memory_space<vmem>>, %arg9: memref<1x1x8x256xf32, #tpu.memory_space<vmem>>) attributes {dimension_semantics = [#tpu.dimension_semantics<parallel>, #tpu.dimension_semantics<parallel>], iteration_bounds = array<i64: 2, 1>, scalar_prefetch = 0 : i64, scratch_operands = 0 : i64, tpu.core_type = #tpu.core_type<tc>, window_params = [{transform_indices = @transform_0, window_bounds = array<i64: 1, 1, 18, 18, 4>}, {transform_indices = @transform_1, window_bounds = array<i64: 1, 3, 3, 4, 4>}, {pipeline_mode = #tpu.pipeline_mode<synchronous>, transform_indices = @transform_2, window_bounds = array<i64: 1, 4>}, {pipeline_mode = #tpu.pipeline_mode<synchronous>, transform_indices = @transform_3, window_bounds = array<i64: 1, 4>}, {pipeline_mode = #tpu.pipeline_mode<synchronous>, transform_indices = @transform_4, window_bounds = array<i64: 8, 4>}, {pipeline_mode = #tpu.pipeline_mode<synchronous>, transform_indices = @transform_5, window_bounds = array<i64: 8, 1>}, {pipeline_mode = #tpu.pipeline_mode<synchronous>, transform_indices = @transform_6, window_bounds = array<i64: 8, 1>}, {transform_indices = @transform_7, window_bounds = array<i64: 1, 1, 8, 256>}]} {
    %cst = arith.constant 0.000000e+00 : f32
    %0 = vector.broadcast %cst : f32 to vector<256x4xf32>
    %c0 = arith.constant 0 : index
    %c0_0 = arith.constant 0 : index
    %c0_1 = arith.constant 0 : index
    %c0_2 = arith.constant 0 : index
    %c0_3 = arith.constant 0 : index
    %1 = vector.load %arg2[%c0, %c0_0, %c0_1, %c0_2, %c0_3] : memref<1x1x18x18x4xbf16, #tpu.memory_space<vmem>>, vector<1x1x16x16x4xbf16>
    %2 = vector.shape_cast %1 : vector<1x1x16x16x4xbf16> to vector<16x16x4xbf16>
    %3 = vector.shape_cast %2 : vector<16x16x4xbf16> to vector<256x4xbf16>
    %c0_4 = arith.constant 0 : index
    %c0_5 = arith.constant 0 : index
    %c0_6 = arith.constant 0 : index
    %c0_7 = arith.constant 0 : index
    %c0_8 = arith.constant 0 : index
    %4 = vector.load %arg3[%c0_4, %c0_5, %c0_6, %c0_7, %c0_8] : memref<1x3x3x4x4xbf16, #tpu.memory_space<vmem>>, vector<1x1x1x4x4xbf16>
    %5 = vector.shape_cast %4 : vector<1x1x1x4x4xbf16> to vector<4x4xbf16>
    %cst_9 = arith.constant dense<0.000000e+00> : vector<256x4xf32>
    %6 = tpu.matmul %3, %5, %cst_9 {dimension_numbers = #tpu.dot_dimension_numbers<[1], [0], [0], [1], [0, 0, 1, 1], [], []>} : vector<256x4xbf16>, vector<4x4xbf16>, vector<256x4xf32> -> vector<256x4xf32>
    %7 = arith.addf %0, %6 : vector<256x4xf32>
    %c0_10 = arith.constant 0 : index
    %c0_11 = arith.constant 0 : index
    %c0_12 = arith.constant 0 : index
    %c1 = arith.constant 1 : index
    %c0_13 = arith.constant 0 : index
    %8 = vector.load %arg2[%c0_10, %c0_11, %c0_12, %c1, %c0_13] : memref<1x1x18x18x4xbf16, #tpu.memory_space<vmem>>, vector<1x1x16x16x4xbf16>
    %9 = vector.shape_cast %8 : vector<1x1x16x16x4xbf16> to vector<16x16x4xbf16>
    %10 = vector.shape_cast %9 : vector<16x16x4xbf16> to vector<256x4xbf16>
    %c0_14 = arith.constant 0 : index
    %c0_15 = arith.constant 0 : index
    %c1_16 = arith.constant 1 : index
    %c0_17 = arith.constant 0 : index
    %c0_18 = arith.constant 0 : index
    %11 = vector.load %arg3[%c0_14, %c0_15, %c1_16, %c0_17, %c0_18] : memref<1x3x3x4x4xbf16, #tpu.memory_space<vmem>>, vector<1x1x1x4x4xbf16>
    %12 = vector.shape_cast %11 : vector<1x1x1x4x4xbf16> to vector<4x4xbf16>
    %cst_19 = arith.constant dense<0.000000e+00> : vector<256x4xf32>
    %13 = tpu.matmul %10, %12, %cst_19 {dimension_numbers = #tpu.dot_dimension_numbers<[1], [0], [0], [1], [0, 0, 1, 1], [], []>} : vector<256x4xbf16>, vector<4x4xbf16>, vector<256x4xf32> -> vector<256x4xf32>
    %14 = arith.addf %7, %13 : vector<256x4xf32>
    %c0_20 = arith.constant 0 : index
    %c0_21 = arith.constant 0 : index
    %c0_22 = arith.constant 0 : index
    %c2 = arith.constant 2 : index
    %c0_23 = arith.constant 0 : index
    %15 = vector.load %arg2[%c0_20, %c0_21, %c0_22, %c2, %c0_23] : memref<1x1x18x18x4xbf16, #tpu.memory_space<vmem>>, vector<1x1x16x16x4xbf16>
    %16 = vector.shape_cast %15 : vector<1x1x16x16x4xbf16> to vector<16x16x4xbf16>
    %17 = vector.shape_cast %16 : vector<16x16x4xbf16> to vector<256x4xbf16>
    %c0_24 = arith.constant 0 : index
    %c0_25 = arith.constant 0 : index
    %c2_26 = arith.constant 2 : index
    %c0_27 = arith.constant 0 : index
    %c0_28 = arith.constant 0 : index
    %18 = vector.load %arg3[%c0_24, %c0_25, %c2_26, %c0_27, %c0_28] : memref<1x3x3x4x4xbf16, #tpu.memory_space<vmem>>, vector<1x1x1x4x4xbf16>
    %19 = vector.shape_cast %18 : vector<1x1x1x4x4xbf16> to vector<4x4xbf16>
    %cst_29 = arith.constant dense<0.000000e+00> : vector<256x4xf32>
    %20 = tpu.matmul %17, %19, %cst_29 {dimension_numbers = #tpu.dot_dimension_numbers<[1], [0], [0], [1], [0, 0, 1, 1], [], []>} : vector<256x4xbf16>, vector<4x4xbf16>, vector<256x4xf32> -> vector<256x4xf32>
    %21 = arith.addf %14, %20 : vector<256x4xf32>
    %c0_30 = arith.constant 0 : index
    %c0_31 = arith.constant 0 : index
    %c1_32 = arith.constant 1 : index
    %c0_33 = arith.constant 0 : index
    %c0_34 = arith.constant 0 : index
    %22 = vector.load %arg2[%c0_30, %c0_31, %c1_32, %c0_33, %c0_34] : memref<1x1x18x18x4xbf16, #tpu.memory_space<vmem>>, vector<1x1x16x16x4xbf16>
    %23 = vector.shape_cast %22 : vector<1x1x16x16x4xbf16> to vector<16x16x4xbf16>
    %24 = vector.shape_cast %23 : vector<16x16x4xbf16> to vector<256x4xbf16>
    %c0_35 = arith.constant 0 : index
    %c1_36 = arith.constant 1 : index
    %c0_37 = arith.constant 0 : index
    %c0_38 = arith.constant 0 : index
    %c0_39 = arith.constant 0 : index
    %25 = vector.load %arg3[%c0_35, %c1_36, %c0_37, %c0_38, %c0_39] : memref<1x3x3x4x4xbf16, #tpu.memory_space<vmem>>, vector<1x1x1x4x4xbf16>
    %26 = vector.shape_cast %25 : vector<1x1x1x4x4xbf16> to vector<4x4xbf16>
    %cst_40 = arith.constant dense<0.000000e+00> : vector<256x4xf32>
    %27 = tpu.matmul %24, %26, %cst_40 {dimension_numbers = #tpu.dot_dimension_numbers<[1], [0], [0], [1], [0, 0, 1, 1], [], []>} : vector<256x4xbf16>, vector<4x4xbf16>, vector<256x4xf32> -> vector<256x4xf32>
    %28 = arith.addf %21, %27 : vector<256x4xf32>
    %c0_41 = arith.constant 0 : index
    %c0_42 = arith.constant 0 : index
    %c1_43 = arith.constant 1 : index
    %c1_44 = arith.constant 1 : index
    %c0_45 = arith.constant 0 : index
    %29 = vector.load %arg2[%c0_41, %c0_42, %c1_43, %c1_44, %c0_45] : memref<1x1x18x18x4xbf16, #tpu.memory_space<vmem>>, vector<1x1x16x16x4xbf16>
    %30 = vector.shape_cast %29 : vector<1x1x16x16x4xbf16> to vector<16x16x4xbf16>
    %31 = vector.shape_cast %30 : vector<16x16x4xbf16> to vector<256x4xbf16>
    %c0_46 = arith.constant 0 : index
    %c1_47 = arith.constant 1 : index
    %c1_48 = arith.constant 1 : index
    %c0_49 = arith.constant 0 : index
    %c0_50 = arith.constant 0 : index
    %32 = vector.load %arg3[%c0_46, %c1_47, %c1_48, %c0_49, %c0_50] : memref<1x3x3x4x4xbf16, #tpu.memory_space<vmem>>, vector<1x1x1x4x4xbf16>
    %33 = vector.shape_cast %32 : vector<1x1x1x4x4xbf16> to vector<4x4xbf16>
    %cst_51 = arith.constant dense<0.000000e+00> : vector<256x4xf32>
    %34 = tpu.matmul %31, %33, %cst_51 {dimension_numbers = #tpu.dot_dimension_numbers<[1], [0], [0], [1], [0, 0, 1, 1], [], []>} : vector<256x4xbf16>, vector<4x4xbf16>, vector<256x4xf32> -> vector<256x4xf32>
    %35 = arith.addf %28, %34 : vector<256x4xf32>
    %c0_52 = arith.constant 0 : index
    %c0_53 = arith.constant 0 : index
    %c1_54 = arith.constant 1 : index
    %c2_55 = arith.constant 2 : index
    %c0_56 = arith.constant 0 : index
    %36 = vector.load %arg2[%c0_52, %c0_53, %c1_54, %c2_55, %c0_56] : memref<1x1x18x18x4xbf16, #tpu.memory_space<vmem>>, vector<1x1x16x16x4xbf16>
    %37 = vector.shape_cast %36 : vector<1x1x16x16x4xbf16> to vector<16x16x4xbf16>
    %38 = vector.shape_cast %37 : vector<16x16x4xbf16> to vector<256x4xbf16>
    %c0_57 = arith.constant 0 : index
    %c1_58 = arith.constant 1 : index
    %c2_59 = arith.constant 2 : index
    %c0_60 = arith.constant 0 : index
    %c0_61 = arith.constant 0 : index
    %39 = vector.load %arg3[%c0_57, %c1_58, %c2_59, %c0_60, %c0_61] : memref<1x3x3x4x4xbf16, #tpu.memory_space<vmem>>, vector<1x1x1x4x4xbf16>
    %40 = vector.shape_cast %39 : vector<1x1x1x4x4xbf16> to vector<4x4xbf16>
    %cst_62 = arith.constant dense<0.000000e+00> : vector<256x4xf32>
    %41 = tpu.matmul %38, %40, %cst_62 {dimension_numbers = #tpu.dot_dimension_numbers<[1], [0], [0], [1], [0, 0, 1, 1], [], []>} : vector<256x4xbf16>, vector<4x4xbf16>, vector<256x4xf32> -> vector<256x4xf32>
    %42 = arith.addf %35, %41 : vector<256x4xf32>
    %c0_63 = arith.constant 0 : index
    %c0_64 = arith.constant 0 : index
    %c2_65 = arith.constant 2 : index
    %c0_66 = arith.constant 0 : index
    %c0_67 = arith.constant 0 : index
    %43 = vector.load %arg2[%c0_63, %c0_64, %c2_65, %c0_66, %c0_67] : memref<1x1x18x18x4xbf16, #tpu.memory_space<vmem>>, vector<1x1x16x16x4xbf16>
    %44 = vector.shape_cast %43 : vector<1x1x16x16x4xbf16> to vector<16x16x4xbf16>
    %45 = vector.shape_cast %44 : vector<16x16x4xbf16> to vector<256x4xbf16>
    %c0_68 = arith.constant 0 : index
    %c2_69 = arith.constant 2 : index
    %c0_70 = arith.constant 0 : index
    %c0_71 = arith.constant 0 : index
    %c0_72 = arith.constant 0 : index
    %46 = vector.load %arg3[%c0_68, %c2_69, %c0_70, %c0_71, %c0_72] : memref<1x3x3x4x4xbf16, #tpu.memory_space<vmem>>, vector<1x1x1x4x4xbf16>
    %47 = vector.shape_cast %46 : vector<1x1x1x4x4xbf16> to vector<4x4xbf16>
    %cst_73 = arith.constant dense<0.000000e+00> : vector<256x4xf32>
    %48 = tpu.matmul %45, %47, %cst_73 {dimension_numbers = #tpu.dot_dimension_numbers<[1], [0], [0], [1], [0, 0, 1, 1], [], []>} : vector<256x4xbf16>, vector<4x4xbf16>, vector<256x4xf32> -> vector<256x4xf32>
    %49 = arith.addf %42, %48 : vector<256x4xf32>
    %c0_74 = arith.constant 0 : index
    %c0_75 = arith.constant 0 : index
    %c2_76 = arith.constant 2 : index
    %c1_77 = arith.constant 1 : index
    %c0_78 = arith.constant 0 : index
    %50 = vector.load %arg2[%c0_74, %c0_75, %c2_76, %c1_77, %c0_78] : memref<1x1x18x18x4xbf16, #tpu.memory_space<vmem>>, vector<1x1x16x16x4xbf16>
    %51 = vector.shape_cast %50 : vector<1x1x16x16x4xbf16> to vector<16x16x4xbf16>
    %52 = vector.shape_cast %51 : vector<16x16x4xbf16> to vector<256x4xbf16>
    %c0_79 = arith.constant 0 : index
    %c2_80 = arith.constant 2 : index
    %c1_81 = arith.constant 1 : index
    %c0_82 = arith.constant 0 : index
    %c0_83 = arith.constant 0 : index
    %53 = vector.load %arg3[%c0_79, %c2_80, %c1_81, %c0_82, %c0_83] : memref<1x3x3x4x4xbf16, #tpu.memory_space<vmem>>, vector<1x1x1x4x4xbf16>
    %54 = vector.shape_cast %53 : vector<1x1x1x4x4xbf16> to vector<4x4xbf16>
    %cst_84 = arith.constant dense<0.000000e+00> : vector<256x4xf32>
    %55 = tpu.matmul %52, %54, %cst_84 {dimension_numbers = #tpu.dot_dimension_numbers<[1], [0], [0], [1], [0, 0, 1, 1], [], []>} : vector<256x4xbf16>, vector<4x4xbf16>, vector<256x4xf32> -> vector<256x4xf32>
    %56 = arith.addf %49, %55 : vector<256x4xf32>
    %c0_85 = arith.constant 0 : index
    %c0_86 = arith.constant 0 : index
    %c2_87 = arith.constant 2 : index
    %c2_88 = arith.constant 2 : index
    %c0_89 = arith.constant 0 : index
    %57 = vector.load %arg2[%c0_85, %c0_86, %c2_87, %c2_88, %c0_89] : memref<1x1x18x18x4xbf16, #tpu.memory_space<vmem>>, vector<1x1x16x16x4xbf16>
    %58 = vector.shape_cast %57 : vector<1x1x16x16x4xbf16> to vector<16x16x4xbf16>
    %59 = vector.shape_cast %58 : vector<16x16x4xbf16> to vector<256x4xbf16>
    %c0_90 = arith.constant 0 : index
    %c2_91 = arith.constant 2 : index
    %c2_92 = arith.constant 2 : index
    %c0_93 = arith.constant 0 : index
    %c0_94 = arith.constant 0 : index
    %60 = vector.load %arg3[%c0_90, %c2_91, %c2_92, %c0_93, %c0_94] : memref<1x3x3x4x4xbf16, #tpu.memory_space<vmem>>, vector<1x1x1x4x4xbf16>
    %61 = vector.shape_cast %60 : vector<1x1x1x4x4xbf16> to vector<4x4xbf16>
    %cst_95 = arith.constant dense<0.000000e+00> : vector<256x4xf32>
    %62 = tpu.matmul %59, %61, %cst_95 {dimension_numbers = #tpu.dot_dimension_numbers<[1], [0], [0], [1], [0, 0, 1, 1], [], []>} : vector<256x4xbf16>, vector<4x4xbf16>, vector<256x4xf32> -> vector<256x4xf32>
    %63 = arith.addf %56, %62 : vector<256x4xf32>
    %c0_96 = arith.constant 0 : index
    %c0_97 = arith.constant 0 : index
    %64 = vector.load %arg4[%c0_96, %c0_97] : memref<1x4xf32, #tpu.memory_space<vmem>>, vector<1x4xf32>
    %65 = vector.broadcast %64 : vector<1x4xf32> to vector<256x4xf32>
    %66 = arith.mulf %63, %65 : vector<256x4xf32>
    %c0_98 = arith.constant 0 : index
    %c0_99 = arith.constant 0 : index
    %67 = vector.load %arg5[%c0_98, %c0_99] : memref<1x4xf32, #tpu.memory_space<vmem>>, vector<1x4xf32>
    %68 = vector.broadcast %67 : vector<1x4xf32> to vector<256x4xf32>
    %69 = arith.addf %66, %68 : vector<256x4xf32>
    %cst_100 = arith.constant 0.000000e+00 : f32
    %70 = vector.broadcast %cst_100 : f32 to vector<256x4xf32>
    %71 = arith.maximumf %69, %70 : vector<256x4xf32>
    %c0_101 = arith.constant 0 : index
    %c0_102 = arith.constant 0 : index
    %72 = vector.load %arg6[%c0_101, %c0_102] : memref<8x4xbf16, #tpu.memory_space<vmem>>, vector<8x4xbf16>
    %73 = arith.truncf %71 : vector<256x4xf32> to vector<256x4xbf16>
    %cst_103 = arith.constant dense<0.000000e+00> : vector<8x256xf32>
    %74 = tpu.matmul %72, %73, %cst_103 {dimension_numbers = #tpu.dot_dimension_numbers<[1], [1], [0], [0], [0, 0, 1, 0], [], []>} : vector<8x4xbf16>, vector<256x4xbf16>, vector<8x256xf32> -> vector<8x256xf32>
    %c0_104 = arith.constant 0 : index
    %c0_105 = arith.constant 0 : index
    %75 = vector.load %arg7[%c0_104, %c0_105] : memref<8x1xf32, #tpu.memory_space<vmem>>, vector<8x1xf32>
    %76 = vector.broadcast %75 : vector<8x1xf32> to vector<8x256xf32>
    %77 = arith.mulf %74, %76 : vector<8x256xf32>
    %c0_106 = arith.constant 0 : index
    %c0_107 = arith.constant 0 : index
    %78 = vector.load %arg8[%c0_106, %c0_107] : memref<8x1xf32, #tpu.memory_space<vmem>>, vector<8x1xf32>
    %79 = vector.broadcast %78 : vector<8x1xf32> to vector<8x256xf32>
    %80 = arith.addf %77, %79 : vector<8x256xf32>
    %cst_108 = arith.constant 0.000000e+00 : f32
    %81 = vector.broadcast %cst_108 : f32 to vector<8x256xf32>
    %82 = arith.maximumf %80, %81 : vector<8x256xf32>
    %c0_109 = arith.constant 0 : index
    %c0_110 = arith.constant 0 : index
    %c0_111 = arith.constant 0 : index
    %c0_112 = arith.constant 0 : index
    %83 = vector.load %arg9[%c0_109, %c0_110, %c0_111, %c0_112] : memref<1x1x8x256xf32, #tpu.memory_space<vmem>>, vector<1x1x8x256xf32>
    %84 = vector.shape_cast %83 : vector<1x1x8x256xf32> to vector<8x256xf32>
    %85 = vector.shape_cast %82 : vector<8x256xf32> to vector<1x1x8x256xf32>
    tpu.vector_store %arg9[%c0_109, %c0_110, %c0_111, %c0_112], %85 {strides = array<i32>} : memref<1x1x8x256xf32, #tpu.memory_space<vmem>>, vector<1x1x8x256xf32>,
    return
  }
  func.func @transform_0(%arg0: i32, %arg1: i32) -> (i32, i32, i32, i32, i32) {
    %c0_i32 = arith.constant 0 : i32
    %c0_i32_0 = arith.constant 0 : i32
    %c0_i32_1 = arith.constant 0 : i32
    %c0_i32_2 = arith.constant 0 : i32
    return %arg0, %arg1, %c0_i32, %c0_i32_0, %c0_i32_1 : i32, i32, i32, i32, i32
  }
  func.func @transform_1(%arg0: i32, %arg1: i32) -> (i32, i32, i32, i32, i32) {
    %c0_i32 = arith.constant 0 : i32
    %c0_i32_0 = arith.constant 0 : i32
    %c0_i32_1 = arith.constant 0 : i32
    %c0_i32_2 = arith.constant 0 : i32
    %c0_i32_3 = arith.constant 0 : i32
    return %arg0, %c0_i32, %c0_i32_0, %c0_i32_1, %c0_i32_2 : i32, i32, i32, i32, i32
  }
  func.func @transform_2(%arg0: i32, %arg1: i32) -> (i32, i32) {
    %c0_i32 = arith.constant 0 : i32
    %c0_i32_0 = arith.constant 0 : i32
    %c0_i32_1 = arith.constant 0 : i32
    return %c0_i32, %c0_i32_0 : i32, i32
  }
  func.func @transform_3(%arg0: i32, %arg1: i32) -> (i32, i32) {
    %c0_i32 = arith.constant 0 : i32
    %c0_i32_0 = arith.constant 0 : i32
    %c0_i32_1 = arith.constant 0 : i32
    return %c0_i32, %c0_i32_0 : i32, i32
  }
  func.func @transform_4(%arg0: i32, %arg1: i32) -> (i32, i32) {
    %c0_i32 = arith.constant 0 : i32
    %c0_i32_0 = arith.constant 0 : i32
    %c0_i32_1 = arith.constant 0 : i32
    return %c0_i32, %c0_i32_0 : i32, i32
  }
  func.func @transform_5(%arg0: i32, %arg1: i32) -> (i32, i32) {
    %c0_i32 = arith.constant 0 : i32
    %c0_i32_0 = arith.constant 0 : i32
    %c0_i32_1 = arith.constant 0 : i32
    return %c0_i32, %c0_i32_0 : i32, i32
  }
  func.func @transform_6(%arg0: i32, %arg1: i32) -> (i32, i32) {
    %c0_i32 = arith.constant 0 : i32
    %c0_i32_0 = arith.constant 0 : i32
    %c0_i32_1 = arith.constant 0 : i32
    return %c0_i32, %c0_i32_0 : i32, i32
  }
  func.func @transform_7(%arg0: i32, %arg1: i32) -> (i32, i32, i32, i32) {
    %c0_i32 = arith.constant 0 : i32
    %c0_i32_0 = arith.constant 0 : i32
    %c0_i32_1 = arith.constant 0 : i32
    return %arg0, %arg1, %c0_i32, %c0_i32_0 : i32, i32, i32, i32
  }
}

</mosaic_0001>

<llo_original>
// kernel: intensity_position_module_forward.1
$region0: #{intensity_position_module_forward.1}
  #allocation0 [shape = 'u32[]', space=smem, size = 0x4, offset = 0x4, fixed_abs, tag = 'smem constant byte address 0x4 - core index']
  #allocation1 [shape = 'u32[72,128]{1,0:T(1,128)}', space=vmem, size = 0x9000, scoped, tag = 'internal scratch']
  %s0 = inlined_call_operand.vmem [shape: bf16[2,1,18,18,4], index: 0, kind: input, shape index: {}]
  %s1 = inlined_call_operand.vmem [shape: bf16[2,3,3,4,4], index: 1, kind: input, shape index: {}]
  %s2 = inlined_call_operand.vmem [shape: f32[1,4], index: 2, kind: input, shape index: {}]
  %s3 = inlined_call_operand.vmem [shape: f32[1,4], index: 3, kind: input, shape index: {}]
  %s4 = inlined_call_operand.vmem [shape: bf16[8,4], index: 4, kind: input, shape index: {}]
  %s5 = inlined_call_operand.vmem [shape: f32[8,1], index: 5, kind: input, shape index: {}]
  %s6 = inlined_call_operand.vmem [shape: f32[8,1], index: 6, kind: input, shape index: {}]
  %s7 = inlined_call_operand.vmem [shape: f32[2,1,8,256], index: 7, kind: output, shape index: {}]
  %s8 = sld [smem:[#allocation0]]
  $region61: #{intensity_position_module_forward.1} parent=0
    _
  %s10 = ssub.s32 1, %s8
  %s11 = scalar_select 0, %s10, %s8
  loop: start=0, step=1, limit=4
  $region2: #{intensity_position_module_forward.1} parent=0 // loop_pre_header
    _
  $region3: #{intensity_position_module_forward.1} parent=0 // loop_header
    %s13 = sphi 0, %s17
    %p14 = scmp.ge.s32.totalorder %s13, 4
    %s20 = sphi 0, %s32
    %s21 = sphi 0, %s28
    %s22 = sphi 0, %s20
    %s23 = sphi 0, %s21
    %s24 = sphi 0, %s22
    %s25 = sphi 0, %s23
    %s37 = sphi 0, %s39
    %s40 = sphi 0, %s37
    %s41 = sphi 0, %s40
    %s57 = sphi 0, %s41
    %s63 = sphi 0, %s65
    %s66 = sphi 0, %s63
    %s67 = sphi 0, %s66
    %s83 = sphi 0, %s67
    %s87 = sphi 0, %s87
    %s89 = sphi 0, %s87
    %s90 = sphi 0, %s89
    %s104 = sphi 0, %s90
    %s108 = sphi 0, %s108
    %s110 = sphi 0, %s108
    %s111 = sphi 0, %s110
    %s125 = sphi 0, %s111
    %s129 = sphi 0, %s129
    %s131 = sphi 0, %s129
    %s132 = sphi 0, %s131
    %s146 = sphi 0, %s132
    %s150 = sphi 0, %s150
    %s152 = sphi 0, %s150
    %s153 = sphi 0, %s152
    %s167 = sphi 0, %s153
    %s171 = sphi 0, %s171
    %s173 = sphi 0, %s171
    %s174 = sphi 0, %s173
    %s188 = sphi 0, %s174
    %s196 = sphi 0, %s198
    %s199 = sphi 0, %s196
    %s200 = sphi 0, %s199
    %s216 = sphi 0, %s200
  $region4: #{intensity_position_module_forward.1} parent=0 // loop_header_branch
    %16 = sbr.rel (%p14) target = $region8
  $region5: #{intensity_position_module_forward.1} parent=0 // loop_body
    %s18 = ssub.s32 %s13, 1
    %s19 = ssub.s32 %s13, 2
    %s26 = sadd.s32 1, %s21
    %p27 = scmp.ge.s32.totalorder %s26, 1
    %s28 = scalar_select %p27, 0, %s26
    %s29 = sadd.s32 1, %s20
    %s30 = scalar_select %p27, %s29, %s20
    %p31 = scmp.ge.s32.totalorder %s30, 2
    %s32 = scalar_select %p31, 0, %s30
    %s33 = ssub.s32 %s20, %s32
    %s34 = ssub.s32 %s21, %s28
    %s35 = sor.u32 %s33, %s34
    %p36 = scmp.eq.s32.totalorder %s35, 0
    %s38 = sadd.s32 %s37, 1
    %s39 = scalar_select %p36, %s37, %s38
    %p42 = pneg %p36
    %p43 = scmp.eq.s32.totalorder %s13, 1
    %p44 = por %p42, %p43
    %p45 = scmp.ne.s32.totalorder %s37, %s40
    %p46 = scmp.eq.s32.totalorder %s13, 0
    %p47 = por %p45, %p46
    %p48 = scmp.ne.s32.totalorder %s37, %s40
    %p49 = scmp.eq.s32.totalorder %s18, 1
    %p50 = por %p48, %p49
    %p51 = scmp.ne.s32.totalorder %s40, %s41
    %p52 = scmp.eq.s32.totalorder %s18, 0
    %p53 = por %p51, %p52
    %p54 = scmp.ne.s32.totalorder %s40, %s41
    %p55 = scmp.eq.s32.totalorder %s19, 1
    %p56 = por %p54, %p55
    %p58 = scmp.ne.s32.totalorder %s41, %s57
    %p59 = scmp.eq.s32.totalorder %s19, 0
    %p60 = por %p58, %p59
    %s61 = ssub.s32 %s20, %s32
    %p62 = scmp.eq.s32.totalorder %s61, 0
    %s64 = sadd.s32 %s63, 1
    %s65 = scalar_select %p62, %s63, %s64
    %p68 = pneg %p62
    %p69 = scmp.eq.s32.totalorder %s13, 1
    %p70 = por %p68, %p69
    %p71 = scmp.ne.s32.totalorder %s63, %s66
    %p72 = scmp.eq.s32.totalorder %s13, 0
    %p73 = por %p71, %p72
    %p74 = scmp.ne.s32.totalorder %s63, %s66
    %p75 = scmp.eq.s32.totalorder %s18, 1
    %p76 = por %p74, %p75
    %p77 = scmp.ne.s32.totalorder %s66, %s67
    %p78 = scmp.eq.s32.totalorder %s18, 0
    %p79 = por %p77, %p78
    %p80 = scmp.ne.s32.totalorder %s66, %s67
    %p81 = scmp.eq.s32.totalorder %s19, 1
    %p82 = por %p80, %p81
    %p84 = scmp.ne.s32.totalorder %s67, %s83
    %p85 = scmp.eq.s32.totalorder %s19, 0
    %p86 = por %p84, %p85
    %s88 = sadd.s32 %s87, 1
    %p91 = scmp.eq.s32.totalorder %s13, 1
    %p92 = scmp.ne.s32.totalorder %s87, %s89
    %p93 = scmp.eq.s32.totalorder %s13, 0
    %p94 = por %p92, %p93
    %p95 = scmp.ne.s32.totalorder %s87, %s89
    %p96 = scmp.eq.s32.totalorder %s18, 1
    %p97 = por %p95, %p96
    %p98 = scmp.ne.s32.totalorder %s89, %s90
    %p99 = scmp.eq.s32.totalorder %s18, 0
    %p100 = por %p98, %p99
    %p101 = scmp.ne.s32.totalorder %s89, %s90
    %p102 = scmp.eq.s32.totalorder %s19, 1
    %p103 = por %p101, %p102
    %p105 = scmp.ne.s32.totalorder %s90, %s104
    %p106 = scmp.eq.s32.totalorder %s19, 0
    %p107 = por %p105, %p106
    %s109 = sadd.s32 %s108, 1
    %p112 = scmp.eq.s32.totalorder %s13, 1
    %p113 = scmp.ne.s32.totalorder %s108, %s110
    %p114 = scmp.eq.s32.totalorder %s13, 0
    %p115 = por %p113, %p114
    %p116 = scmp.ne.s32.totalorder %s108, %s110
    %p117 = scmp.eq.s32.totalorder %s18, 1
    %p118 = por %p116, %p117
    %p119 = scmp.ne.s32.totalorder %s110, %s111
    %p120 = scmp.eq.s32.totalorder %s18, 0
    %p121 = por %p119, %p120
    %p122 = scmp.ne.s32.totalorder %s110, %s111
    %p123 = scmp.eq.s32.totalorder %s19, 1
    %p124 = por %p122, %p123
    %p126 = scmp.ne.s32.totalorder %s111, %s125
    %p127 = scmp.eq.s32.totalorder %s19, 0
    %p128 = por %p126, %p127
    %s130 = sadd.s32 %s129, 1
    %p133 = scmp.eq.s32.totalorder %s13, 1
    %p134 = scmp.ne.s32.totalorder %s129, %s131
    %p135 = scmp.eq.s32.totalorder %s13, 0
    %p136 = por %p134, %p135
    %p137 = scmp.ne.s32.totalorder %s129, %s131
    %p138 = scmp.eq.s32.totalorder %s18, 1
    %p139 = por %p137, %p138
    %p140 = scmp.ne.s32.totalorder %s131, %s132
    %p141 = scmp.eq.s32.totalorder %s18, 0
    %p142 = por %p140, %p141
    %p143 = scmp.ne.s32.totalorder %s131, %s132
    %p144 = scmp.eq.s32.totalorder %s19, 1
    %p145 = por %p143, %p144
    %p147 = scmp.ne.s32.totalorder %s132, %s146
    %p148 = scmp.eq.s32.totalorder %s19, 0
    %p149 = por %p147, %p148
    %s151 = sadd.s32 %s150, 1
    %p154 = scmp.eq.s32.totalorder %s13, 1
    %p155 = scmp.ne.s32.totalorder %s150, %s152
    %p156 = scmp.eq.s32.totalorder %s13, 0
    %p157 = por %p155, %p156
    %p158 = scmp.ne.s32.totalorder %s150, %s152
    %p159 = scmp.eq.s32.totalorder %s18, 1
    %p160 = por %p158, %p159
    %p161 = scmp.ne.s32.totalorder %s152, %s153
    %p162 = scmp.eq.s32.totalorder %s18, 0
    %p163 = por %p161, %p162
    %p164 = scmp.ne.s32.totalorder %s152, %s153
    %p165 = scmp.eq.s32.totalorder %s19, 1
    %p166 = por %p164, %p165
    %p168 = scmp.ne.s32.totalorder %s153, %s167
    %p169 = scmp.eq.s32.totalorder %s19, 0
    %p170 = por %p168, %p169
    %s172 = sadd.s32 %s171, 1
    %p175 = scmp.eq.s32.totalorder %s13, 1
    %p176 = scmp.ne.s32.totalorder %s171, %s173
    %p177 = scmp.eq.s32.totalorder %s13, 0
    %p178 = por %p176, %p177
    %p179 = scmp.ne.s32.totalorder %s171, %s173
    %p180 = scmp.eq.s32.totalorder %s18, 1
    %p181 = por %p179, %p180
    %p182 = scmp.ne.s32.totalorder %s173, %s174
    %p183 = scmp.eq.s32.totalorder %s18, 0
    %p184 = por %p182, %p183
    %p185 = scmp.ne.s32.totalorder %s173, %s174
    %p186 = scmp.eq.s32.totalorder %s19, 1
    %p187 = por %p185, %p186
    %p189 = scmp.ne.s32.totalorder %s174, %s188
    %p190 = scmp.eq.s32.totalorder %s19, 0
    %p191 = por %p189, %p190
    %s192 = ssub.s32 %s20, %s32
    %s193 = ssub.s32 %s21, %s28
    %s194 = sor.u32 %s192, %s193
    %p195 = scmp.eq.s32.totalorder %s194, 0
    %s197 = sadd.s32 %s196, 1
    %s198 = scalar_select %p195, %s196, %s197
    %p201 = pneg %p195
    %p202 = scmp.eq.s32.totalorder %s13, 1
    %p203 = por %p201, %p202
    %p204 = scmp.ne.s32.totalorder %s196, %s199
    %p205 = scmp.eq.s32.totalorder %s13, 0
    %p206 = por %p204, %p205
    %p207 = scmp.ne.s32.totalorder %s196, %s199
    %p208 = scmp.eq.s32.totalorder %s18, 1
    %p209 = por %p207, %p208
    %p210 = scmp.ne.s32.totalorder %s199, %s200
    %p211 = scmp.eq.s32.totalorder %s18, 0
    %p212 = por %p210, %p211
    %p213 = scmp.ne.s32.totalorder %s199, %s200
    %p214 = scmp.eq.s32.totalorder %s19, 1
    %p215 = por %p213, %p214
    %p217 = scmp.ne.s32.totalorder %s200, %s216
    %p218 = scmp.eq.s32.totalorder %s19, 0
    %p219 = por %p217, %p218
    %p220 = scmp.le.s32.totalorder 1, %s13
    %p221 = scmp.lt.s32.totalorder %s13, 3
    %p222 = pnand %p220, %p221
    %p223 = pneg %p222
    // Predicated region
    $region9: #{intensity_position_module_forward.1} parent=5 // pred_check
      _
    $region10: #{intensity_position_module_forward.1} parent=5 // pred_check_branch
      %225 = sbr.rel (%p222) target = $region12
    $region11: #{intensity_position_module_forward.1} parent=5 // pred_region
      %s226 = ssub.s32 %s13, 1
      // Predicated region
      $region13: #{intensity_position_module_forward.1} parent=11 // pred_check
        %p227 = pneg %p100
      $region14: #{intensity_position_module_forward.1} parent=11 // pred_check_branch
        %229 = sbr.rel (%p227) target = $region16
      $region15: #{intensity_position_module_forward.1} parent=11 // pred_region
        _
      $region16: #{intensity_position_module_forward.1} parent=11 // pred_fallthru
        _
      // Predicated region
      $region17: #{intensity_position_module_forward.1} parent=11 // pred_check
        %p230 = pneg %p121
      $region18: #{intensity_position_module_forward.1} parent=11 // pred_check_branch
        %232 = sbr.rel (%p230) target = $region20
      $region19: #{intensity_position_module_forward.1} parent=11 // pred_region
        _
      $region20: #{intensity_position_module_forward.1} parent=11 // pred_fallthru
        _
      // Predicated region
      $region21: #{intensity_position_module_forward.1} parent=11 // pred_check
        %p233 = pneg %p142
      $region22: #{intensity_position_module_forward.1} parent=11 // pred_check_branch
        %235 = sbr.rel (%p233) target = $region24
      $region23: #{intensity_position_module_forward.1} parent=11 // pred_region
        _
      $region24: #{intensity_position_module_forward.1} parent=11 // pred_fallthru
        _
      // Predicated region
      $region25: #{intensity_position_module_forward.1} parent=11 // pred_check
        %p236 = pneg %p163
      $region26: #{intensity_position_module_forward.1} parent=11 // pred_check_branch
        %238 = sbr.rel (%p236) target = $region28
      $region27: #{intensity_position_module_forward.1} parent=11 // pred_region
        _
      $region28: #{intensity_position_module_forward.1} parent=11 // pred_fallthru
        _
      // Predicated region
      $region29: #{intensity_position_module_forward.1} parent=11 // pred_check
        %p239 = pneg %p184
      $region30: #{intensity_position_module_forward.1} parent=11 // pred_check_branch
        %241 = sbr.rel (%p239) target = $region32
      $region31: #{intensity_position_module_forward.1} parent=11 // pred_region
        _
      $region32: #{intensity_position_module_forward.1} parent=11 // pred_fallthru
        _
    $region12: #{intensity_position_module_forward.1} parent=5 // pred_fallthru
      _
    %p242 = scmp.lt.s32.totalorder %s13, 2
    // Predicated region
    $region33: #{intensity_position_module_forward.1} parent=5 // pred_check
      %p243 = pneg %p242
    $region34: #{intensity_position_module_forward.1} parent=5 // pred_check_branch
      %245 = sbr.rel (%p243) target = $region36
    $region35: #{intensity_position_module_forward.1} parent=5 // pred_region
      // Predicated region
      $region37: #{intensity_position_module_forward.1} parent=35 // pred_check
        %p246 = pneg %p47
      $region38: #{intensity_position_module_forward.1} parent=35 // pred_check_branch
        %248 = sbr.rel (%p246) target = $region40
      $region39: #{intensity_position_module_forward.1} parent=35 // pred_region
        %p249 = scmp.lt.s32.totalorder %s20, 1
        %s250 = scalar_select %p249, %s20, 1
        %p251 = scmp.lt.s32.totalorder %s21, 0
        %s252 = scalar_select %p251, %s21, 0
        %s253 = smul.addr %s252, 54
        %s254 = smul.addr %s250, 54
        %s255 = sadd.s32 %s253, %s254
        %s256 = smul.addr %s255, 4
        %s257 = scalar_lea.vmem %s0, %s256
      $region40: #{intensity_position_module_forward.1} parent=35 // pred_fallthru
        _
      // Predicated region
      $region41: #{intensity_position_module_forward.1} parent=35 // pred_check
        %p258 = pneg %p73
      $region42: #{intensity_position_module_forward.1} parent=35 // pred_check_branch
        %260 = sbr.rel (%p258) target = $region44
      $region43: #{intensity_position_module_forward.1} parent=35 // pred_region
        %p261 = scmp.lt.s32.totalorder %s20, 1
        %s262 = scalar_select %p261, %s20, 1
        %s263 = smul.addr %s262, 9
        %s264 = smul.addr %s263, 2
        %s265 = scalar_lea.vmem %s1, %s264
      $region44: #{intensity_position_module_forward.1} parent=35 // pred_fallthru
        _
    $region36: #{intensity_position_module_forward.1} parent=5 // pred_fallthru
      _
    %p266 = scmp.le.s32.totalorder 1, %s13
    %p267 = scmp.lt.s32.totalorder %s13, 3
    %p268 = pnand %p266, %p267
    %p269 = pneg %p268
    // Predicated region
    $region45: #{intensity_position_module_forward.1} parent=5 // pred_check
      _
    $region46: #{intensity_position_module_forward.1} parent=5 // pred_check_branch
      %271 = sbr.rel (%p268) target = $region48
    $region47: #{intensity_position_module_forward.1} parent=5 // pred_region
      %s272 = ssub.s32 %s13, 1
      %p273 = scmp.lt.s32.totalorder %s22, 1
      %s274 = scalar_select %p273, %s22, 1
      %p275 = scmp.lt.s32.totalorder %s23, 0
      %s276 = scalar_select %p275, %s23, 0
      %s277 = smul.addr %s276, 54
      %s278 = smul.addr %s274, 54
      %s279 = sadd.s32 %s277, %s278
      %s280 = smul.addr %s279, 4
      %s281 = scalar_lea.vmem %s0, %s280
      %p282 = pneg %p53
      %p283 = pneg %p50
      %p284 = scmp.lt.s32.totalorder %s22, 1
      %s285 = scalar_select %p284, %s22, 1
      %s286 = smul.addr %s285, 9
      %s287 = smul.addr %s286, 2
      %s288 = scalar_lea.vmem %s1, %s287
      %p289 = pneg %p79
      %p290 = pneg %p76
      %p291 = pneg %p100
      %p292 = pneg %p97
      %p293 = pneg %p121
      %p294 = pneg %p118
      %p295 = pneg %p142
      %p296 = pneg %p139
      %p297 = pneg %p163
      %p298 = pneg %p160
      %p299 = pneg %p184
      %p300 = pneg %p181
      %p301 = pneg %p212
      %p302 = pneg %p209
      %p303 = scmp.lt.s32.totalorder %s22, 1
      %s304 = scalar_select %p303, %s22, 1
      %p305 = scmp.lt.s32.totalorder %s23, 0
      %s306 = scalar_select %p305, %s23, 0
      %s307 = smul.addr %s306, 2
      %s308 = smul.addr %s304, 2
      %s309 = sadd.s32 %s307, %s308
      %s310 = smul.addr %s309, 8
      %s311 = scalar_lea.vmem %s7, %s310
      %p312 = scmp.lt.s32.totalorder %s22, 1
      %s313 = scalar_select %p312, %s22, 1
      %p314 = scmp.lt.s32.totalorder %s23, 0
      %s315 = scalar_select %p314, %s23, 0
      %s316 = smul.addr %s315, 54
      %s317 = smul.addr %s313, 54
      %s318 = sadd.s32 %s316, %s317
      %s319 = smul.addr %s318, 4
      %s320 = scalar_lea.vmem %s0, %s319
      %p321 = scmp.lt.s32.totalorder %s22, 1
      %s322 = scalar_select %p321, %s22, 1
      %s323 = smul.addr %s322, 9
      %s324 = smul.addr %s323, 2
      %s325 = scalar_lea.vmem %s1, %s324
      %p326 = scmp.lt.s32.totalorder %s22, 1
      %s327 = scalar_select %p326, %s22, 1
      %p328 = scmp.lt.s32.totalorder %s23, 0
      %s329 = scalar_select %p328, %s23, 0
      %s330 = smul.addr %s329, 2
      %s331 = smul.addr %s327, 2
      %s332 = sadd.s32 %s330, %s331
      %s333 = smul.addr %s332, 8
      %s334 = scalar_lea.vmem %s7, %s333
      %v336 = vld [vmem:[%s320] sm:$0xf]
      %v337 = vld [vmem:[%s320 + $0x4] sm:$0xf]
      %v338 = vld [vmem:[%s320 + $0xc] sm:$0xf]
      %v339 = vld [vmem:[%s320 + $0x10] sm:$0xf]
      %v340 = vld [vmem:[%s320 + $0x18] sm:$0xf]
      %v341 = vld [vmem:[%s320 + $0x1c] sm:$0xf]
      %v342 = vld [vmem:[%s320 + $0x24] sm:$0xf]
      %v343 = vld [vmem:[%s320 + $0x28] sm:$0xf]
      %v344 = vld [vmem:[%s320 + $0x30] sm:$0xf]
      %v345 = vld [vmem:[%s320 + $0x34] sm:$0xf]
      %v346 = vld [vmem:[%s320 + $0x3c] sm:$0xf]
      %v347 = vld [vmem:[%s320 + $0x40] sm:$0xf]
      %v348 = vld [vmem:[%s320 + $0x48] sm:$0xf]
      %v349 = vld [vmem:[%s320 + $0x4c] sm:$0xf]
      %v350 = vld [vmem:[%s320 + $0x54] sm:$0xf]
      %v351 = vld [vmem:[%s320 + $0x58] sm:$0xf]
      %v352 = vld [vmem:[%s320 + $0x60] sm:$0xf]
      %v353 = vld [vmem:[%s320 + $0x64] sm:$0xf]
      %v354 = vld [vmem:[%s320 + $0x6c] sm:$0xf]
      %v355 = vld [vmem:[%s320 + $0x70] sm:$0xf]
      %v356 = vld [vmem:[%s320 + $0x78] sm:$0xf]
      %v357 = vld [vmem:[%s320 + $0x7c] sm:$0xf]
      %v358 = vld [vmem:[%s320 + $0x84] sm:$0xf]
      %v359 = vld [vmem:[%s320 + $0x88] sm:$0xf]
      %v360 = vld [vmem:[%s320 + $0x90] sm:$0xf]
      %v361 = vld [vmem:[%s320 + $0x94] sm:$0xf]
      %v362 = vld [vmem:[%s320 + $0x9c] sm:$0xf]
      %v363 = vld [vmem:[%s320 + $0xa0] sm:$0xf]
      %v364 = vld [vmem:[%s320 + $0xa8] sm:$0xf]
      %v365 = vld [vmem:[%s320 + $0xac] sm:$0xf]
      %v366 = vld [vmem:[%s320 + $0xb4] sm:$0xf]
      %v367 = vld [vmem:[%s320 + $0xb8] sm:$0xf]
      %v368 = vld [vmem:[%s325] sm:$0x3]
      %v369 = vld [vmem:[%s320 + $0x8] sm:$0x1]
      %v370 = vld [vmem:[%s320 + $0x14] sm:$0x1]
      %v371 = vld [vmem:[%s320 + $0x20] sm:$0x1]
      %v372 = vld [vmem:[%s320 + $0x2c] sm:$0x1]
      %v373 = vld [vmem:[%s320 + $0x38] sm:$0x1]
      %v374 = vld [vmem:[%s320 + $0x44] sm:$0x1]
      %v375 = vld [vmem:[%s320 + $0x50] sm:$0x1]
      %v376 = vld [vmem:[%s320 + $0x5c] sm:$0x1]
      %v377 = vld [vmem:[%s320 + $0x68] sm:$0x1]
      %v378 = vld [vmem:[%s320 + $0x74] sm:$0x1]
      %v379 = vld [vmem:[%s320 + $0x80] sm:$0x1]
      %v380 = vld [vmem:[%s320 + $0x8c] sm:$0x1]
      %v381 = vld [vmem:[%s320 + $0x98] sm:$0x1]
      %v382 = vld [vmem:[%s320 + $0xa4] sm:$0x1]
      %v383 = vld [vmem:[%s320 + $0xb0] sm:$0x1]
      %v384 = vld [vmem:[%s320 + $0xbc] sm:$0x1]
      %vm385 = vsmask.f32 3328
      %vm386 = vsmask.f32 7440
      %vm387 = vmor %vm385, %vm386
      %v389 = vshrl.u32 %v336, 16
      %v391 = vrot.slane %v389, 4
      %v392 = vshll.u32 %v336, 16
      %v394 = vrot.slane %v392, 5
      %v395 = vor.u32 %v391, %v394
      %v396 = vrot.slane %v395, 4
      %v398 = vshll.u32 %v337, 16
      %v400 = vrot.slane %v398, 5
      %v401 = vsel %vm387, %v396, %v400
      %v402 = vshrl.u32 %v337, 16
      %v404 = vrot.slane %v402, 4
      %v405 = vor.u32 %v404, %v400
      %v406 = vrot.slane %v405, 4
      %v408 = vshll.u32 %v369, 16
      %v410 = vrot.slane %v408, 5
      %v411 = vsel %vm387, %v406, %v410
      %v413 = vshrl.u32 %v338, 16
      %v415 = vrot.slane %v413, 4
      %v416 = vshll.u32 %v338, 16
      %v418 = vrot.slane %v416, 5
      %v419 = vor.u32 %v415, %v418
      %v420 = vrot.slane %v419, 4
      %v422 = vshll.u32 %v339, 16
      %v424 = vrot.slane %v422, 5
      %v425 = vsel %vm387, %v420, %v424
      %v426 = vshrl.u32 %v339, 16
      %v428 = vrot.slane %v426, 4
      %v429 = vor.u32 %v428, %v424
      %v430 = vrot.slane %v429, 4
      %v432 = vshll.u32 %v370, 16
      %v434 = vrot.slane %v432, 5
      %v435 = vsel %vm387, %v430, %v434
      %v437 = vshrl.u32 %v340, 16
      %v439 = vrot.slane %v437, 4
      %v440 = vshll.u32 %v340, 16
      %v442 = vrot.slane %v440, 5
      %v443 = vor.u32 %v439, %v442
      %v444 = vrot.slane %v443, 4
      %v446 = vshll.u32 %v341, 16
      %v448 = vrot.slane %v446, 5
      %v449 = vsel %vm387, %v444, %v448
      %v450 = vshrl.u32 %v341, 16
      %v452 = vrot.slane %v450, 4
      %v453 = vor.u32 %v452, %v448
      %v454 = vrot.slane %v453, 4
      %v456 = vshll.u32 %v371, 16
      %v458 = vrot.slane %v456, 5
      %v459 = vsel %vm387, %v454, %v458
      %v461 = vshrl.u32 %v342, 16
      %v463 = vrot.slane %v461, 4
      %v464 = vshll.u32 %v342, 16
      %v466 = vrot.slane %v464, 5
      %v467 = vor.u32 %v463, %v466
      %v468 = vrot.slane %v467, 4
      %v470 = vshll.u32 %v343, 16
      %v472 = vrot.slane %v470, 5
      %v473 = vsel %vm387, %v468, %v472
      %v474 = vshrl.u32 %v343, 16
      %v476 = vrot.slane %v474, 4
      %v477 = vor.u32 %v476, %v472
      %v478 = vrot.slane %v477, 4
      %v480 = vshll.u32 %v372, 16
      %v482 = vrot.slane %v480, 5
      %v483 = vsel %vm387, %v478, %v482
      %v485 = vshrl.u32 %v344, 16
      %v487 = vrot.slane %v485, 4
      %v488 = vshll.u32 %v344, 16
      %v490 = vrot.slane %v488, 5
      %v491 = vor.u32 %v487, %v490
      %v492 = vrot.slane %v491, 4
      %v494 = vshll.u32 %v345, 16
      %v496 = vrot.slane %v494, 5
      %v497 = vsel %vm387, %v492, %v496
      %v498 = vshrl.u32 %v345, 16
      %v500 = vrot.slane %v498, 4
      %v501 = vor.u32 %v500, %v496
      %v502 = vrot.slane %v501, 4
      %v504 = vshll.u32 %v373, 16
      %v506 = vrot.slane %v504, 5
      %v507 = vsel %vm387, %v502, %v506
      %v509 = vshrl.u32 %v346, 16
      %v511 = vrot.slane %v509, 4
      %v512 = vshll.u32 %v346, 16
      %v514 = vrot.slane %v512, 5
      %v515 = vor.u32 %v511, %v514
      %v516 = vrot.slane %v515, 4
      %v518 = vshll.u32 %v347, 16
      %v520 = vrot.slane %v518, 5
      %v521 = vsel %vm387, %v516, %v520
      %v522 = vshrl.u32 %v347, 16
      %v524 = vrot.slane %v522, 4
      %v525 = vor.u32 %v524, %v520
      %v526 = vrot.slane %v525, 4
      %v528 = vshll.u32 %v374, 16
      %v530 = vrot.slane %v528, 5
      %v531 = vsel %vm387, %v526, %v530
      %v533 = vshrl.u32 %v348, 16
      %v535 = vrot.slane %v533, 4
      %v536 = vshll.u32 %v348, 16
      %v538 = vrot.slane %v536, 5
      %v539 = vor.u32 %v535, %v538
      %v540 = vrot.slane %v539, 4
      %v542 = vshll.u32 %v349, 16
      %v544 = vrot.slane %v542, 5
      %v545 = vsel %vm387, %v540, %v544
      %v546 = vshrl.u32 %v349, 16
      %v548 = vrot.slane %v546, 4
      %v549 = vor.u32 %v548, %v544
      %v550 = vrot.slane %v549, 4
      %v552 = vshll.u32 %v375, 16
      %v554 = vrot.slane %v552, 5
      %v555 = vsel %vm387, %v550, %v554
      %v557 = vshrl.u32 %v350, 16
      %v559 = vrot.slane %v557, 4
      %v560 = vshll.u32 %v350, 16
      %v562 = vrot.slane %v560, 5
      %v563 = vor.u32 %v559, %v562
      %v564 = vrot.slane %v563, 4
      %v566 = vshll.u32 %v351, 16
      %v568 = vrot.slane %v566, 5
      %v569 = vsel %vm387, %v564, %v568
      %v570 = vshrl.u32 %v351, 16
      %v572 = vrot.slane %v570, 4
      %v573 = vor.u32 %v572, %v568
      %v574 = vrot.slane %v573, 4
      %v576 = vshll.u32 %v376, 16
      %v578 = vrot.slane %v576, 5
      %v579 = vsel %vm387, %v574, %v578
      %v581 = vshrl.u32 %v352, 16
      %v583 = vrot.slane %v581, 4
      %v584 = vshll.u32 %v352, 16
      %v586 = vrot.slane %v584, 5
      %v587 = vor.u32 %v583, %v586
      %v588 = vrot.slane %v587, 4
      %v590 = vshll.u32 %v353, 16
      %v592 = vrot.slane %v590, 5
      %v593 = vsel %vm387, %v588, %v592
      %v594 = vshrl.u32 %v353, 16
      %v596 = vrot.slane %v594, 4
      %v597 = vor.u32 %v596, %v592
      %v598 = vrot.slane %v597, 4
      %v600 = vshll.u32 %v377, 16
      %v602 = vrot.slane %v600, 5
      %v603 = vsel %vm387, %v598, %v602
      %v605 = vshrl.u32 %v354, 16
      %v607 = vrot.slane %v605, 4
      %v608 = vshll.u32 %v354, 16
      %v610 = vrot.slane %v608, 5
      %v611 = vor.u32 %v607, %v610
      %v612 = vrot.slane %v611, 4
      %v614 = vshll.u32 %v355, 16
      %v616 = vrot.slane %v614, 5
      %v617 = vsel %vm387, %v612, %v616
      %v618 = vshrl.u32 %v355, 16
      %v620 = vrot.slane %v618, 4
      %v621 = vor.u32 %v620, %v616
      %v622 = vrot.slane %v621, 4
      %v624 = vshll.u32 %v378, 16
      %v626 = vrot.slane %v624, 5
      %v627 = vsel %vm387, %v622, %v626
      %v629 = vshrl.u32 %v356, 16
      %v631 = vrot.slane %v629, 4
      %v632 = vshll.u32 %v356, 16
      %v634 = vrot.slane %v632, 5
      %v635 = vor.u32 %v631, %v634
      %v636 = vrot.slane %v635, 4
      %v638 = vshll.u32 %v357, 16
      %v640 = vrot.slane %v638, 5
      %v641 = vsel %vm387, %v636, %v640
      %v642 = vshrl.u32 %v357, 16
      %v644 = vrot.slane %v642, 4
      %v645 = vor.u32 %v644, %v640
      %v646 = vrot.slane %v645, 4
      %v648 = vshll.u32 %v379, 16
      %v650 = vrot.slane %v648, 5
      %v651 = vsel %vm387, %v646, %v650
      %v653 = vshrl.u32 %v358, 16
      %v655 = vrot.slane %v653, 4
      %v656 = vshll.u32 %v358, 16
      %v658 = vrot.slane %v656, 5
      %v659 = vor.u32 %v655, %v658
      %v660 = vrot.slane %v659, 4
      %v662 = vshll.u32 %v359, 16
      %v664 = vrot.slane %v662, 5
      %v665 = vsel %vm387, %v660, %v664
      %v666 = vshrl.u32 %v359, 16
      %v668 = vrot.slane %v666, 4
      %v669 = vor.u32 %v668, %v664
      %v670 = vrot.slane %v669, 4
      %v672 = vshll.u32 %v380, 16
      %v674 = vrot.slane %v672, 5
      %v675 = vsel %vm387, %v670, %v674
      %v677 = vshrl.u32 %v360, 16
      %v679 = vrot.slane %v677, 4
      %v680 = vshll.u32 %v360, 16
      %v682 = vrot.slane %v680, 5
      %v683 = vor.u32 %v679, %v682
      %v684 = vrot.slane %v683, 4
      %v686 = vshll.u32 %v361, 16
      %v688 = vrot.slane %v686, 5
      %v689 = vsel %vm387, %v684, %v688
      %v690 = vshrl.u32 %v361, 16
      %v692 = vrot.slane %v690, 4
      %v693 = vor.u32 %v692, %v688
      %v694 = vrot.slane %v693, 4
      %v696 = vshll.u32 %v381, 16
      %v698 = vrot.slane %v696, 5
      %v699 = vsel %vm387, %v694, %v698
      %v701 = vshrl.u32 %v362, 16
      %v703 = vrot.slane %v701, 4
      %v704 = vshll.u32 %v362, 16
      %v706 = vrot.slane %v704, 5
      %v707 = vor.u32 %v703, %v706
      %v708 = vrot.slane %v707, 4
      %v710 = vshll.u32 %v363, 16
      %v712 = vrot.slane %v710, 5
      %v713 = vsel %vm387, %v708, %v712
      %v714 = vshrl.u32 %v363, 16
      %v716 = vrot.slane %v714, 4
      %v717 = vor.u32 %v716, %v712
      %v718 = vrot.slane %v717, 4
      %v720 = vshll.u32 %v382, 16
      %v722 = vrot.slane %v720, 5
      %v723 = vsel %vm387, %v718, %v722
      %v725 = vshrl.u32 %v364, 16
      %v727 = vrot.slane %v725, 4
      %v728 = vshll.u32 %v364, 16
      %v730 = vrot.slane %v728, 5
      %v731 = vor.u32 %v727, %v730
      %v732 = vrot.slane %v731, 4
      %v734 = vshll.u32 %v365, 16
      %v736 = vrot.slane %v734, 5
      %v737 = vsel %vm387, %v732, %v736
      %v738 = vshrl.u32 %v365, 16
      %v740 = vrot.slane %v738, 4
      %v741 = vor.u32 %v740, %v736
      %v742 = vrot.slane %v741, 4
      %v744 = vshll.u32 %v383, 16
      %v746 = vrot.slane %v744, 5
      %v747 = vsel %vm387, %v742, %v746
      %v749 = vshrl.u32 %v366, 16
      %v751 = vrot.slane %v749, 4
      %v752 = vshll.u32 %v366, 16
      %v754 = vrot.slane %v752, 5
      %v755 = vor.u32 %v751, %v754
      %v756 = vrot.slane %v755, 4
      %v758 = vshll.u32 %v367, 16
      %v760 = vrot.slane %v758, 5
      %v761 = vsel %vm387, %v756, %v760
      %v762 = vshrl.u32 %v367, 16
      %v764 = vrot.slane %v762, 4
      %v765 = vor.u32 %v764, %v760
      %v766 = vrot.slane %v765, 4
      %v768 = vshll.u32 %v384, 16
      %v770 = vrot.slane %v768, 5
      %v771 = vsel %vm387, %v766, %v770
      %s772 = scalar_lea.vmem %s325, 2
      %v773 = vld [vmem:[%s772] sm:$0x3]
      %v774 = vunpack.c.l.b16 %v401
      %v775 = vunpack.c.l.b16 %v411
      %v776 = vunpack.c.l.b16 %v425
      %v777 = vunpack.c.l.b16 %v435
      %v778 = vunpack.c.l.b16 %v449
      %v779 = vunpack.c.l.b16 %v459
      %v780 = vunpack.c.l.b16 %v473
      %v781 = vunpack.c.l.b16 %v483
      %v782 = vunpack.c.l.b16 %v497
      %v783 = vunpack.c.l.b16 %v507
      %v784 = vunpack.c.l.b16 %v521
      %v785 = vunpack.c.l.b16 %v531
      %v786 = vunpack.c.l.b16 %v545
      %v787 = vunpack.c.l.b16 %v555
      %v788 = vunpack.c.l.b16 %v569
      %v789 = vunpack.c.l.b16 %v579
      %v790 = vunpack.c.l.b16 %v593
      %v791 = vunpack.c.l.b16 %v603
      %v792 = vunpack.c.l.b16 %v617
      %v793 = vunpack.c.l.b16 %v627
      %v794 = vunpack.c.l.b16 %v641
      %v795 = vunpack.c.l.b16 %v651
      %v796 = vunpack.c.l.b16 %v665
      %v797 = vunpack.c.l.b16 %v675
      %v798 = vunpack.c.l.b16 %v689
      %v799 = vunpack.c.l.b16 %v699
      %v800 = vunpack.c.l.b16 %v713
      %v801 = vunpack.c.l.b16 %v723
      %v802 = vunpack.c.l.b16 %v737
      %v803 = vunpack.c.l.b16 %v747
      %v804 = vunpack.c.l.b16 %v761
      %v805 = vunpack.c.l.b16 %v771
      %v806 = vpack.c.b16 %v775, %v774
      %v807 = vpack.c.b16 %v777, %v776
      %v808 = vpack.c.b16 %v779, %v778
      %v809 = vpack.c.b16 %v781, %v780
      %v810 = vpack.c.b16 %v783, %v782
      %v811 = vpack.c.b16 %v785, %v784
      %v812 = vpack.c.b16 %v787, %v786
      %v813 = vpack.c.b16 %v789, %v788
      %v814 = vpack.c.b16 %v791, %v790
      %v815 = vpack.c.b16 %v793, %v792
      %v816 = vpack.c.b16 %v795, %v794
      %v817 = vpack.c.b16 %v797, %v796
      %v818 = vpack.c.b16 %v799, %v798
      %v819 = vpack.c.b16 %v801, %v800
      %v820 = vpack.c.b16 %v803, %v802
      %v821 = vpack.c.b16 %v805, %v804
      %vm822 = vcmask 31744
      %v824 = vsel %vm822, %v806, 0
      %v827 = vsel %vm822, %v807, 0
      %v830 = vsel %vm822, %v808, 0
      %v833 = vsel %vm822, %v809, 0
      %v836 = vsel %vm822, %v810, 0
      %v839 = vsel %vm822, %v811, 0
      %v842 = vsel %vm822, %v812, 0
      %v845 = vsel %vm822, %v813, 0
      %v848 = vsel %vm822, %v814, 0
      %v851 = vsel %vm822, %v815, 0
      %v854 = vsel %vm822, %v816, 0
      %v857 = vsel %vm822, %v817, 0
      %v860 = vsel %vm822, %v818, 0
      %v863 = vsel %vm822, %v819, 0
      %v866 = vsel %vm822, %v820, 0
      %v869 = vsel %vm822, %v821, 0
      %vm871 = vcmask 1041408
      %v873 = vsel %vm871, %v773, 0
      %875 = vmatpush.bf16.msra.mxu0 0
      %876 = vmatpush.bf16.msra.mxu0 0
      %877 = vmatpush.bf16.msra.mxu0 0
      %878 = vmatpush.bf16.msra.mxu0 0
      %879 = vmatpush.bf16.msra.mxu0 0
      %880 = vmatpush.bf16.msra.mxu0 0
      %881 = vmatpush.bf16.msra.mxu0 0
      %882 = vmatpush.bf16.msra.mxu0 %v873
      %883 = vmatmul.bf16.gmra.mxu0 %v824
      %v884 = vpop.f32.mrf.mxu0
      %v885 = vadd.f32 0.0, %v884
      %v886 = vpop.f32.mrf.mxu0
      %v887 = vadd.f32 0.0, %v886
      %888 = vmatmul.bf16.gmra.mxu0 %v827
      %v889 = vpop.f32.mrf.mxu0
      %v890 = vadd.f32 0.0, %v889
      %v891 = vpop.f32.mrf.mxu0
      %v892 = vadd.f32 0.0, %v891
      %893 = vmatmul.bf16.gmra.mxu0 %v830
      %v894 = vpop.f32.mrf.mxu0
      %v895 = vadd.f32 0.0, %v894
      %v896 = vpop.f32.mrf.mxu0
      %v897 = vadd.f32 0.0, %v896
      %898 = vmatmul.bf16.gmra.mxu0 %v833
      %v899 = vpop.f32.mrf.mxu0
      %v900 = vadd.f32 0.0, %v899
      %v901 = vpop.f32.mrf.mxu0
      %v902 = vadd.f32 0.0, %v901
      %903 = vmatmul.bf16.gmra.mxu0 %v836
      %v904 = vpop.f32.mrf.mxu0
      %v905 = vadd.f32 0.0, %v904
      %v906 = vpop.f32.mrf.mxu0
      %v907 = vadd.f32 0.0, %v906
      %908 = vmatmul.bf16.gmra.mxu0 %v839
      %v909 = vpop.f32.mrf.mxu0
      %v910 = vadd.f32 0.0, %v909
      %v911 = vpop.f32.mrf.mxu0
      %v912 = vadd.f32 0.0, %v911
      %913 = vmatmul.bf16.gmra.mxu0 %v842
      %v914 = vpop.f32.mrf.mxu0
      %v915 = vadd.f32 0.0, %v914
      %v916 = vpop.f32.mrf.mxu0
      %v917 = vadd.f32 0.0, %v916
      %918 = vmatmul.bf16.gmra.mxu0 %v845
      %v919 = vpop.f32.mrf.mxu0
      %v920 = vadd.f32 0.0, %v919
      %v921 = vpop.f32.mrf.mxu0
      %v922 = vadd.f32 0.0, %v921
      %923 = vmatmul.bf16.gmra.mxu0 %v848
      %v924 = vpop.f32.mrf.mxu0
      %v925 = vadd.f32 0.0, %v924
      %v926 = vpop.f32.mrf.mxu0
      %v927 = vadd.f32 0.0, %v926
      %928 = vmatmul.bf16.gmra.mxu0 %v851
      %v929 = vpop.f32.mrf.mxu0
      %v930 = vadd.f32 0.0, %v929
      %v931 = vpop.f32.mrf.mxu0
      %v932 = vadd.f32 0.0, %v931
      %933 = vmatmul.bf16.gmra.mxu0 %v854
      %v934 = vpop.f32.mrf.mxu0
      %v935 = vadd.f32 0.0, %v934
      %v936 = vpop.f32.mrf.mxu0
      %v937 = vadd.f32 0.0, %v936
      %938 = vmatmul.bf16.gmra.mxu0 %v857
      %v939 = vpop.f32.mrf.mxu0
      %v940 = vadd.f32 0.0, %v939
      %v941 = vpop.f32.mrf.mxu0
      %v942 = vadd.f32 0.0, %v941
      %943 = vmatmul.bf16.gmra.mxu0 %v860
      %v944 = vpop.f32.mrf.mxu0
      %v945 = vadd.f32 0.0, %v944
      %v946 = vpop.f32.mrf.mxu0
      %v947 = vadd.f32 0.0, %v946
      %948 = vmatmul.bf16.gmra.mxu0 %v863
      %v949 = vpop.f32.mrf.mxu0
      %v950 = vadd.f32 0.0, %v949
      %v951 = vpop.f32.mrf.mxu0
      %v952 = vadd.f32 0.0, %v951
      %953 = vmatmul.bf16.gmra.mxu0 %v866
      %v954 = vpop.f32.mrf.mxu0
      %v955 = vadd.f32 0.0, %v954
      %v956 = vpop.f32.mrf.mxu0
      %v957 = vadd.f32 0.0, %v956
      %958 = vmatmul.bf16.gmra.mxu0 %v869
      %v959 = vpop.f32.mrf.mxu0
      %v960 = vadd.f32 0.0, %v959
      %v961 = vpop.f32.mrf.mxu0
      %v962 = vadd.f32 0.0, %v961
      %963 = vdwg.mxu0
      %v996 = vunpack.c.l.b16 %v336
      %v997 = vunpack.c.l.b16 %v337
      %v998 = vunpack.c.l.b16 %v338
      %v999 = vunpack.c.l.b16 %v339
      %v1000 = vunpack.c.l.b16 %v340
      %v1001 = vunpack.c.l.b16 %v341
      %v1002 = vunpack.c.l.b16 %v342
      %v1003 = vunpack.c.l.b16 %v343
      %v1004 = vunpack.c.l.b16 %v344
      %v1005 = vunpack.c.l.b16 %v345
      %v1006 = vunpack.c.l.b16 %v346
      %v1007 = vunpack.c.l.b16 %v347
      %v1008 = vunpack.c.l.b16 %v348
      %v1009 = vunpack.c.l.b16 %v349
      %v1010 = vunpack.c.l.b16 %v350
      %v1011 = vunpack.c.l.b16 %v351
      %v1012 = vunpack.c.l.b16 %v352
      %v1013 = vunpack.c.l.b16 %v353
      %v1014 = vunpack.c.l.b16 %v354
      %v1015 = vunpack.c.l.b16 %v355
      %v1016 = vunpack.c.l.b16 %v356
      %v1017 = vunpack.c.l.b16 %v357
      %v1018 = vunpack.c.l.b16 %v358
      %v1019 = vunpack.c.l.b16 %v359
      %v1020 = vunpack.c.l.b16 %v360
      %v1021 = vunpack.c.l.b16 %v361
      %v1022 = vunpack.c.l.b16 %v362
      %v1023 = vunpack.c.l.b16 %v363
      %v1024 = vunpack.c.l.b16 %v364
      %v1025 = vunpack.c.l.b16 %v365
      %v1026 = vunpack.c.l.b16 %v366
      %v1027 = vunpack.c.l.b16 %v367
      %v1028 = vpack.c.b16 %v997, %v996
      %v1029 = vpack.c.b16 %v999, %v998
      %v1030 = vpack.c.b16 %v1001, %v1000
      %v1031 = vpack.c.b16 %v1003, %v1002
      %v1032 = vpack.c.b16 %v1005, %v1004
      %v1033 = vpack.c.b16 %v1007, %v1006
      %v1034 = vpack.c.b16 %v1009, %v1008
      %v1035 = vpack.c.b16 %v1011, %v1010
      %v1036 = vpack.c.b16 %v1013, %v1012
      %v1037 = vpack.c.b16 %v1015, %v1014
      %v1038 = vpack.c.b16 %v1017, %v1016
      %v1039 = vpack.c.b16 %v1019, %v1018
      %v1040 = vpack.c.b16 %v1021, %v1020
      %v1041 = vpack.c.b16 %v1023, %v1022
      %v1042 = vpack.c.b16 %v1025, %v1024
      %v1043 = vpack.c.b16 %v1027, %v1026
      %v1045 = vsel %vm822, %v1028, 0
      %v1048 = vsel %vm822, %v1029, 0
      %v1051 = vsel %vm822, %v1030, 0
      %v1054 = vsel %vm822, %v1031, 0
      %v1057 = vsel %vm822, %v1032, 0
      %v1060 = vsel %vm822, %v1033, 0
      %v1063 = vsel %vm822, %v1034, 0
      %v1066 = vsel %vm822, %v1035, 0
      %v1069 = vsel %vm822, %v1036, 0
      %v1072 = vsel %vm822, %v1037, 0
      %v1075 = vsel %vm822, %v1038, 0
      %v1078 = vsel %vm822, %v1039, 0
      %v1081 = vsel %vm822, %v1040, 0
      %v1084 = vsel %vm822, %v1041, 0
      %v1087 = vsel %vm822, %v1042, 0
      %v1090 = vsel %vm822, %v1043, 0
      %v1093 = vsel %vm871, %v368, 0
      %1095 = vmatpush.bf16.msra.mxu0 0
      %1096 = vmatpush.bf16.msra.mxu0 0
      %1097 = vmatpush.bf16.msra.mxu0 0
      %1098 = vmatpush.bf16.msra.mxu0 0
      %1099 = vmatpush.bf16.msra.mxu0 0
      %1100 = vmatpush.bf16.msra.mxu0 0
      %1101 = vmatpush.bf16.msra.mxu0 0
      %1102 = vmatpush.bf16.msra.mxu0 %v1093
      %1103 = vmatmul.bf16.gmra.mxu0 %v1045
      %v1104 = vpop.f32.mrf.mxu0
      %v1105 = vadd.f32 %v885, %v1104
      %v1106 = vpop.f32.mrf.mxu0
      %v1107 = vadd.f32 %v887, %v1106
      %1108 = vmatmul.bf16.gmra.mxu0 %v1048
      %v1109 = vpop.f32.mrf.mxu0
      %v1110 = vadd.f32 %v890, %v1109
      %v1111 = vpop.f32.mrf.mxu0
      %v1112 = vadd.f32 %v892, %v1111
      %1113 = vmatmul.bf16.gmra.mxu0 %v1051
      %v1114 = vpop.f32.mrf.mxu0
      %v1115 = vadd.f32 %v895, %v1114
      %v1116 = vpop.f32.mrf.mxu0
      %v1117 = vadd.f32 %v897, %v1116
      %1118 = vmatmul.bf16.gmra.mxu0 %v1054
      %v1119 = vpop.f32.mrf.mxu0
      %v1120 = vadd.f32 %v900, %v1119
      %v1121 = vpop.f32.mrf.mxu0
      %v1122 = vadd.f32 %v902, %v1121
      %1123 = vmatmul.bf16.gmra.mxu0 %v1057
      %v1124 = vpop.f32.mrf.mxu0
      %v1125 = vadd.f32 %v905, %v1124
      %v1126 = vpop.f32.mrf.mxu0
      %v1127 = vadd.f32 %v907, %v1126
      %1128 = vmatmul.bf16.gmra.mxu0 %v1060
      %v1129 = vpop.f32.mrf.mxu0
      %v1130 = vadd.f32 %v910, %v1129
      %v1131 = vpop.f32.mrf.mxu0
      %v1132 = vadd.f32 %v912, %v1131
      %1133 = vmatmul.bf16.gmra.mxu0 %v1063
      %v1134 = vpop.f32.mrf.mxu0
      %v1135 = vadd.f32 %v915, %v1134
      %v1136 = vpop.f32.mrf.mxu0
      %v1137 = vadd.f32 %v917, %v1136
      %1138 = vmatmul.bf16.gmra.mxu0 %v1066
      %v1139 = vpop.f32.mrf.mxu0
      %v1140 = vadd.f32 %v920, %v1139
      %v1141 = vpop.f32.mrf.mxu0
      %v1142 = vadd.f32 %v922, %v1141
      %1143 = vmatmul.bf16.gmra.mxu0 %v1069
      %v1144 = vpop.f32.mrf.mxu0
      %v1145 = vadd.f32 %v925, %v1144
      %v1146 = vpop.f32.mrf.mxu0
      %v1147 = vadd.f32 %v927, %v1146
      %1148 = vmatmul.bf16.gmra.mxu0 %v1072
      %v1149 = vpop.f32.mrf.mxu0
      %v1150 = vadd.f32 %v930, %v1149
      %v1151 = vpop.f32.mrf.mxu0
      %v1152 = vadd.f32 %v932, %v1151
      %1153 = vmatmul.bf16.gmra.mxu0 %v1075
      %v1154 = vpop.f32.mrf.mxu0
      %v1155 = vadd.f32 %v935, %v1154
      %v1156 = vpop.f32.mrf.mxu0
      %v1157 = vadd.f32 %v937, %v1156
      %1158 = vmatmul.bf16.gmra.mxu0 %v1078
      %v1159 = vpop.f32.mrf.mxu0
      %v1160 = vadd.f32 %v940, %v1159
      %v1161 = vpop.f32.mrf.mxu0
      %v1162 = vadd.f32 %v942, %v1161
      %1163 = vmatmul.bf16.gmra.mxu0 %v1081
      %v1164 = vpop.f32.mrf.mxu0
      %v1165 = vadd.f32 %v945, %v1164
      %v1166 = vpop.f32.mrf.mxu0
      %v1167 = vadd.f32 %v947, %v1166
      %1168 = vmatmul.bf16.gmra.mxu0 %v1084
      %v1169 = vpop.f32.mrf.mxu0
      %v1170 = vadd.f32 %v950, %v1169
      %v1171 = vpop.f32.mrf.mxu0
      %v1172 = vadd.f32 %v952, %v1171
      %1173 = vmatmul.bf16.gmra.mxu0 %v1087
      %v1174 = vpop.f32.mrf.mxu0
      %v1175 = vadd.f32 %v955, %v1174
      %v1176 = vpop.f32.mrf.mxu0
      %v1177 = vadd.f32 %v957, %v1176
      %1178 = vmatmul.bf16.gmra.mxu0 %v1090
      %v1179 = vpop.f32.mrf.mxu0
      %v1180 = vadd.f32 %v960, %v1179
      %v1181 = vpop.f32.mrf.mxu0
      %v1182 = vadd.f32 %v962, %v1181
      %1183 = vdwg.mxu0
      %v1184 = vld [vmem:[%s320] sm:$0xe]
      %v1185 = vld [vmem:[%s320 + $0xc] sm:$0xe]
      %v1186 = vld [vmem:[%s320 + $0x18] sm:$0xe]
      %v1187 = vld [vmem:[%s320 + $0x24] sm:$0xe]
      %v1188 = vld [vmem:[%s320 + $0x30] sm:$0xe]
      %v1189 = vld [vmem:[%s320 + $0x3c] sm:$0xe]
      %v1190 = vld [vmem:[%s320 + $0x48] sm:$0xe]
      %v1191 = vld [vmem:[%s320 + $0x54] sm:$0xe]
      %v1192 = vld [vmem:[%s320 + $0x60] sm:$0xe]
      %v1193 = vld [vmem:[%s320 + $0x6c] sm:$0xe]
      %v1194 = vld [vmem:[%s320 + $0x78] sm:$0xe]
      %v1195 = vld [vmem:[%s320 + $0x84] sm:$0xe]
      %v1196 = vld [vmem:[%s320 + $0x90] sm:$0xe]
      %v1197 = vld [vmem:[%s320 + $0x9c] sm:$0xe]
      %v1198 = vld [vmem:[%s320 + $0xa8] sm:$0xe]
      %v1199 = vld [vmem:[%s320 + $0xb4] sm:$0xe]
      %vm1232 = vcmask 1042432
      %vm1233 = vcmask 1046532
      %vm1234 = vmor %vm1232, %vm1233
      %v1235 = vrot.slane %v1184, 5
      %v1236 = vrot.slane %v1235, 4
      %v1237 = vrot.slane %v337, 5
      %v1238 = vsel %vm1234, %v1236, %v1237
      %v1239 = vrot.slane %v1237, 4
      %v1240 = vrot.slane %v369, 5
      %v1241 = vsel %vm1234, %v1239, %v1240
      %v1242 = vrot.slane %v1185, 5
      %v1243 = vrot.slane %v1242, 4
      %v1244 = vrot.slane %v339, 5
      %v1245 = vsel %vm1234, %v1243, %v1244
      %v1246 = vrot.slane %v1244, 4
      %v1247 = vrot.slane %v370, 5
      %v1248 = vsel %vm1234, %v1246, %v1247
      %v1249 = vrot.slane %v1186, 5
      %v1250 = vrot.slane %v1249, 4
      %v1251 = vrot.slane %v341, 5
      %v1252 = vsel %vm1234, %v1250, %v1251
      %v1253 = vrot.slane %v1251, 4
      %v1254 = vrot.slane %v371, 5
      %v1255 = vsel %vm1234, %v1253, %v1254
      %v1256 = vrot.slane %v1187, 5
      %v1257 = vrot.slane %v1256, 4
      %v1258 = vrot.slane %v343, 5
      %v1259 = vsel %vm1234, %v1257, %v1258
      %v1260 = vrot.slane %v1258, 4
      %v1261 = vrot.slane %v372, 5
      %v1262 = vsel %vm1234, %v1260, %v1261
      %v1263 = vrot.slane %v1188, 5
      %v1264 = vrot.slane %v1263, 4
      %v1265 = vrot.slane %v345, 5
      %v1266 = vsel %vm1234, %v1264, %v1265
      %v1267 = vrot.slane %v1265, 4
      %v1268 = vrot.slane %v373, 5
      %v1269 = vsel %vm1234, %v1267, %v1268
      %v1270 = vrot.slane %v1189, 5
      %v1271 = vrot.slane %v1270, 4
      %v1272 = vrot.slane %v347, 5
      %v1273 = vsel %vm1234, %v1271, %v1272
      %v1274 = vrot.slane %v1272, 4
      %v1275 = vrot.slane %v374, 5
      %v1276 = vsel %vm1234, %v1274, %v1275
      %v1277 = vrot.slane %v1190, 5
      %v1278 = vrot.slane %v1277, 4
      %v1279 = vrot.slane %v349, 5
      %v1280 = vsel %vm1234, %v1278, %v1279
      %v1281 = vrot.slane %v1279, 4
      %v1282 = vrot.slane %v375, 5
      %v1283 = vsel %vm1234, %v1281, %v1282
      %v1284 = vrot.slane %v1191, 5
      %v1285 = vrot.slane %v1284, 4
      %v1286 = vrot.slane %v351, 5
      %v1287 = vsel %vm1234, %v1285, %v1286
      %v1288 = vrot.slane %v1286, 4
      %v1289 = vrot.slane %v376, 5
      %v1290 = vsel %vm1234, %v1288, %v1289
      %v1291 = vrot.slane %v1192, 5
      %v1292 = vrot.slane %v1291, 4
      %v1293 = vrot.slane %v353, 5
      %v1294 = vsel %vm1234, %v1292, %v1293
      %v1295 = vrot.slane %v1293, 4
      %v1296 = vrot.slane %v377, 5
      %v1297 = vsel %vm1234, %v1295, %v1296
      %v1298 = vrot.slane %v1193, 5
      %v1299 = vrot.slane %v1298, 4
      %v1300 = vrot.slane %v355, 5
      %v1301 = vsel %vm1234, %v1299, %v1300
      %v1302 = vrot.slane %v1300, 4
      %v1303 = vrot.slane %v378, 5
      %v1304 = vsel %vm1234, %v1302, %v1303
      %v1305 = vrot.slane %v1194, 5
      %v1306 = vrot.slane %v1305, 4
      %v1307 = vrot.slane %v357, 5
      %v1308 = vsel %vm1234, %v1306, %v1307
      %v1309 = vrot.slane %v1307, 4
      %v1310 = vrot.slane %v379, 5
      %v1311 = vsel %vm1234, %v1309, %v1310
      %v1312 = vrot.slane %v1195, 5
      %v1313 = vrot.slane %v1312, 4
      %v1314 = vrot.slane %v359, 5
      %v1315 = vsel %vm1234, %v1313, %v1314
      %v1316 = vrot.slane %v1314, 4
      %v1317 = vrot.slane %v380, 5
      %v1318 = vsel %vm1234, %v1316, %v1317
      %v1319 = vrot.slane %v1196, 5
      %v1320 = vrot.slane %v1319, 4
      %v1321 = vrot.slane %v361, 5
      %v1322 = vsel %vm1234, %v1320, %v1321
      %v1323 = vrot.slane %v1321, 4
      %v1324 = vrot.slane %v381, 5
      %v1325 = vsel %vm1234, %v1323, %v1324
      %v1326 = vrot.slane %v1197, 5
      %v1327 = vrot.slane %v1326, 4
      %v1328 = vrot.slane %v363, 5
      %v1329 = vsel %vm1234, %v1327, %v1328
      %v1330 = vrot.slane %v1328, 4
      %v1331 = vrot.slane %v382, 5
      %v1332 = vsel %vm1234, %v1330, %v1331
      %v1333 = vrot.slane %v1198, 5
      %v1334 = vrot.slane %v1333, 4
      %v1335 = vrot.slane %v365, 5
      %v1336 = vsel %vm1234, %v1334, %v1335
      %v1337 = vrot.slane %v1335, 4
      %v1338 = vrot.slane %v383, 5
      %v1339 = vsel %vm1234, %v1337, %v1338
      %v1340 = vrot.slane %v1199, 5
      %v1341 = vrot.slane %v1340, 4
      %v1342 = vrot.slane %v367, 5
      %v1343 = vsel %vm1234, %v1341, %v1342
      %v1344 = vrot.slane %v1342, 4
      %v1345 = vrot.slane %v384, 5
      %v1346 = vsel %vm1234, %v1344, %v1345
      %s1347 = scalar_lea.vmem %s325, 4
      %v1348 = vld [vmem:[%s1347] sm:$0x3]
      %v1349 = vunpack.c.l.b16 %v1238
      %v1350 = vunpack.c.l.b16 %v1241
      %v1351 = vunpack.c.l.b16 %v1245
      %v1352 = vunpack.c.l.b16 %v1248
      %v1353 = vunpack.c.l.b16 %v1252
      %v1354 = vunpack.c.l.b16 %v1255
      %v1355 = vunpack.c.l.b16 %v1259
      %v1356 = vunpack.c.l.b16 %v1262
      %v1357 = vunpack.c.l.b16 %v1266
      %v1358 = vunpack.c.l.b16 %v1269
      %v1359 = vunpack.c.l.b16 %v1273
      %v1360 = vunpack.c.l.b16 %v1276
      %v1361 = vunpack.c.l.b16 %v1280
      %v1362 = vunpack.c.l.b16 %v1283
      %v1363 = vunpack.c.l.b16 %v1287
      %v1364 = vunpack.c.l.b16 %v1290
      %v1365 = vunpack.c.l.b16 %v1294
      %v1366 = vunpack.c.l.b16 %v1297
      %v1367 = vunpack.c.l.b16 %v1301
      %v1368 = vunpack.c.l.b16 %v1304
      %v1369 = vunpack.c.l.b16 %v1308
      %v1370 = vunpack.c.l.b16 %v1311
      %v1371 = vunpack.c.l.b16 %v1315
      %v1372 = vunpack.c.l.b16 %v1318
      %v1373 = vunpack.c.l.b16 %v1322
      %v1374 = vunpack.c.l.b16 %v1325
      %v1375 = vunpack.c.l.b16 %v1329
      %v1376 = vunpack.c.l.b16 %v1332
      %v1377 = vunpack.c.l.b16 %v1336
      %v1378 = vunpack.c.l.b16 %v1339
      %v1379 = vunpack.c.l.b16 %v1343
      %v1380 = vunpack.c.l.b16 %v1346
      %v1381 = vpack.c.b16 %v1350, %v1349
      %v1382 = vpack.c.b16 %v1352, %v1351
      %v1383 = vpack.c.b16 %v1354, %v1353
      %v1384 = vpack.c.b16 %v1356, %v1355
      %v1385 = vpack.c.b16 %v1358, %v1357
      %v1386 = vpack.c.b16 %v1360, %v1359
      %v1387 = vpack.c.b16 %v1362, %v1361
      %v1388 = vpack.c.b16 %v1364, %v1363
      %v1389 = vpack.c.b16 %v1366, %v1365
      %v1390 = vpack.c.b16 %v1368, %v1367
      %v1391 = vpack.c.b16 %v1370, %v1369
      %v1392 = vpack.c.b16 %v1372, %v1371
      %v1393 = vpack.c.b16 %v1374, %v1373
      %v1394 = vpack.c.b16 %v1376, %v1375
      %v1395 = vpack.c.b16 %v1378, %v1377
      %v1396 = vpack.c.b16 %v1380, %v1379
      %v1398 = vsel %vm822, %v1381, 0
      %v1401 = vsel %vm822, %v1382, 0
      %v1404 = vsel %vm822, %v1383, 0
      %v1407 = vsel %vm822, %v1384, 0
      %v1410 = vsel %vm822, %v1385, 0
      %v1413 = vsel %vm822, %v1386, 0
      %v1416 = vsel %vm822, %v1387, 0
      %v1419 = vsel %vm822, %v1388, 0
      %v1422 = vsel %vm822, %v1389, 0
      %v1425 = vsel %vm822, %v1390, 0
      %v1428 = vsel %vm822, %v1391, 0
      %v1431 = vsel %vm822, %v1392, 0
      %v1434 = vsel %vm822, %v1393, 0
      %v1437 = vsel %vm822, %v1394, 0
      %v1440 = vsel %vm822, %v1395, 0
      %v1443 = vsel %vm822, %v1396, 0
      %v1446 = vsel %vm871, %v1348, 0
      %1448 = vmatpush.bf16.msra.mxu0 0
      %1449 = vmatpush.bf16.msra.mxu0 0
      %1450 = vmatpush.bf16.msra.mxu0 0
      %1451 = vmatpush.bf16.msra.mxu0 0
      %1452 = vmatpush.bf16.msra.mxu0 0
      %1453 = vmatpush.bf16.msra.mxu0 0
      %1454 = vmatpush.bf16.msra.mxu0 0
      %1455 = vmatpush.bf16.msra.mxu0 %v1446
      %1456 = vmatmul.bf16.gmra.mxu0 %v1398
      %v1457 = vpop.f32.mrf.mxu0
      %v1458 = vadd.f32 0.0, %v1457
      %v1459 = vpop.f32.mrf.mxu0
      %v1460 = vadd.f32 0.0, %v1459
      %1461 = vmatmul.bf16.gmra.mxu0 %v1401
      %v1462 = vpop.f32.mrf.mxu0
      %v1463 = vadd.f32 0.0, %v1462
      %v1464 = vpop.f32.mrf.mxu0
      %v1465 = vadd.f32 0.0, %v1464
      %1466 = vmatmul.bf16.gmra.mxu0 %v1404
      %v1467 = vpop.f32.mrf.mxu0
      %v1468 = vadd.f32 0.0, %v1467
      %v1469 = vpop.f32.mrf.mxu0
      %v1470 = vadd.f32 0.0, %v1469
      %1471 = vmatmul.bf16.gmra.mxu0 %v1407
      %v1472 = vpop.f32.mrf.mxu0
      %v1473 = vadd.f32 0.0, %v1472
      %v1474 = vpop.f32.mrf.mxu0
      %v1475 = vadd.f32 0.0, %v1474
      %1476 = vmatmul.bf16.gmra.mxu0 %v1410
      %v1477 = vpop.f32.mrf.mxu0
      %v1478 = vadd.f32 0.0, %v1477
      %v1479 = vpop.f32.mrf.mxu0
      %v1480 = vadd.f32 0.0, %v1479
      %1481 = vmatmul.bf16.gmra.mxu0 %v1413
      %v1482 = vpop.f32.mrf.mxu0
      %v1483 = vadd.f32 0.0, %v1482
      %v1484 = vpop.f32.mrf.mxu0
      %v1485 = vadd.f32 0.0, %v1484
      %1486 = vmatmul.bf16.gmra.mxu0 %v1416
      %v1487 = vpop.f32.mrf.mxu0
      %v1488 = vadd.f32 0.0, %v1487
      %v1489 = vpop.f32.mrf.mxu0
      %v1490 = vadd.f32 0.0, %v1489
      %1491 = vmatmul.bf16.gmra.mxu0 %v1419
      %v1492 = vpop.f32.mrf.mxu0
      %v1493 = vadd.f32 0.0, %v1492
      %v1494 = vpop.f32.mrf.mxu0
      %v1495 = vadd.f32 0.0, %v1494
      %1496 = vmatmul.bf16.gmra.mxu0 %v1422
      %v1497 = vpop.f32.mrf.mxu0
      %v1498 = vadd.f32 0.0, %v1497
      %v1499 = vpop.f32.mrf.mxu0
      %v1500 = vadd.f32 0.0, %v1499
      %1501 = vmatmul.bf16.gmra.mxu0 %v1425
      %v1502 = vpop.f32.mrf.mxu0
      %v1503 = vadd.f32 0.0, %v1502
      %v1504 = vpop.f32.mrf.mxu0
      %v1505 = vadd.f32 0.0, %v1504
      %1506 = vmatmul.bf16.gmra.mxu0 %v1428
      %v1507 = vpop.f32.mrf.mxu0
      %v1508 = vadd.f32 0.0, %v1507
      %v1509 = vpop.f32.mrf.mxu0
      %v1510 = vadd.f32 0.0, %v1509
      %1511 = vmatmul.bf16.gmra.mxu0 %v1431
      %v1512 = vpop.f32.mrf.mxu0
      %v1513 = vadd.f32 0.0, %v1512
      %v1514 = vpop.f32.mrf.mxu0
      %v1515 = vadd.f32 0.0, %v1514
      %1516 = vmatmul.bf16.gmra.mxu0 %v1434
      %v1517 = vpop.f32.mrf.mxu0
      %v1518 = vadd.f32 0.0, %v1517
      %v1519 = vpop.f32.mrf.mxu0
      %v1520 = vadd.f32 0.0, %v1519
      %1521 = vmatmul.bf16.gmra.mxu0 %v1437
      %v1522 = vpop.f32.mrf.mxu0
      %v1523 = vadd.f32 0.0, %v1522
      %v1524 = vpop.f32.mrf.mxu0
      %v1525 = vadd.f32 0.0, %v1524
      %1526 = vmatmul.bf16.gmra.mxu0 %v1440
      %v1527 = vpop.f32.mrf.mxu0
      %v1528 = vadd.f32 0.0, %v1527
      %v1529 = vpop.f32.mrf.mxu0
      %v1530 = vadd.f32 0.0, %v1529
      %1531 = vmatmul.bf16.gmra.mxu0 %v1443
      %v1532 = vpop.f32.mrf.mxu0
      %v1533 = vadd.f32 0.0, %v1532
      %v1534 = vpop.f32.mrf.mxu0
      %v1535 = vadd.f32 0.0, %v1534
      %1536 = vdwg.mxu0
      %v1537 = vadd.f32 %v1105, %v1458
      %v1538 = vadd.f32 %v1107, %v1460
      %v1539 = vadd.f32 %v1110, %v1463
      %v1540 = vadd.f32 %v1112, %v1465
      %v1541 = vadd.f32 %v1115, %v1468
      %v1542 = vadd.f32 %v1117, %v1470
      %v1543 = vadd.f32 %v1120, %v1473
      %v1544 = vadd.f32 %v1122, %v1475
      %v1545 = vadd.f32 %v1125, %v1478
      %v1546 = vadd.f32 %v1127, %v1480
      %v1547 = vadd.f32 %v1130, %v1483
      %v1548 = vadd.f32 %v1132, %v1485
      %v1549 = vadd.f32 %v1135, %v1488
      %v1550 = vadd.f32 %v1137, %v1490
      %v1551 = vadd.f32 %v1140, %v1493
      %v1552 = vadd.f32 %v1142, %v1495
      %v1553 = vadd.f32 %v1145, %v1498
      %v1554 = vadd.f32 %v1147, %v1500
      %v1555 = vadd.f32 %v1150, %v1503
      %v1556 = vadd.f32 %v1152, %v1505
      %v1557 = vadd.f32 %v1155, %v1508
      %v1558 = vadd.f32 %v1157, %v1510
      %v1559 = vadd.f32 %v1160, %v1513
      %v1560 = vadd.f32 %v1162, %v1515
      %v1561 = vadd.f32 %v1165, %v1518
      %v1562 = vadd.f32 %v1167, %v1520
      %v1563 = vadd.f32 %v1170, %v1523
      %v1564 = vadd.f32 %v1172, %v1525
      %v1565 = vadd.f32 %v1175, %v1528
      %v1566 = vadd.f32 %v1177, %v1530
      %v1567 = vadd.f32 %v1180, %v1533
      %v1568 = vadd.f32 %v1182, %v1535
      %s1569 = scalar_lea.vmem %s320, 12
      %v1570 = vld [vmem:[%s1569] sm:$0xf]
      %v1571 = vld [vmem:[%s1569 + $0x4] sm:$0xf]
      %v1572 = vld [vmem:[%s1569 + $0xc] sm:$0xf]
      %v1573 = vld [vmem:[%s1569 + $0x10] sm:$0xf]
      %v1574 = vld [vmem:[%s1569 + $0x18] sm:$0xf]
      %v1575 = vld [vmem:[%s1569 + $0x1c] sm:$0xf]
      %v1576 = vld [vmem:[%s1569 + $0x24] sm:$0xf]
      %v1577 = vld [vmem:[%s1569 + $0x28] sm:$0xf]
      %v1578 = vld [vmem:[%s1569 + $0x30] sm:$0xf]
      %v1579 = vld [vmem:[%s1569 + $0x34] sm:$0xf]
      %v1580 = vld [vmem:[%s1569 + $0x3c] sm:$0xf]
      %v1581 = vld [vmem:[%s1569 + $0x40] sm:$0xf]
      %v1582 = vld [vmem:[%s1569 + $0x48] sm:$0xf]
      %v1583 = vld [vmem:[%s1569 + $0x4c] sm:$0xf]
      %v1584 = vld [vmem:[%s1569 + $0x54] sm:$0xf]
      %v1585 = vld [vmem:[%s1569 + $0x58] sm:$0xf]
      %v1586 = vld [vmem:[%s1569 + $0x60] sm:$0xf]
      %v1587 = vld [vmem:[%s1569 + $0x64] sm:$0xf]
      %v1588 = vld [vmem:[%s1569 + $0x6c] sm:$0xf]
      %v1589 = vld [vmem:[%s1569 + $0x70] sm:$0xf]
      %v1590 = vld [vmem:[%s1569 + $0x78] sm:$0xf]
      %v1591 = vld [vmem:[%s1569 + $0x7c] sm:$0xf]
      %v1592 = vld [vmem:[%s1569 + $0x84] sm:$0xf]
      %v1593 = vld [vmem:[%s1569 + $0x88] sm:$0xf]
      %v1594 = vld [vmem:[%s1569 + $0x90] sm:$0xf]
      %v1595 = vld [vmem:[%s1569 + $0x94] sm:$0xf]
      %v1596 = vld [vmem:[%s1569 + $0x9c] sm:$0xf]
      %v1597 = vld [vmem:[%s1569 + $0xa0] sm:$0xf]
      %v1598 = vld [vmem:[%s1569 + $0xa8] sm:$0xf]
      %v1599 = vld [vmem:[%s1569 + $0xac] sm:$0xf]
      %v1600 = vld [vmem:[%s1569 + $0xb4] sm:$0xf]
      %v1601 = vld [vmem:[%s1569 + $0xb8] sm:$0xf]
      %s1602 = scalar_lea.vmem %s325, 6
      %v1603 = vld [vmem:[%s1602] sm:$0x3]
      %v1636 = vunpack.c.l.b16 %v1570
      %v1637 = vunpack.c.l.b16 %v1571
      %v1638 = vunpack.c.l.b16 %v1572
      %v1639 = vunpack.c.l.b16 %v1573
      %v1640 = vunpack.c.l.b16 %v1574
      %v1641 = vunpack.c.l.b16 %v1575
      %v1642 = vunpack.c.l.b16 %v1576
      %v1643 = vunpack.c.l.b16 %v1577
      %v1644 = vunpack.c.l.b16 %v1578
      %v1645 = vunpack.c.l.b16 %v1579
      %v1646 = vunpack.c.l.b16 %v1580
      %v1647 = vunpack.c.l.b16 %v1581
      %v1648 = vunpack.c.l.b16 %v1582
      %v1649 = vunpack.c.l.b16 %v1583
      %v1650 = vunpack.c.l.b16 %v1584
      %v1651 = vunpack.c.l.b16 %v1585
      %v1652 = vunpack.c.l.b16 %v1586
      %v1653 = vunpack.c.l.b16 %v1587
      %v1654 = vunpack.c.l.b16 %v1588
      %v1655 = vunpack.c.l.b16 %v1589
      %v1656 = vunpack.c.l.b16 %v1590
      %v1657 = vunpack.c.l.b16 %v1591
      %v1658 = vunpack.c.l.b16 %v1592
      %v1659 = vunpack.c.l.b16 %v1593
      %v1660 = vunpack.c.l.b16 %v1594
      %v1661 = vunpack.c.l.b16 %v1595
      %v1662 = vunpack.c.l.b16 %v1596
      %v1663 = vunpack.c.l.b16 %v1597
      %v1664 = vunpack.c.l.b16 %v1598
      %v1665 = vunpack.c.l.b16 %v1599
      %v1666 = vunpack.c.l.b16 %v1600
      %v1667 = vunpack.c.l.b16 %v1601
      %v1668 = vpack.c.b16 %v1637, %v1636
      %v1669 = vpack.c.b16 %v1639, %v1638
      %v1670 = vpack.c.b16 %v1641, %v1640
      %v1671 = vpack.c.b16 %v1643, %v1642
      %v1672 = vpack.c.b16 %v1645, %v1644
      %v1673 = vpack.c.b16 %v1647, %v1646
      %v1674 = vpack.c.b16 %v1649, %v1648
      %v1675 = vpack.c.b16 %v1651, %v1650
      %v1676 = vpack.c.b16 %v1653, %v1652
      %v1677 = vpack.c.b16 %v1655, %v1654
      %v1678 = vpack.c.b16 %v1657, %v1656
      %v1679 = vpack.c.b16 %v1659, %v1658
      %v1680 = vpack.c.b16 %v1661, %v1660
      %v1681 = vpack.c.b16 %v1663, %v1662
      %v1682 = vpack.c.b16 %v1665, %v1664
      %v1683 = vpack.c.b16 %v1667, %v1666
      %v1685 = vsel %vm822, %v1668, 0
      %v1688 = vsel %vm822, %v1669, 0
      %v1691 = vsel %vm822, %v1670, 0
      %v1694 = vsel %vm822, %v1671, 0
      %v1697 = vsel %vm822, %v1672, 0
      %v1700 = vsel %vm822, %v1673, 0
      %v1703 = vsel %vm822, %v1674, 0
      %v1706 = vsel %vm822, %v1675, 0
      %v1709 = vsel %vm822, %v1676, 0
      %v1712 = vsel %vm822, %v1677, 0
      %v1715 = vsel %vm822, %v1678, 0
      %v1718 = vsel %vm822, %v1679, 0
      %v1721 = vsel %vm822, %v1680, 0
      %v1724 = vsel %vm822, %v1681, 0
      %v1727 = vsel %vm822, %v1682, 0
      %v1730 = vsel %vm822, %v1683, 0
      %v1733 = vsel %vm871, %v1603, 0
      %1735 = vmatpush.bf16.msra.mxu0 0
      %1736 = vmatpush.bf16.msra.mxu0 0
      %1737 = vmatpush.bf16.msra.mxu0 0
      %1738 = vmatpush.bf16.msra.mxu0 0
      %1739 = vmatpush.bf16.msra.mxu0 0
      %1740 = vmatpush.bf16.msra.mxu0 0
      %1741 = vmatpush.bf16.msra.mxu0 0
      %1742 = vmatpush.bf16.msra.mxu0 %v1733
      %1743 = vmatmul.bf16.gmra.mxu0 %v1685
      %v1744 = vpop.f32.mrf.mxu0
      %v1745 = vadd.f32 0.0, %v1744
      %v1746 = vpop.f32.mrf.mxu0
      %v1747 = vadd.f32 0.0, %v1746
      %1748 = vmatmul.bf16.gmra.mxu0 %v1688
      %v1749 = vpop.f32.mrf.mxu0
      %v1750 = vadd.f32 0.0, %v1749
      %v1751 = vpop.f32.mrf.mxu0
      %v1752 = vadd.f32 0.0, %v1751
      %1753 = vmatmul.bf16.gmra.mxu0 %v1691
      %v1754 = vpop.f32.mrf.mxu0
      %v1755 = vadd.f32 0.0, %v1754
      %v1756 = vpop.f32.mrf.mxu0
      %v1757 = vadd.f32 0.0, %v1756
      %1758 = vmatmul.bf16.gmra.mxu0 %v1694
      %v1759 = vpop.f32.mrf.mxu0
      %v1760 = vadd.f32 0.0, %v1759
      %v1761 = vpop.f32.mrf.mxu0
      %v1762 = vadd.f32 0.0, %v1761
      %1763 = vmatmul.bf16.gmra.mxu0 %v1697
      %v1764 = vpop.f32.mrf.mxu0
      %v1765 = vadd.f32 0.0, %v1764
      %v1766 = vpop.f32.mrf.mxu0
      %v1767 = vadd.f32 0.0, %v1766
      %1768 = vmatmul.bf16.gmra.mxu0 %v1700
      %v1769 = vpop.f32.mrf.mxu0
      %v1770 = vadd.f32 0.0, %v1769
      %v1771 = vpop.f32.mrf.mxu0
      %v1772 = vadd.f32 0.0, %v1771
      %1773 = vmatmul.bf16.gmra.mxu0 %v1703
      %v1774 = vpop.f32.mrf.mxu0
      %v1775 = vadd.f32 0.0, %v1774
      %v1776 = vpop.f32.mrf.mxu0
      %v1777 = vadd.f32 0.0, %v1776
      %1778 = vmatmul.bf16.gmra.mxu0 %v1706
      %v1779 = vpop.f32.mrf.mxu0
      %v1780 = vadd.f32 0.0, %v1779
      %v1781 = vpop.f32.mrf.mxu0
      %v1782 = vadd.f32 0.0, %v1781
      %1783 = vmatmul.bf16.gmra.mxu0 %v1709
      %v1784 = vpop.f32.mrf.mxu0
      %v1785 = vadd.f32 0.0, %v1784
      %v1786 = vpop.f32.mrf.mxu0
      %v1787 = vadd.f32 0.0, %v1786
      %1788 = vmatmul.bf16.gmra.mxu0 %v1712
      %v1789 = vpop.f32.mrf.mxu0
      %v1790 = vadd.f32 0.0, %v1789
      %v1791 = vpop.f32.mrf.mxu0
      %v1792 = vadd.f32 0.0, %v1791
      %1793 = vmatmul.bf16.gmra.mxu0 %v1715
      %v1794 = vpop.f32.mrf.mxu0
      %v1795 = vadd.f32 0.0, %v1794
      %v1796 = vpop.f32.mrf.mxu0
      %v1797 = vadd.f32 0.0, %v1796
      %1798 = vmatmul.bf16.gmra.mxu0 %v1718
      %v1799 = vpop.f32.mrf.mxu0
      %v1800 = vadd.f32 0.0, %v1799
      %v1801 = vpop.f32.mrf.mxu0
      %v1802 = vadd.f32 0.0, %v1801
      %1803 = vmatmul.bf16.gmra.mxu0 %v1721
      %v1804 = vpop.f32.mrf.mxu0
      %v1805 = vadd.f32 0.0, %v1804
      %v1806 = vpop.f32.mrf.mxu0
      %v1807 = vadd.f32 0.0, %v1806
      %1808 = vmatmul.bf16.gmra.mxu0 %v1724
      %v1809 = vpop.f32.mrf.mxu0
      %v1810 = vadd.f32 0.0, %v1809
      %v1811 = vpop.f32.mrf.mxu0
      %v1812 = vadd.f32 0.0, %v1811
      %1813 = vmatmul.bf16.gmra.mxu0 %v1727
      %v1814 = vpop.f32.mrf.mxu0
      %v1815 = vadd.f32 0.0, %v1814
      %v1816 = vpop.f32.mrf.mxu0
      %v1817 = vadd.f32 0.0, %v1816
      %1818 = vmatmul.bf16.gmra.mxu0 %v1730
      %v1819 = vpop.f32.mrf.mxu0
      %v1820 = vadd.f32 0.0, %v1819
      %v1821 = vpop.f32.mrf.mxu0
      %v1822 = vadd.f32 0.0, %v1821
      %1823 = vdwg.mxu0
      %v1824 = vadd.f32 %v1537, %v1745
      %v1825 = vadd.f32 %v1538, %v1747
      %v1826 = vadd.f32 %v1539, %v1750
      %v1827 = vadd.f32 %v1540, %v1752
      %v1828 = vadd.f32 %v1541, %v1755
      %v1829 = vadd.f32 %v1542, %v1757
      %v1830 = vadd.f32 %v1543, %v1760
      %v1831 = vadd.f32 %v1544, %v1762
      %v1832 = vadd.f32 %v1545, %v1765
      %v1833 = vadd.f32 %v1546, %v1767
      %v1834 = vadd.f32 %v1547, %v1770
      %v1835 = vadd.f32 %v1548, %v1772
      %v1836 = vadd.f32 %v1549, %v1775
      %v1837 = vadd.f32 %v1550, %v1777
      %v1838 = vadd.f32 %v1551, %v1780
      %v1839 = vadd.f32 %v1552, %v1782
      %v1840 = vadd.f32 %v1553, %v1785
      %v1841 = vadd.f32 %v1554, %v1787
      %v1842 = vadd.f32 %v1555, %v1790
      %v1843 = vadd.f32 %v1556, %v1792
      %v1844 = vadd.f32 %v1557, %v1795
      %v1845 = vadd.f32 %v1558, %v1797
      %v1846 = vadd.f32 %v1559, %v1800
      %v1847 = vadd.f32 %v1560, %v1802
      %v1848 = vadd.f32 %v1561, %v1805
      %v1849 = vadd.f32 %v1562, %v1807
      %v1850 = vadd.f32 %v1563, %v1810
      %v1851 = vadd.f32 %v1564, %v1812
      %v1852 = vadd.f32 %v1565, %v1815
      %v1853 = vadd.f32 %v1566, %v1817
      %v1854 = vadd.f32 %v1567, %v1820
      %v1855 = vadd.f32 %v1568, %v1822
      %v1856 = vld [vmem:[%s1569] sm:$0xf]
      %v1857 = vld [vmem:[%s1569 + $0x4] sm:$0xf]
      %v1858 = vld [vmem:[%s1569 + $0x8] sm:$0x1]
      %v1859 = vld [vmem:[%s1569 + $0xc] sm:$0xf]
      %v1860 = vld [vmem:[%s1569 + $0x10] sm:$0xf]
      %v1861 = vld [vmem:[%s1569 + $0x14] sm:$0x1]
      %v1862 = vld [vmem:[%s1569 + $0x18] sm:$0xf]
      %v1863 = vld [vmem:[%s1569 + $0x1c] sm:$0xf]
      %v1864 = vld [vmem:[%s1569 + $0x20] sm:$0x1]
      %v1865 = vld [vmem:[%s1569 + $0x24] sm:$0xf]
      %v1866 = vld [vmem:[%s1569 + $0x28] sm:$0xf]
      %v1867 = vld [vmem:[%s1569 + $0x2c] sm:$0x1]
      %v1868 = vld [vmem:[%s1569 + $0x30] sm:$0xf]
      %v1869 = vld [vmem:[%s1569 + $0x34] sm:$0xf]
      %v1870 = vld [vmem:[%s1569 + $0x38] sm:$0x1]
      %v1871 = vld [vmem:[%s1569 + $0x3c] sm:$0xf]
      %v1872 = vld [vmem:[%s1569 + $0x40] sm:$0xf]
      %v1873 = vld [vmem:[%s1569 + $0x44] sm:$0x1]
      %v1874 = vld [vmem:[%s1569 + $0x48] sm:$0xf]
      %v1875 = vld [vmem:[%s1569 + $0x4c] sm:$0xf]
      %v1876 = vld [vmem:[%s1569 + $0x50] sm:$0x1]
      %v1877 = vld [vmem:[%s1569 + $0x54] sm:$0xf]
      %v1878 = vld [vmem:[%s1569 + $0x58] sm:$0xf]
      %v1879 = vld [vmem:[%s1569 + $0x5c] sm:$0x1]
      %v1880 = vld [vmem:[%s1569 + $0x60] sm:$0xf]
      %v1881 = vld [vmem:[%s1569 + $0x64] sm:$0xf]
      %v1882 = vld [vmem:[%s1569 + $0x68] sm:$0x1]
      %v1883 = vld [vmem:[%s1569 + $0x6c] sm:$0xf]
      %v1884 = vld [vmem:[%s1569 + $0x70] sm:$0xf]
      %v1885 = vld [vmem:[%s1569 + $0x74] sm:$0x1]
      %v1886 = vld [vmem:[%s1569 + $0x78] sm:$0xf]
      %v1887 = vld [vmem:[%s1569 + $0x7c] sm:$0xf]
      %v1888 = vld [vmem:[%s1569 + $0x80] sm:$0x1]
      %v1889 = vld [vmem:[%s1569 + $0x84] sm:$0xf]
      %v1890 = vld [vmem:[%s1569 + $0x88] sm:$0xf]
      %v1891 = vld [vmem:[%s1569 + $0x8c] sm:$0x1]
      %v1892 = vld [vmem:[%s1569 + $0x90] sm:$0xf]
      %v1893 = vld [vmem:[%s1569 + $0x94] sm:$0xf]
      %v1894 = vld [vmem:[%s1569 + $0x98] sm:$0x1]
      %v1895 = vld [vmem:[%s1569 + $0x9c] sm:$0xf]
      %v1896 = vld [vmem:[%s1569 + $0xa0] sm:$0xf]
      %v1897 = vld [vmem:[%s1569 + $0xa4] sm:$0x1]
      %v1898 = vld [vmem:[%s1569 + $0xa8] sm:$0xf]
      %v1899 = vld [vmem:[%s1569 + $0xac] sm:$0xf]
      %v1900 = vld [vmem:[%s1569 + $0xb0] sm:$0x1]
      %v1901 = vld [vmem:[%s1569 + $0xb4] sm:$0xf]
      %v1902 = vld [vmem:[%s1569 + $0xb8] sm:$0xf]
      %v1903 = vld [vmem:[%s1569 + $0xbc] sm:$0x1]
      %v1905 = vshrl.u32 %v1856, 16
      %v1907 = vrot.slane %v1905, 4
      %v1908 = vshll.u32 %v1856, 16
      %v1910 = vrot.slane %v1908, 5
      %v1911 = vor.u32 %v1907, %v1910
      %v1912 = vrot.slane %v1911, 4
      %v1914 = vshll.u32 %v1857, 16
      %v1916 = vrot.slane %v1914, 5
      %v1917 = vsel %vm387, %v1912, %v1916
      %v1918 = vshrl.u32 %v1857, 16
      %v1920 = vrot.slane %v1918, 4
      %v1921 = vor.u32 %v1920, %v1916
      %v1922 = vrot.slane %v1921, 4
      %v1924 = vshll.u32 %v1858, 16
      %v1926 = vrot.slane %v1924, 5
      %v1927 = vsel %vm387, %v1922, %v1926
      %v1929 = vshrl.u32 %v1859, 16
      %v1931 = vrot.slane %v1929, 4
      %v1932 = vshll.u32 %v1859, 16
      %v1934 = vrot.slane %v1932, 5
      %v1935 = vor.u32 %v1931, %v1934
      %v1936 = vrot.slane %v1935, 4
      %v1938 = vshll.u32 %v1860, 16
      %v1940 = vrot.slane %v1938, 5
      %v1941 = vsel %vm387, %v1936, %v1940
      %v1942 = vshrl.u32 %v1860, 16
      %v1944 = vrot.slane %v1942, 4
      %v1945 = vor.u32 %v1944, %v1940
      %v1946 = vrot.slane %v1945, 4
      %v1948 = vshll.u32 %v1861, 16
      %v1950 = vrot.slane %v1948, 5
      %v1951 = vsel %vm387, %v1946, %v1950
      %v1953 = vshrl.u32 %v1862, 16
      %v1955 = vrot.slane %v1953, 4
      %v1956 = vshll.u32 %v1862, 16
      %v1958 = vrot.slane %v1956, 5
      %v1959 = vor.u32 %v1955, %v1958
      %v1960 = vrot.slane %v1959, 4
      %v1962 = vshll.u32 %v1863, 16
      %v1964 = vrot.slane %v1962, 5
      %v1965 = vsel %vm387, %v1960, %v1964
      %v1966 = vshrl.u32 %v1863, 16
      %v1968 = vrot.slane %v1966, 4
      %v1969 = vor.u32 %v1968, %v1964
      %v1970 = vrot.slane %v1969, 4
      %v1972 = vshll.u32 %v1864, 16
      %v1974 = vrot.slane %v1972, 5
      %v1975 = vsel %vm387, %v1970, %v1974
      %v1977 = vshrl.u32 %v1865, 16
      %v1979 = vrot.slane %v1977, 4
      %v1980 = vshll.u32 %v1865, 16
      %v1982 = vrot.slane %v1980, 5
      %v1983 = vor.u32 %v1979, %v1982
      %v1984 = vrot.slane %v1983, 4
      %v1986 = vshll.u32 %v1866, 16
      %v1988 = vrot.slane %v1986, 5
      %v1989 = vsel %vm387, %v1984, %v1988
      %v1990 = vshrl.u32 %v1866, 16
      %v1992 = vrot.slane %v1990, 4
      %v1993 = vor.u32 %v1992, %v1988
      %v1994 = vrot.slane %v1993, 4
      %v1996 = vshll.u32 %v1867, 16
      %v1998 = vrot.slane %v1996, 5
      %v1999 = vsel %vm387, %v1994, %v1998
      %v2001 = vshrl.u32 %v1868, 16
      %v2003 = vrot.slane %v2001, 4
      %v2004 = vshll.u32 %v1868, 16
      %v2006 = vrot.slane %v2004, 5
      %v2007 = vor.u32 %v2003, %v2006
      %v2008 = vrot.slane %v2007, 4
      %v2010 = vshll.u32 %v1869, 16
      %v2012 = vrot.slane %v2010, 5
      %v2013 = vsel %vm387, %v2008, %v2012
      %v2014 = vshrl.u32 %v1869, 16
      %v2016 = vrot.slane %v2014, 4
      %v2017 = vor.u32 %v2016, %v2012
      %v2018 = vrot.slane %v2017, 4
      %v2020 = vshll.u32 %v1870, 16
      %v2022 = vrot.slane %v2020, 5
      %v2023 = vsel %vm387, %v2018, %v2022
      %v2025 = vshrl.u32 %v1871, 16
      %v2027 = vrot.slane %v2025, 4
      %v2028 = vshll.u32 %v1871, 16
      %v2030 = vrot.slane %v2028, 5
      %v2031 = vor.u32 %v2027, %v2030
      %v2032 = vrot.slane %v2031, 4
      %v2034 = vshll.u32 %v1872, 16
      %v2036 = vrot.slane %v2034, 5
      %v2037 = vsel %vm387, %v2032, %v2036
      %v2038 = vshrl.u32 %v1872, 16
      %v2040 = vrot.slane %v2038, 4
      %v2041 = vor.u32 %v2040, %v2036
      %v2042 = vrot.slane %v2041, 4
      %v2044 = vshll.u32 %v1873, 16
      %v2046 = vrot.slane %v2044, 5
      %v2047 = vsel %vm387, %v2042, %v2046
      %v2049 = vshrl.u32 %v1874, 16
      %v2051 = vrot.slane %v2049, 4
      %v2052 = vshll.u32 %v1874, 16
      %v2054 = vrot.slane %v2052, 5
      %v2055 = vor.u32 %v2051, %v2054
      %v2056 = vrot.slane %v2055, 4
      %v2058 = vshll.u32 %v1875, 16
      %v2060 = vrot.slane %v2058, 5
      %v2061 = vsel %vm387, %v2056, %v2060
      %v2062 = vshrl.u32 %v1875, 16
      %v2064 = vrot.slane %v2062, 4
      %v2065 = vor.u32 %v2064, %v2060
      %v2066 = vrot.slane %v2065, 4
      %v2068 = vshll.u32 %v1876, 16
      %v2070 = vrot.slane %v2068, 5
      %v2071 = vsel %vm387, %v2066, %v2070
      %v2073 = vshrl.u32 %v1877, 16
      %v2075 = vrot.slane %v2073, 4
      %v2076 = vshll.u32 %v1877, 16
      %v2078 = vrot.slane %v2076, 5
      %v2079 = vor.u32 %v2075, %v2078
      %v2080 = vrot.slane %v2079, 4
      %v2082 = vshll.u32 %v1878, 16
      %v2084 = vrot.slane %v2082, 5
      %v2085 = vsel %vm387, %v2080, %v2084
      %v2086 = vshrl.u32 %v1878, 16
      %v2088 = vrot.slane %v2086, 4
      %v2089 = vor.u32 %v2088, %v2084
      %v2090 = vrot.slane %v2089, 4
      %v2092 = vshll.u32 %v1879, 16
      %v2094 = vrot.slane %v2092, 5
      %v2095 = vsel %vm387, %v2090, %v2094
      %v2097 = vshrl.u32 %v1880, 16
      %v2099 = vrot.slane %v2097, 4
      %v2100 = vshll.u32 %v1880, 16
      %v2102 = vrot.slane %v2100, 5
      %v2103 = vor.u32 %v2099, %v2102
      %v2104 = vrot.slane %v2103, 4
      %v2106 = vshll.u32 %v1881, 16
      %v2108 = vrot.slane %v2106, 5
      %v2109 = vsel %vm387, %v2104, %v2108
      %v2110 = vshrl.u32 %v1881, 16
      %v2112 = vrot.slane %v2110, 4
      %v2113 = vor.u32 %v2112, %v2108
      %v2114 = vrot.slane %v2113, 4
      %v2116 = vshll.u32 %v1882, 16
      %v2118 = vrot.slane %v2116, 5
      %v2119 = vsel %vm387, %v2114, %v2118
      %v2121 = vshrl.u32 %v1883, 16
      %v2123 = vrot.slane %v2121, 4
      %v2124 = vshll.u32 %v1883, 16
      %v2126 = vrot.slane %v2124, 5
      %v2127 = vor.u32 %v2123, %v2126
      %v2128 = vrot.slane %v2127, 4
      %v2130 = vshll.u32 %v1884, 16
      %v2132 = vrot.slane %v2130, 5
      %v2133 = vsel %vm387, %v2128, %v2132
      %v2134 = vshrl.u32 %v1884, 16
      %v2136 = vrot.slane %v2134, 4
      %v2137 = vor.u32 %v2136, %v2132
      %v2138 = vrot.slane %v2137, 4
      %v2140 = vshll.u32 %v1885, 16
      %v2142 = vrot.slane %v2140, 5
      %v2143 = vsel %vm387, %v2138, %v2142
      %v2145 = vshrl.u32 %v1886, 16
      %v2147 = vrot.slane %v2145, 4
      %v2148 = vshll.u32 %v1886, 16
      %v2150 = vrot.slane %v2148, 5
      %v2151 = vor.u32 %v2147, %v2150
      %v2152 = vrot.slane %v2151, 4
      %v2154 = vshll.u32 %v1887, 16
      %v2156 = vrot.slane %v2154, 5
      %v2157 = vsel %vm387, %v2152, %v2156
      %v2158 = vshrl.u32 %v1887, 16
      %v2160 = vrot.slane %v2158, 4
      %v2161 = vor.u32 %v2160, %v2156
      %v2162 = vrot.slane %v2161, 4
      %v2164 = vshll.u32 %v1888, 16
      %v2166 = vrot.slane %v2164, 5
      %v2167 = vsel %vm387, %v2162, %v2166
      %v2169 = vshrl.u32 %v1889, 16
      %v2171 = vrot.slane %v2169, 4
      %v2172 = vshll.u32 %v1889, 16
      %v2174 = vrot.slane %v2172, 5
      %v2175 = vor.u32 %v2171, %v2174
      %v2176 = vrot.slane %v2175, 4
      %v2178 = vshll.u32 %v1890, 16
      %v2180 = vrot.slane %v2178, 5
      %v2181 = vsel %vm387, %v2176, %v2180
      %v2182 = vshrl.u32 %v1890, 16
      %v2184 = vrot.slane %v2182, 4
      %v2185 = vor.u32 %v2184, %v2180
      %v2186 = vrot.slane %v2185, 4
      %v2188 = vshll.u32 %v1891, 16
      %v2190 = vrot.slane %v2188, 5
      %v2191 = vsel %vm387, %v2186, %v2190
      %v2193 = vshrl.u32 %v1892, 16
      %v2195 = vrot.slane %v2193, 4
      %v2196 = vshll.u32 %v1892, 16
      %v2198 = vrot.slane %v2196, 5
      %v2199 = vor.u32 %v2195, %v2198
      %v2200 = vrot.slane %v2199, 4
      %v2202 = vshll.u32 %v1893, 16
      %v2204 = vrot.slane %v2202, 5
      %v2205 = vsel %vm387, %v2200, %v2204
      %v2206 = vshrl.u32 %v1893, 16
      %v2208 = vrot.slane %v2206, 4
      %v2209 = vor.u32 %v2208, %v2204
      %v2210 = vrot.slane %v2209, 4
      %v2212 = vshll.u32 %v1894, 16
      %v2214 = vrot.slane %v2212, 5
      %v2215 = vsel %vm387, %v2210, %v2214
      %v2217 = vshrl.u32 %v1895, 16
      %v2219 = vrot.slane %v2217, 4
      %v2220 = vshll.u32 %v1895, 16
      %v2222 = vrot.slane %v2220, 5
      %v2223 = vor.u32 %v2219, %v2222
      %v2224 = vrot.slane %v2223, 4
      %v2226 = vshll.u32 %v1896, 16
      %v2228 = vrot.slane %v2226, 5
      %v2229 = vsel %vm387, %v2224, %v2228
      %v2230 = vshrl.u32 %v1896, 16
      %v2232 = vrot.slane %v2230, 4
      %v2233 = vor.u32 %v2232, %v2228
      %v2234 = vrot.slane %v2233, 4
      %v2236 = vshll.u32 %v1897, 16
      %v2238 = vrot.slane %v2236, 5
      %v2239 = vsel %vm387, %v2234, %v2238
      %v2241 = vshrl.u32 %v1898, 16
      %v2243 = vrot.slane %v2241, 4
      %v2244 = vshll.u32 %v1898, 16
      %v2246 = vrot.slane %v2244, 5
      %v2247 = vor.u32 %v2243, %v2246
      %v2248 = vrot.slane %v2247, 4
      %v2250 = vshll.u32 %v1899, 16
      %v2252 = vrot.slane %v2250, 5
      %v2253 = vsel %vm387, %v2248, %v2252
      %v2254 = vshrl.u32 %v1899, 16
      %v2256 = vrot.slane %v2254, 4
      %v2257 = vor.u32 %v2256, %v2252
      %v2258 = vrot.slane %v2257, 4
      %v2260 = vshll.u32 %v1900, 16
      %v2262 = vrot.slane %v2260, 5
      %v2263 = vsel %vm387, %v2258, %v2262
      %v2265 = vshrl.u32 %v1901, 16
      %v2267 = vrot.slane %v2265, 4
      %v2268 = vshll.u32 %v1901, 16
      %v2270 = vrot.slane %v2268, 5
      %v2271 = vor.u32 %v2267, %v2270
      %v2272 = vrot.slane %v2271, 4
      %v2274 = vshll.u32 %v1902, 16
      %v2276 = vrot.slane %v2274, 5
      %v2277 = vsel %vm387, %v2272, %v2276
      %v2278 = vshrl.u32 %v1902, 16
      %v2280 = vrot.slane %v2278, 4
      %v2281 = vor.u32 %v2280, %v2276
      %v2282 = vrot.slane %v2281, 4
      %v2284 = vshll.u32 %v1903, 16
      %v2286 = vrot.slane %v2284, 5
      %v2287 = vsel %vm387, %v2282, %v2286
      %s2288 = scalar_lea.vmem %s325, 8
      %v2289 = vld [vmem:[%s2288] sm:$0x3]
      %v2290 = vunpack.c.l.b16 %v1917
      %v2291 = vunpack.c.l.b16 %v1927
      %v2292 = vunpack.c.l.b16 %v1941
      %v2293 = vunpack.c.l.b16 %v1951
      %v2294 = vunpack.c.l.b16 %v1965
      %v2295 = vunpack.c.l.b16 %v1975
      %v2296 = vunpack.c.l.b16 %v1989
      %v2297 = vunpack.c.l.b16 %v1999
      %v2298 = vunpack.c.l.b16 %v2013
      %v2299 = vunpack.c.l.b16 %v2023
      %v2300 = vunpack.c.l.b16 %v2037
      %v2301 = vunpack.c.l.b16 %v2047
      %v2302 = vunpack.c.l.b16 %v2061
      %v2303 = vunpack.c.l.b16 %v2071
      %v2304 = vunpack.c.l.b16 %v2085
      %v2305 = vunpack.c.l.b16 %v2095
      %v2306 = vunpack.c.l.b16 %v2109
      %v2307 = vunpack.c.l.b16 %v2119
      %v2308 = vunpack.c.l.b16 %v2133
      %v2309 = vunpack.c.l.b16 %v2143
      %v2310 = vunpack.c.l.b16 %v2157
      %v2311 = vunpack.c.l.b16 %v2167
      %v2312 = vunpack.c.l.b16 %v2181
      %v2313 = vunpack.c.l.b16 %v2191
      %v2314 = vunpack.c.l.b16 %v2205
      %v2315 = vunpack.c.l.b16 %v2215
      %v2316 = vunpack.c.l.b16 %v2229
      %v2317 = vunpack.c.l.b16 %v2239
      %v2318 = vunpack.c.l.b16 %v2253
      %v2319 = vunpack.c.l.b16 %v2263
      %v2320 = vunpack.c.l.b16 %v2277
      %v2321 = vunpack.c.l.b16 %v2287
      %v2322 = vpack.c.b16 %v2291, %v2290
      %v2323 = vpack.c.b16 %v2293, %v2292
      %v2324 = vpack.c.b16 %v2295, %v2294
      %v2325 = vpack.c.b16 %v2297, %v2296
      %v2326 = vpack.c.b16 %v2299, %v2298
      %v2327 = vpack.c.b16 %v2301, %v2300
      %v2328 = vpack.c.b16 %v2303, %v2302
      %v2329 = vpack.c.b16 %v2305, %v2304
      %v2330 = vpack.c.b16 %v2307, %v2306
      %v2331 = vpack.c.b16 %v2309, %v2308
      %v2332 = vpack.c.b16 %v2311, %v2310
      %v2333 = vpack.c.b16 %v2313, %v2312
      %v2334 = vpack.c.b16 %v2315, %v2314
      %v2335 = vpack.c.b16 %v2317, %v2316
      %v2336 = vpack.c.b16 %v2319, %v2318
      %v2337 = vpack.c.b16 %v2321, %v2320
      %v2339 = vsel %vm822, %v2322, 0
      %v2342 = vsel %vm822, %v2323, 0
      %v2345 = vsel %vm822, %v2324, 0
      %v2348 = vsel %vm822, %v2325, 0
      %v2351 = vsel %vm822, %v2326, 0
      %v2354 = vsel %vm822, %v2327, 0
      %v2357 = vsel %vm822, %v2328, 0
      %v2360 = vsel %vm822, %v2329, 0
      %v2363 = vsel %vm822, %v2330, 0
      %v2366 = vsel %vm822, %v2331, 0
      %v2369 = vsel %vm822, %v2332, 0
      %v2372 = vsel %vm822, %v2333, 0
      %v2375 = vsel %vm822, %v2334, 0
      %v2378 = vsel %vm822, %v2335, 0
      %v2381 = vsel %vm822, %v2336, 0
      %v2384 = vsel %vm822, %v2337, 0
      %v2387 = vsel %vm871, %v2289, 0
      %2389 = vmatpush.bf16.msra.mxu0 0
      %2390 = vmatpush.bf16.msra.mxu0 0
      %2391 = vmatpush.bf16.msra.mxu0 0
      %2392 = vmatpush.bf16.msra.mxu0 0
      %2393 = vmatpush.bf16.msra.mxu0 0
      %2394 = vmatpush.bf16.msra.mxu0 0
      %2395 = vmatpush.bf16.msra.mxu0 0
      %2396 = vmatpush.bf16.msra.mxu0 %v2387
      %2397 = vmatmul.bf16.gmra.mxu0 %v2339
      %v2398 = vpop.f32.mrf.mxu0
      %v2399 = vadd.f32 0.0, %v2398
      %v2400 = vpop.f32.mrf.mxu0
      %v2401 = vadd.f32 0.0, %v2400
      %2402 = vmatmul.bf16.gmra.mxu0 %v2342
      %v2403 = vpop.f32.mrf.mxu0
      %v2404 = vadd.f32 0.0, %v2403
      %v2405 = vpop.f32.mrf.mxu0
      %v2406 = vadd.f32 0.0, %v2405
      %2407 = vmatmul.bf16.gmra.mxu0 %v2345
      %v2408 = vpop.f32.mrf.mxu0
      %v2409 = vadd.f32 0.0, %v2408
      %v2410 = vpop.f32.mrf.mxu0
      %v2411 = vadd.f32 0.0, %v2410
      %2412 = vmatmul.bf16.gmra.mxu0 %v2348
      %v2413 = vpop.f32.mrf.mxu0
      %v2414 = vadd.f32 0.0, %v2413
      %v2415 = vpop.f32.mrf.mxu0
      %v2416 = vadd.f32 0.0, %v2415
      %2417 = vmatmul.bf16.gmra.mxu0 %v2351
      %v2418 = vpop.f32.mrf.mxu0
      %v2419 = vadd.f32 0.0, %v2418
      %v2420 = vpop.f32.mrf.mxu0
      %v2421 = vadd.f32 0.0, %v2420
      %2422 = vmatmul.bf16.gmra.mxu0 %v2354
      %v2423 = vpop.f32.mrf.mxu0
      %v2424 = vadd.f32 0.0, %v2423
      %v2425 = vpop.f32.mrf.mxu0
      %v2426 = vadd.f32 0.0, %v2425
      %2427 = vmatmul.bf16.gmra.mxu0 %v2357
      %v2428 = vpop.f32.mrf.mxu0
      %v2429 = vadd.f32 0.0, %v2428
      %v2430 = vpop.f32.mrf.mxu0
      %v2431 = vadd.f32 0.0, %v2430
      %2432 = vmatmul.bf16.gmra.mxu0 %v2360
      %v2433 = vpop.f32.mrf.mxu0
      %v2434 = vadd.f32 0.0, %v2433
      %v2435 = vpop.f32.mrf.mxu0
      %v2436 = vadd.f32 0.0, %v2435
      %2437 = vmatmul.bf16.gmra.mxu0 %v2363
      %v2438 = vpop.f32.mrf.mxu0
      %v2439 = vadd.f32 0.0, %v2438
      %v2440 = vpop.f32.mrf.mxu0
      %v2441 = vadd.f32 0.0, %v2440
      %2442 = vmatmul.bf16.gmra.mxu0 %v2366
      %v2443 = vpop.f32.mrf.mxu0
      %v2444 = vadd.f32 0.0, %v2443
      %v2445 = vpop.f32.mrf.mxu0
      %v2446 = vadd.f32 0.0, %v2445
      %2447 = vmatmul.bf16.gmra.mxu0 %v2369
      %v2448 = vpop.f32.mrf.mxu0
      %v2449 = vadd.f32 0.0, %v2448
      %v2450 = vpop.f32.mrf.mxu0
      %v2451 = vadd.f32 0.0, %v2450
      %2452 = vmatmul.bf16.gmra.mxu0 %v2372
      %v2453 = vpop.f32.mrf.mxu0
      %v2454 = vadd.f32 0.0, %v2453
      %v2455 = vpop.f32.mrf.mxu0
      %v2456 = vadd.f32 0.0, %v2455
      %2457 = vmatmul.bf16.gmra.mxu0 %v2375
      %v2458 = vpop.f32.mrf.mxu0
      %v2459 = vadd.f32 0.0, %v2458
      %v2460 = vpop.f32.mrf.mxu0
      %v2461 = vadd.f32 0.0, %v2460
      %2462 = vmatmul.bf16.gmra.mxu0 %v2378
      %v2463 = vpop.f32.mrf.mxu0
      %v2464 = vadd.f32 0.0, %v2463
      %v2465 = vpop.f32.mrf.mxu0
      %v2466 = vadd.f32 0.0, %v2465
      %2467 = vmatmul.bf16.gmra.mxu0 %v2381
      %v2468 = vpop.f32.mrf.mxu0
      %v2469 = vadd.f32 0.0, %v2468
      %v2470 = vpop.f32.mrf.mxu0
      %v2471 = vadd.f32 0.0, %v2470
      %2472 = vmatmul.bf16.gmra.mxu0 %v2384
      %v2473 = vpop.f32.mrf.mxu0
      %v2474 = vadd.f32 0.0, %v2473
      %v2475 = vpop.f32.mrf.mxu0
      %v2476 = vadd.f32 0.0, %v2475
      %2477 = vdwg.mxu0
      %v2478 = vadd.f32 %v1824, %v2399
      %v2479 = vadd.f32 %v1825, %v2401
      %v2480 = vadd.f32 %v1826, %v2404
      %v2481 = vadd.f32 %v1827, %v2406
      %v2482 = vadd.f32 %v1828, %v2409
      %v2483 = vadd.f32 %v1829, %v2411
      %v2484 = vadd.f32 %v1830, %v2414
      %v2485 = vadd.f32 %v1831, %v2416
      %v2486 = vadd.f32 %v1832, %v2419
      %v2487 = vadd.f32 %v1833, %v2421
      %v2488 = vadd.f32 %v1834, %v2424
      %v2489 = vadd.f32 %v1835, %v2426
      %v2490 = vadd.f32 %v1836, %v2429
      %v2491 = vadd.f32 %v1837, %v2431
      %v2492 = vadd.f32 %v1838, %v2434
      %v2493 = vadd.f32 %v1839, %v2436
      %v2494 = vadd.f32 %v1840, %v2439
      %v2495 = vadd.f32 %v1841, %v2441
      %v2496 = vadd.f32 %v1842, %v2444
      %v2497 = vadd.f32 %v1843, %v2446
      %v2498 = vadd.f32 %v1844, %v2449
      %v2499 = vadd.f32 %v1845, %v2451
      %v2500 = vadd.f32 %v1846, %v2454
      %v2501 = vadd.f32 %v1847, %v2456
      %v2502 = vadd.f32 %v1848, %v2459
      %v2503 = vadd.f32 %v1849, %v2461
      %v2504 = vadd.f32 %v1850, %v2464
      %v2505 = vadd.f32 %v1851, %v2466
      %v2506 = vadd.f32 %v1852, %v2469
      %v2507 = vadd.f32 %v1853, %v2471
      %v2508 = vadd.f32 %v1854, %v2474
      %v2509 = vadd.f32 %v1855, %v2476
      %v2510 = vld [vmem:[%s1569] sm:$0xe]
      %v2511 = vld [vmem:[%s1569 + $0xc] sm:$0xe]
      %v2512 = vld [vmem:[%s1569 + $0x18] sm:$0xe]
      %v2513 = vld [vmem:[%s1569 + $0x24] sm:$0xe]
      %v2514 = vld [vmem:[%s1569 + $0x30] sm:$0xe]
      %v2515 = vld [vmem:[%s1569 + $0x3c] sm:$0xe]
      %v2516 = vld [vmem:[%s1569 + $0x48] sm:$0xe]
      %v2517 = vld [vmem:[%s1569 + $0x54] sm:$0xe]
      %v2518 = vld [vmem:[%s1569 + $0x60] sm:$0xe]
      %v2519 = vld [vmem:[%s1569 + $0x6c] sm:$0xe]
      %v2520 = vld [vmem:[%s1569 + $0x78] sm:$0xe]
      %v2521 = vld [vmem:[%s1569 + $0x84] sm:$0xe]
      %v2522 = vld [vmem:[%s1569 + $0x90] sm:$0xe]
      %v2523 = vld [vmem:[%s1569 + $0x9c] sm:$0xe]
      %v2524 = vld [vmem:[%s1569 + $0xa8] sm:$0xe]
      %v2525 = vld [vmem:[%s1569 + $0xb4] sm:$0xe]
      %v2574 = vrot.slane %v2510, 5
      %v2575 = vrot.slane %v2574, 4
      %v2576 = vrot.slane %v1857, 5
      %v2577 = vsel %vm1234, %v2575, %v2576
      %v2578 = vrot.slane %v2576, 4
      %v2579 = vrot.slane %v1858, 5
      %v2580 = vsel %vm1234, %v2578, %v2579
      %v2581 = vrot.slane %v2511, 5
      %v2582 = vrot.slane %v2581, 4
      %v2583 = vrot.slane %v1860, 5
      %v2584 = vsel %vm1234, %v2582, %v2583
      %v2585 = vrot.slane %v2583, 4
      %v2586 = vrot.slane %v1861, 5
      %v2587 = vsel %vm1234, %v2585, %v2586
      %v2588 = vrot.slane %v2512, 5
      %v2589 = vrot.slane %v2588, 4
      %v2590 = vrot.slane %v1863, 5
      %v2591 = vsel %vm1234, %v2589, %v2590
      %v2592 = vrot.slane %v2590, 4
      %v2593 = vrot.slane %v1864, 5
      %v2594 = vsel %vm1234, %v2592, %v2593
      %v2595 = vrot.slane %v2513, 5
      %v2596 = vrot.slane %v2595, 4
      %v2597 = vrot.slane %v1866, 5
      %v2598 = vsel %vm1234, %v2596, %v2597
      %v2599 = vrot.slane %v2597, 4
      %v2600 = vrot.slane %v1867, 5
      %v2601 = vsel %vm1234, %v2599, %v2600
      %v2602 = vrot.slane %v2514, 5
      %v2603 = vrot.slane %v2602, 4
      %v2604 = vrot.slane %v1869, 5
      %v2605 = vsel %vm1234, %v2603, %v2604
      %v2606 = vrot.slane %v2604, 4
      %v2607 = vrot.slane %v1870, 5
      %v2608 = vsel %vm1234, %v2606, %v2607
      %v2609 = vrot.slane %v2515, 5
      %v2610 = vrot.slane %v2609, 4
      %v2611 = vrot.slane %v1872, 5
      %v2612 = vsel %vm1234, %v2610, %v2611
      %v2613 = vrot.slane %v2611, 4
      %v2614 = vrot.slane %v1873, 5
      %v2615 = vsel %vm1234, %v2613, %v2614
      %v2616 = vrot.slane %v2516, 5
      %v2617 = vrot.slane %v2616, 4
      %v2618 = vrot.slane %v1875, 5
      %v2619 = vsel %vm1234, %v2617, %v2618
      %v2620 = vrot.slane %v2618, 4
      %v2621 = vrot.slane %v1876, 5
      %v2622 = vsel %vm1234, %v2620, %v2621
      %v2623 = vrot.slane %v2517, 5
      %v2624 = vrot.slane %v2623, 4
      %v2625 = vrot.slane %v1878, 5
      %v2626 = vsel %vm1234, %v2624, %v2625
      %v2627 = vrot.slane %v2625, 4
      %v2628 = vrot.slane %v1879, 5
      %v2629 = vsel %vm1234, %v2627, %v2628
      %v2630 = vrot.slane %v2518, 5
      %v2631 = vrot.slane %v2630, 4
      %v2632 = vrot.slane %v1881, 5
      %v2633 = vsel %vm1234, %v2631, %v2632
      %v2634 = vrot.slane %v2632, 4
      %v2635 = vrot.slane %v1882, 5
      %v2636 = vsel %vm1234, %v2634, %v2635
      %v2637 = vrot.slane %v2519, 5
      %v2638 = vrot.slane %v2637, 4
      %v2639 = vrot.slane %v1884, 5
      %v2640 = vsel %vm1234, %v2638, %v2639
      %v2641 = vrot.slane %v2639, 4
      %v2642 = vrot.slane %v1885, 5
      %v2643 = vsel %vm1234, %v2641, %v2642
      %v2644 = vrot.slane %v2520, 5
      %v2645 = vrot.slane %v2644, 4
      %v2646 = vrot.slane %v1887, 5
      %v2647 = vsel %vm1234, %v2645, %v2646
      %v2648 = vrot.slane %v2646, 4
      %v2649 = vrot.slane %v1888, 5
      %v2650 = vsel %vm1234, %v2648, %v2649
      %v2651 = vrot.slane %v2521, 5
      %v2652 = vrot.slane %v2651, 4
      %v2653 = vrot.slane %v1890, 5
      %v2654 = vsel %vm1234, %v2652, %v2653
      %v2655 = vrot.slane %v2653, 4
      %v2656 = vrot.slane %v1891, 5
      %v2657 = vsel %vm1234, %v2655, %v2656
      %v2658 = vrot.slane %v2522, 5
      %v2659 = vrot.slane %v2658, 4
      %v2660 = vrot.slane %v1893, 5
      %v2661 = vsel %vm1234, %v2659, %v2660
      %v2662 = vrot.slane %v2660, 4
      %v2663 = vrot.slane %v1894, 5
      %v2664 = vsel %vm1234, %v2662, %v2663
      %v2665 = vrot.slane %v2523, 5
      %v2666 = vrot.slane %v2665, 4
      %v2667 = vrot.slane %v1896, 5
      %v2668 = vsel %vm1234, %v2666, %v2667
      %v2669 = vrot.slane %v2667, 4
      %v2670 = vrot.slane %v1897, 5
      %v2671 = vsel %vm1234, %v2669, %v2670
      %v2672 = vrot.slane %v2524, 5
      %v2673 = vrot.slane %v2672, 4
      %v2674 = vrot.slane %v1899, 5
      %v2675 = vsel %vm1234, %v2673, %v2674
      %v2676 = vrot.slane %v2674, 4
      %v2677 = vrot.slane %v1900, 5
      %v2678 = vsel %vm1234, %v2676, %v2677
      %v2679 = vrot.slane %v2525, 5
      %v2680 = vrot.slane %v2679, 4
      %v2681 = vrot.slane %v1902, 5
      %v2682 = vsel %vm1234, %v2680, %v2681
      %v2683 = vrot.slane %v2681, 4
      %v2684 = vrot.slane %v1903, 5
      %v2685 = vsel %vm1234, %v2683, %v2684
      %s2686 = scalar_lea.vmem %s325, 10
      %v2687 = vld [vmem:[%s2686] sm:$0x3]
      %v2688 = vunpack.c.l.b16 %v2577
      %v2689 = vunpack.c.l.b16 %v2580
      %v2690 = vunpack.c.l.b16 %v2584
      %v2691 = vunpack.c.l.b16 %v2587
      %v2692 = vunpack.c.l.b16 %v2591
      %v2693 = vunpack.c.l.b16 %v2594
      %v2694 = vunpack.c.l.b16 %v2598
      %v2695 = vunpack.c.l.b16 %v2601
      %v2696 = vunpack.c.l.b16 %v2605
      %v2697 = vunpack.c.l.b16 %v2608
      %v2698 = vunpack.c.l.b16 %v2612
      %v2699 = vunpack.c.l.b16 %v2615
      %v2700 = vunpack.c.l.b16 %v2619
      %v2701 = vunpack.c.l.b16 %v2622
      %v2702 = vunpack.c.l.b16 %v2626
      %v2703 = vunpack.c.l.b16 %v2629
      %v2704 = vunpack.c.l.b16 %v2633
      %v2705 = vunpack.c.l.b16 %v2636
      %v2706 = vunpack.c.l.b16 %v2640
      %v2707 = vunpack.c.l.b16 %v2643
      %v2708 = vunpack.c.l.b16 %v2647
      %v2709 = vunpack.c.l.b16 %v2650
      %v2710 = vunpack.c.l.b16 %v2654
      %v2711 = vunpack.c.l.b16 %v2657
      %v2712 = vunpack.c.l.b16 %v2661
      %v2713 = vunpack.c.l.b16 %v2664
      %v2714 = vunpack.c.l.b16 %v2668
      %v2715 = vunpack.c.l.b16 %v2671
      %v2716 = vunpack.c.l.b16 %v2675
      %v2717 = vunpack.c.l.b16 %v2678
      %v2718 = vunpack.c.l.b16 %v2682
      %v2719 = vunpack.c.l.b16 %v2685
      %v2720 = vpack.c.b16 %v2689, %v2688
      %v2721 = vpack.c.b16 %v2691, %v2690
      %v2722 = vpack.c.b16 %v2693, %v2692
      %v2723 = vpack.c.b16 %v2695, %v2694
      %v2724 = vpack.c.b16 %v2697, %v2696
      %v2725 = vpack.c.b16 %v2699, %v2698
      %v2726 = vpack.c.b16 %v2701, %v2700
      %v2727 = vpack.c.b16 %v2703, %v2702
      %v2728 = vpack.c.b16 %v2705, %v2704
      %v2729 = vpack.c.b16 %v2707, %v2706
      %v2730 = vpack.c.b16 %v2709, %v2708
      %v2731 = vpack.c.b16 %v2711, %v2710
      %v2732 = vpack.c.b16 %v2713, %v2712
      %v2733 = vpack.c.b16 %v2715, %v2714
      %v2734 = vpack.c.b16 %v2717, %v2716
      %v2735 = vpack.c.b16 %v2719, %v2718
      %v2737 = vsel %vm822, %v2720, 0
      %v2740 = vsel %vm822, %v2721, 0
      %v2743 = vsel %vm822, %v2722, 0
      %v2746 = vsel %vm822, %v2723, 0
      %v2749 = vsel %vm822, %v2724, 0
      %v2752 = vsel %vm822, %v2725, 0
      %v2755 = vsel %vm822, %v2726, 0
      %v2758 = vsel %vm822, %v2727, 0
      %v2761 = vsel %vm822, %v2728, 0
      %v2764 = vsel %vm822, %v2729, 0
      %v2767 = vsel %vm822, %v2730, 0
      %v2770 = vsel %vm822, %v2731, 0
      %v2773 = vsel %vm822, %v2732, 0
      %v2776 = vsel %vm822, %v2733, 0
      %v2779 = vsel %vm822, %v2734, 0
      %v2782 = vsel %vm822, %v2735, 0
      %v2785 = vsel %vm871, %v2687, 0
      %2787 = vmatpush.bf16.msra.mxu0 0
      %2788 = vmatpush.bf16.msra.mxu0 0
      %2789 = vmatpush.bf16.msra.mxu0 0
      %2790 = vmatpush.bf16.msra.mxu0 0
      %2791 = vmatpush.bf16.msra.mxu0 0
      %2792 = vmatpush.bf16.msra.mxu0 0
      %2793 = vmatpush.bf16.msra.mxu0 0
      %2794 = vmatpush.bf16.msra.mxu0 %v2785
      %2795 = vmatmul.bf16.gmra.mxu0 %v2737
      %v2796 = vpop.f32.mrf.mxu0
      %v2797 = vadd.f32 0.0, %v2796
      %v2798 = vpop.f32.mrf.mxu0
      %v2799 = vadd.f32 0.0, %v2798
      %2800 = vmatmul.bf16.gmra.mxu0 %v2740
      %v2801 = vpop.f32.mrf.mxu0
      %v2802 = vadd.f32 0.0, %v2801
      %v2803 = vpop.f32.mrf.mxu0
      %v2804 = vadd.f32 0.0, %v2803
      %2805 = vmatmul.bf16.gmra.mxu0 %v2743
      %v2806 = vpop.f32.mrf.mxu0
      %v2807 = vadd.f32 0.0, %v2806
      %v2808 = vpop.f32.mrf.mxu0
      %v2809 = vadd.f32 0.0, %v2808
      %2810 = vmatmul.bf16.gmra.mxu0 %v2746
      %v2811 = vpop.f32.mrf.mxu0
      %v2812 = vadd.f32 0.0, %v2811
      %v2813 = vpop.f32.mrf.mxu0
      %v2814 = vadd.f32 0.0, %v2813
      %2815 = vmatmul.bf16.gmra.mxu0 %v2749
      %v2816 = vpop.f32.mrf.mxu0
      %v2817 = vadd.f32 0.0, %v2816
      %v2818 = vpop.f32.mrf.mxu0
      %v2819 = vadd.f32 0.0, %v2818
      %2820 = vmatmul.bf16.gmra.mxu0 %v2752
      %v2821 = vpop.f32.mrf.mxu0
      %v2822 = vadd.f32 0.0, %v2821
      %v2823 = vpop.f32.mrf.mxu0
      %v2824 = vadd.f32 0.0, %v2823
      %2825 = vmatmul.bf16.gmra.mxu0 %v2755
      %v2826 = vpop.f32.mrf.mxu0
      %v2827 = vadd.f32 0.0, %v2826
      %v2828 = vpop.f32.mrf.mxu0
      %v2829 = vadd.f32 0.0, %v2828
      %2830 = vmatmul.bf16.gmra.mxu0 %v2758
      %v2831 = vpop.f32.mrf.mxu0
      %v2832 = vadd.f32 0.0, %v2831
      %v2833 = vpop.f32.mrf.mxu0
      %v2834 = vadd.f32 0.0, %v2833
      %2835 = vmatmul.bf16.gmra.mxu0 %v2761
      %v2836 = vpop.f32.mrf.mxu0
      %v2837 = vadd.f32 0.0, %v2836
      %v2838 = vpop.f32.mrf.mxu0
      %v2839 = vadd.f32 0.0, %v2838
      %2840 = vmatmul.bf16.gmra.mxu0 %v2764
      %v2841 = vpop.f32.mrf.mxu0
      %v2842 = vadd.f32 0.0, %v2841
      %v2843 = vpop.f32.mrf.mxu0
      %v2844 = vadd.f32 0.0, %v2843
      %2845 = vmatmul.bf16.gmra.mxu0 %v2767
      %v2846 = vpop.f32.mrf.mxu0
      %v2847 = vadd.f32 0.0, %v2846
      %v2848 = vpop.f32.mrf.mxu0
      %v2849 = vadd.f32 0.0, %v2848
      %2850 = vmatmul.bf16.gmra.mxu0 %v2770
      %v2851 = vpop.f32.mrf.mxu0
      %v2852 = vadd.f32 0.0, %v2851
      %v2853 = vpop.f32.mrf.mxu0
      %v2854 = vadd.f32 0.0, %v2853
      %2855 = vmatmul.bf16.gmra.mxu0 %v2773
      %v2856 = vpop.f32.mrf.mxu0
      %v2857 = vadd.f32 0.0, %v2856
      %v2858 = vpop.f32.mrf.mxu0
      %v2859 = vadd.f32 0.0, %v2858
      %2860 = vmatmul.bf16.gmra.mxu0 %v2776
      %v2861 = vpop.f32.mrf.mxu0
      %v2862 = vadd.f32 0.0, %v2861
      %v2863 = vpop.f32.mrf.mxu0
      %v2864 = vadd.f32 0.0, %v2863
      %2865 = vmatmul.bf16.gmra.mxu0 %v2779
      %v2866 = vpop.f32.mrf.mxu0
      %v2867 = vadd.f32 0.0, %v2866
      %v2868 = vpop.f32.mrf.mxu0
      %v2869 = vadd.f32 0.0, %v2868
      %2870 = vmatmul.bf16.gmra.mxu0 %v2782
      %v2871 = vpop.f32.mrf.mxu0
      %v2872 = vadd.f32 0.0, %v2871
      %v2873 = vpop.f32.mrf.mxu0
      %v2874 = vadd.f32 0.0, %v2873
      %2875 = vdwg.mxu0
      %v2876 = vadd.f32 %v2478, %v2797
      %v2877 = vadd.f32 %v2479, %v2799
      %v2878 = vadd.f32 %v2480, %v2802
      %v2879 = vadd.f32 %v2481, %v2804
      %v2880 = vadd.f32 %v2482, %v2807
      %v2881 = vadd.f32 %v2483, %v2809
      %v2882 = vadd.f32 %v2484, %v2812
      %v2883 = vadd.f32 %v2485, %v2814
      %v2884 = vadd.f32 %v2486, %v2817
      %v2885 = vadd.f32 %v2487, %v2819
      %v2886 = vadd.f32 %v2488, %v2822
      %v2887 = vadd.f32 %v2489, %v2824
      %v2888 = vadd.f32 %v2490, %v2827
      %v2889 = vadd.f32 %v2491, %v2829
      %v2890 = vadd.f32 %v2492, %v2832
      %v2891 = vadd.f32 %v2493, %v2834
      %v2892 = vadd.f32 %v2494, %v2837
      %v2893 = vadd.f32 %v2495, %v2839
      %v2894 = vadd.f32 %v2496, %v2842
      %v2895 = vadd.f32 %v2497, %v2844
      %v2896 = vadd.f32 %v2498, %v2847
      %v2897 = vadd.f32 %v2499, %v2849
      %v2898 = vadd.f32 %v2500, %v2852
      %v2899 = vadd.f32 %v2501, %v2854
      %v2900 = vadd.f32 %v2502, %v2857
      %v2901 = vadd.f32 %v2503, %v2859
      %v2902 = vadd.f32 %v2504, %v2862
      %v2903 = vadd.f32 %v2505, %v2864
      %v2904 = vadd.f32 %v2506, %v2867
      %v2905 = vadd.f32 %v2507, %v2869
      %v2906 = vadd.f32 %v2508, %v2872
      %v2907 = vadd.f32 %v2509, %v2874
      %s2908 = scalar_lea.vmem %s320, 24
      %v2909 = vld [vmem:[%s2908] sm:$0xf]
      %v2910 = vld [vmem:[%s2908 + $0x4] sm:$0xf]
      %v2911 = vld [vmem:[%s2908 + $0xc] sm:$0xf]
      %v2912 = vld [vmem:[%s2908 + $0x10] sm:$0xf]
      %v2913 = vld [vmem:[%s2908 + $0x18] sm:$0xf]
      %v2914 = vld [vmem:[%s2908 + $0x1c] sm:$0xf]
      %v2915 = vld [vmem:[%s2908 + $0x24] sm:$0xf]
      %v2916 = vld [vmem:[%s2908 + $0x28] sm:$0xf]
      %v2917 = vld [vmem:[%s2908 + $0x30] sm:$0xf]
      %v2918 = vld [vmem:[%s2908 + $0x34] sm:$0xf]
      %v2919 = vld [vmem:[%s2908 + $0x3c] sm:$0xf]
      %v2920 = vld [vmem:[%s2908 + $0x40] sm:$0xf]
      %v2921 = vld [vmem:[%s2908 + $0x48] sm:$0xf]
      %v2922 = vld [vmem:[%s2908 + $0x4c] sm:$0xf]
      %v2923 = vld [vmem:[%s2908 + $0x54] sm:$0xf]
      %v2924 = vld [vmem:[%s2908 + $0x58] sm:$0xf]
      %v2925 = vld [vmem:[%s2908 + $0x60] sm:$0xf]
      %v2926 = vld [vmem:[%s2908 + $0x64] sm:$0xf]
      %v2927 = vld [vmem:[%s2908 + $0x6c] sm:$0xf]
      %v2928 = vld [vmem:[%s2908 + $0x70] sm:$0xf]
      %v2929 = vld [vmem:[%s2908 + $0x78] sm:$0xf]
      %v2930 = vld [vmem:[%s2908 + $0x7c] sm:$0xf]
      %v2931 = vld [vmem:[%s2908 + $0x84] sm:$0xf]
      %v2932 = vld [vmem:[%s2908 + $0x88] sm:$0xf]
      %v2933 = vld [vmem:[%s2908 + $0x90] sm:$0xf]
      %v2934 = vld [vmem:[%s2908 + $0x94] sm:$0xf]
      %v2935 = vld [vmem:[%s2908 + $0x9c] sm:$0xf]
      %v2936 = vld [vmem:[%s2908 + $0xa0] sm:$0xf]
      %v2937 = vld [vmem:[%s2908 + $0xa8] sm:$0xf]
      %v2938 = vld [vmem:[%s2908 + $0xac] sm:$0xf]
      %v2939 = vld [vmem:[%s2908 + $0xb4] sm:$0xf]
      %v2940 = vld [vmem:[%s2908 + $0xb8] sm:$0xf]
      %s2941 = scalar_lea.vmem %s325, 12
      %v2942 = vld [vmem:[%s2941] sm:$0x3]
      %v2975 = vunpack.c.l.b16 %v2909
      %v2976 = vunpack.c.l.b16 %v2910
      %v2977 = vunpack.c.l.b16 %v2911
      %v2978 = vunpack.c.l.b16 %v2912
      %v2979 = vunpack.c.l.b16 %v2913
      %v2980 = vunpack.c.l.b16 %v2914
      %v2981 = vunpack.c.l.b16 %v2915
      %v2982 = vunpack.c.l.b16 %v2916
      %v2983 = vunpack.c.l.b16 %v2917
      %v2984 = vunpack.c.l.b16 %v2918
      %v2985 = vunpack.c.l.b16 %v2919
      %v2986 = vunpack.c.l.b16 %v2920
      %v2987 = vunpack.c.l.b16 %v2921
      %v2988 = vunpack.c.l.b16 %v2922
      %v2989 = vunpack.c.l.b16 %v2923
      %v2990 = vunpack.c.l.b16 %v2924
      %v2991 = vunpack.c.l.b16 %v2925
      %v2992 = vunpack.c.l.b16 %v2926
      %v2993 = vunpack.c.l.b16 %v2927
      %v2994 = vunpack.c.l.b16 %v2928
      %v2995 = vunpack.c.l.b16 %v2929
      %v2996 = vunpack.c.l.b16 %v2930
      %v2997 = vunpack.c.l.b16 %v2931
      %v2998 = vunpack.c.l.b16 %v2932
      %v2999 = vunpack.c.l.b16 %v2933
      %v3000 = vunpack.c.l.b16 %v2934
      %v3001 = vunpack.c.l.b16 %v2935
      %v3002 = vunpack.c.l.b16 %v2936
      %v3003 = vunpack.c.l.b16 %v2937
      %v3004 = vunpack.c.l.b16 %v2938
      %v3005 = vunpack.c.l.b16 %v2939
      %v3006 = vunpack.c.l.b16 %v2940
      %v3007 = vpack.c.b16 %v2976, %v2975
      %v3008 = vpack.c.b16 %v2978, %v2977
      %v3009 = vpack.c.b16 %v2980, %v2979
      %v3010 = vpack.c.b16 %v2982, %v2981
      %v3011 = vpack.c.b16 %v2984, %v2983
      %v3012 = vpack.c.b16 %v2986, %v2985
      %v3013 = vpack.c.b16 %v2988, %v2987
      %v3014 = vpack.c.b16 %v2990, %v2989
      %v3015 = vpack.c.b16 %v2992, %v2991
      %v3016 = vpack.c.b16 %v2994, %v2993
      %v3017 = vpack.c.b16 %v2996, %v2995
      %v3018 = vpack.c.b16 %v2998, %v2997
      %v3019 = vpack.c.b16 %v3000, %v2999
      %v3020 = vpack.c.b16 %v3002, %v3001
      %v3021 = vpack.c.b16 %v3004, %v3003
      %v3022 = vpack.c.b16 %v3006, %v3005
      %v3024 = vsel %vm822, %v3007, 0
      %v3027 = vsel %vm822, %v3008, 0
      %v3030 = vsel %vm822, %v3009, 0
      %v3033 = vsel %vm822, %v3010, 0
      %v3036 = vsel %vm822, %v3011, 0
      %v3039 = vsel %vm822, %v3012, 0
      %v3042 = vsel %vm822, %v3013, 0
      %v3045 = vsel %vm822, %v3014, 0
      %v3048 = vsel %vm822, %v3015, 0
      %v3051 = vsel %vm822, %v3016, 0
      %v3054 = vsel %vm822, %v3017, 0
      %v3057 = vsel %vm822, %v3018, 0
      %v3060 = vsel %vm822, %v3019, 0
      %v3063 = vsel %vm822, %v3020, 0
      %v3066 = vsel %vm822, %v3021, 0
      %v3069 = vsel %vm822, %v3022, 0
      %v3072 = vsel %vm871, %v2942, 0
      %3074 = vmatpush.bf16.msra.mxu0 0
      %3075 = vmatpush.bf16.msra.mxu0 0
      %3076 = vmatpush.bf16.msra.mxu0 0
      %3077 = vmatpush.bf16.msra.mxu0 0
      %3078 = vmatpush.bf16.msra.mxu0 0
      %3079 = vmatpush.bf16.msra.mxu0 0
      %3080 = vmatpush.bf16.msra.mxu0 0
      %3081 = vmatpush.bf16.msra.mxu0 %v3072
      %3082 = vmatmul.bf16.gmra.mxu0 %v3024
      %v3083 = vpop.f32.mrf.mxu0
      %v3084 = vadd.f32 0.0, %v3083
      %v3085 = vpop.f32.mrf.mxu0
      %v3086 = vadd.f32 0.0, %v3085
      %3087 = vmatmul.bf16.gmra.mxu0 %v3027
      %v3088 = vpop.f32.mrf.mxu0
      %v3089 = vadd.f32 0.0, %v3088
      %v3090 = vpop.f32.mrf.mxu0
      %v3091 = vadd.f32 0.0, %v3090
      %3092 = vmatmul.bf16.gmra.mxu0 %v3030
      %v3093 = vpop.f32.mrf.mxu0
      %v3094 = vadd.f32 0.0, %v3093
      %v3095 = vpop.f32.mrf.mxu0
      %v3096 = vadd.f32 0.0, %v3095
      %3097 = vmatmul.bf16.gmra.mxu0 %v3033
      %v3098 = vpop.f32.mrf.mxu0
      %v3099 = vadd.f32 0.0, %v3098
      %v3100 = vpop.f32.mrf.mxu0
      %v3101 = vadd.f32 0.0, %v3100
      %3102 = vmatmul.bf16.gmra.mxu0 %v3036
      %v3103 = vpop.f32.mrf.mxu0
      %v3104 = vadd.f32 0.0, %v3103
      %v3105 = vpop.f32.mrf.mxu0
      %v3106 = vadd.f32 0.0, %v3105
      %3107 = vmatmul.bf16.gmra.mxu0 %v3039
      %v3108 = vpop.f32.mrf.mxu0
      %v3109 = vadd.f32 0.0, %v3108
      %v3110 = vpop.f32.mrf.mxu0
      %v3111 = vadd.f32 0.0, %v3110
      %3112 = vmatmul.bf16.gmra.mxu0 %v3042
      %v3113 = vpop.f32.mrf.mxu0
      %v3114 = vadd.f32 0.0, %v3113
      %v3115 = vpop.f32.mrf.mxu0
      %v3116 = vadd.f32 0.0, %v3115
      %3117 = vmatmul.bf16.gmra.mxu0 %v3045
      %v3118 = vpop.f32.mrf.mxu0
      %v3119 = vadd.f32 0.0, %v3118
      %v3120 = vpop.f32.mrf.mxu0
      %v3121 = vadd.f32 0.0, %v3120
      %3122 = vmatmul.bf16.gmra.mxu0 %v3048
      %v3123 = vpop.f32.mrf.mxu0
      %v3124 = vadd.f32 0.0, %v3123
      %v3125 = vpop.f32.mrf.mxu0
      %v3126 = vadd.f32 0.0, %v3125
      %3127 = vmatmul.bf16.gmra.mxu0 %v3051
      %v3128 = vpop.f32.mrf.mxu0
      %v3129 = vadd.f32 0.0, %v3128
      %v3130 = vpop.f32.mrf.mxu0
      %v3131 = vadd.f32 0.0, %v3130
      %3132 = vmatmul.bf16.gmra.mxu0 %v3054
      %v3133 = vpop.f32.mrf.mxu0
      %v3134 = vadd.f32 0.0, %v3133
      %v3135 = vpop.f32.mrf.mxu0
      %v3136 = vadd.f32 0.0, %v3135
      %3137 = vmatmul.bf16.gmra.mxu0 %v3057
      %v3138 = vpop.f32.mrf.mxu0
      %v3139 = vadd.f32 0.0, %v3138
      %v3140 = vpop.f32.mrf.mxu0
      %v3141 = vadd.f32 0.0, %v3140
      %3142 = vmatmul.bf16.gmra.mxu0 %v3060
      %v3143 = vpop.f32.mrf.mxu0
      %v3144 = vadd.f32 0.0, %v3143
      %v3145 = vpop.f32.mrf.mxu0
      %v3146 = vadd.f32 0.0, %v3145
      %3147 = vmatmul.bf16.gmra.mxu0 %v3063
      %v3148 = vpop.f32.mrf.mxu0
      %v3149 = vadd.f32 0.0, %v3148
      %v3150 = vpop.f32.mrf.mxu0
      %v3151 = vadd.f32 0.0, %v3150
      %3152 = vmatmul.bf16.gmra.mxu0 %v3066
      %v3153 = vpop.f32.mrf.mxu0
      %v3154 = vadd.f32 0.0, %v3153
      %v3155 = vpop.f32.mrf.mxu0
      %v3156 = vadd.f32 0.0, %v3155
      %3157 = vmatmul.bf16.gmra.mxu0 %v3069
      %v3158 = vpop.f32.mrf.mxu0
      %v3159 = vadd.f32 0.0, %v3158
      %v3160 = vpop.f32.mrf.mxu0
      %v3161 = vadd.f32 0.0, %v3160
      %3162 = vdwg.mxu0
      %v3163 = vadd.f32 %v2876, %v3084
      %v3164 = vadd.f32 %v2877, %v3086
      %v3165 = vadd.f32 %v2878, %v3089
      %v3166 = vadd.f32 %v2879, %v3091
      %v3167 = vadd.f32 %v2880, %v3094
      %v3168 = vadd.f32 %v2881, %v3096
      %v3169 = vadd.f32 %v2882, %v3099
      %v3170 = vadd.f32 %v2883, %v3101
      %v3171 = vadd.f32 %v2884, %v3104
      %v3172 = vadd.f32 %v2885, %v3106
      %v3173 = vadd.f32 %v2886, %v3109
      %v3174 = vadd.f32 %v2887, %v3111
      %v3175 = vadd.f32 %v2888, %v3114
      %v3176 = vadd.f32 %v2889, %v3116
      %v3177 = vadd.f32 %v2890, %v3119
      %v3178 = vadd.f32 %v2891, %v3121
      %v3179 = vadd.f32 %v2892, %v3124
      %v3180 = vadd.f32 %v2893, %v3126
      %v3181 = vadd.f32 %v2894, %v3129
      %v3182 = vadd.f32 %v2895, %v3131
      %v3183 = vadd.f32 %v2896, %v3134
      %v3184 = vadd.f32 %v2897, %v3136
      %v3185 = vadd.f32 %v2898, %v3139
      %v3186 = vadd.f32 %v2899, %v3141
      %v3187 = vadd.f32 %v2900, %v3144
      %v3188 = vadd.f32 %v2901, %v3146
      %v3189 = vadd.f32 %v2902, %v3149
      %v3190 = vadd.f32 %v2903, %v3151
      %v3191 = vadd.f32 %v2904, %v3154
      %v3192 = vadd.f32 %v2905, %v3156
      %v3193 = vadd.f32 %v2906, %v3159
      %v3194 = vadd.f32 %v2907, %v3161
      %v3195 = vld [vmem:[%s2908] sm:$0xf]
      %v3196 = vld [vmem:[%s2908 + $0x4] sm:$0xf]
      %v3197 = vld [vmem:[%s2908 + $0x8] sm:$0x1]
      %v3198 = vld [vmem:[%s2908 + $0xc] sm:$0xf]
      %v3199 = vld [vmem:[%s2908 + $0x10] sm:$0xf]
      %v3200 = vld [vmem:[%s2908 + $0x14] sm:$0x1]
      %v3201 = vld [vmem:[%s2908 + $0x18] sm:$0xf]
      %v3202 = vld [vmem:[%s2908 + $0x1c] sm:$0xf]
      %v3203 = vld [vmem:[%s2908 + $0x20] sm:$0x1]
      %v3204 = vld [vmem:[%s2908 + $0x24] sm:$0xf]
      %v3205 = vld [vmem:[%s2908 + $0x28] sm:$0xf]
      %v3206 = vld [vmem:[%s2908 + $0x2c] sm:$0x1]
      %v3207 = vld [vmem:[%s2908 + $0x30] sm:$0xf]
      %v3208 = vld [vmem:[%s2908 + $0x34] sm:$0xf]
      %v3209 = vld [vmem:[%s2908 + $0x38] sm:$0x1]
      %v3210 = vld [vmem:[%s2908 + $0x3c] sm:$0xf]
      %v3211 = vld [vmem:[%s2908 + $0x40] sm:$0xf]
      %v3212 = vld [vmem:[%s2908 + $0x44] sm:$0x1]
      %v3213 = vld [vmem:[%s2908 + $0x48] sm:$0xf]
      %v3214 = vld [vmem:[%s2908 + $0x4c] sm:$0xf]
      %v3215 = vld [vmem:[%s2908 + $0x50] sm:$0x1]
      %v3216 = vld [vmem:[%s2908 + $0x54] sm:$0xf]
      %v3217 = vld [vmem:[%s2908 + $0x58] sm:$0xf]
      %v3218 = vld [vmem:[%s2908 + $0x5c] sm:$0x1]
      %v3219 = vld [vmem:[%s2908 + $0x60] sm:$0xf]
      %v3220 = vld [vmem:[%s2908 + $0x64] sm:$0xf]
      %v3221 = vld [vmem:[%s2908 + $0x68] sm:$0x1]
      %v3222 = vld [vmem:[%s2908 + $0x6c] sm:$0xf]
      %v3223 = vld [vmem:[%s2908 + $0x70] sm:$0xf]
      %v3224 = vld [vmem:[%s2908 + $0x74] sm:$0x1]
      %v3225 = vld [vmem:[%s2908 + $0x78] sm:$0xf]
      %v3226 = vld [vmem:[%s2908 + $0x7c] sm:$0xf]
      %v3227 = vld [vmem:[%s2908 + $0x80] sm:$0x1]
      %v3228 = vld [vmem:[%s2908 + $0x84] sm:$0xf]
      %v3229 = vld [vmem:[%s2908 + $0x88] sm:$0xf]
      %v3230 = vld [vmem:[%s2908 + $0x8c] sm:$0x1]
      %v3231 = vld [vmem:[%s2908 + $0x90] sm:$0xf]
      %v3232 = vld [vmem:[%s2908 + $0x94] sm:$0xf]
      %v3233 = vld [vmem:[%s2908 + $0x98] sm:$0x1]
      %v3234 = vld [vmem:[%s2908 + $0x9c] sm:$0xf]
      %v3235 = vld [vmem:[%s2908 + $0xa0] sm:$0xf]
      %v3236 = vld [vmem:[%s2908 + $0xa4] sm:$0x1]
      %v3237 = vld [vmem:[%s2908 + $0xa8] sm:$0xf]
      %v3238 = vld [vmem:[%s2908 + $0xac] sm:$0xf]
      %v3239 = vld [vmem:[%s2908 + $0xb0] sm:$0x1]
      %v3240 = vld [vmem:[%s2908 + $0xb4] sm:$0xf]
      %v3241 = vld [vmem:[%s2908 + $0xb8] sm:$0xf]
      %v3242 = vld [vmem:[%s2908 + $0xbc] sm:$0x1]
      %v3244 = vshrl.u32 %v3195, 16
      %v3246 = vrot.slane %v3244, 4
      %v3247 = vshll.u32 %v3195, 16
      %v3249 = vrot.slane %v3247, 5
      %v3250 = vor.u32 %v3246, %v3249
      %v3251 = vrot.slane %v3250, 4
      %v3253 = vshll.u32 %v3196, 16
      %v3255 = vrot.slane %v3253, 5
      %v3256 = vsel %vm387, %v3251, %v3255
      %v3257 = vshrl.u32 %v3196, 16
      %v3259 = vrot.slane %v3257, 4
      %v3260 = vor.u32 %v3259, %v3255
      %v3261 = vrot.slane %v3260, 4
      %v3263 = vshll.u32 %v3197, 16
      %v3265 = vrot.slane %v3263, 5
      %v3266 = vsel %vm387, %v3261, %v3265
      %v3268 = vshrl.u32 %v3198, 16
      %v3270 = vrot.slane %v3268, 4
      %v3271 = vshll.u32 %v3198, 16
      %v3273 = vrot.slane %v3271, 5
      %v3274 = vor.u32 %v3270, %v3273
      %v3275 = vrot.slane %v3274, 4
      %v3277 = vshll.u32 %v3199, 16
      %v3279 = vrot.slane %v3277, 5
      %v3280 = vsel %vm387, %v3275, %v3279
      %v3281 = vshrl.u32 %v3199, 16
      %v3283 = vrot.slane %v3281, 4
      %v3284 = vor.u32 %v3283, %v3279
      %v3285 = vrot.slane %v3284, 4
      %v3287 = vshll.u32 %v3200, 16
      %v3289 = vrot.slane %v3287, 5
      %v3290 = vsel %vm387, %v3285, %v3289
      %v3292 = vshrl.u32 %v3201, 16
      %v3294 = vrot.slane %v3292, 4
      %v3295 = vshll.u32 %v3201, 16
      %v3297 = vrot.slane %v3295, 5
      %v3298 = vor.u32 %v3294, %v3297
      %v3299 = vrot.slane %v3298, 4
      %v3301 = vshll.u32 %v3202, 16
      %v3303 = vrot.slane %v3301, 5
      %v3304 = vsel %vm387, %v3299, %v3303
      %v3305 = vshrl.u32 %v3202, 16
      %v3307 = vrot.slane %v3305, 4
      %v3308 = vor.u32 %v3307, %v3303
      %v3309 = vrot.slane %v3308, 4
      %v3311 = vshll.u32 %v3203, 16
      %v3313 = vrot.slane %v3311, 5
      %v3314 = vsel %vm387, %v3309, %v3313
      %v3316 = vshrl.u32 %v3204, 16
      %v3318 = vrot.slane %v3316, 4
      %v3319 = vshll.u32 %v3204, 16
      %v3321 = vrot.slane %v3319, 5
      %v3322 = vor.u32 %v3318, %v3321
      %v3323 = vrot.slane %v3322, 4
      %v3325 = vshll.u32 %v3205, 16
      %v3327 = vrot.slane %v3325, 5
      %v3328 = vsel %vm387, %v3323, %v3327
      %v3329 = vshrl.u32 %v3205, 16
      %v3331 = vrot.slane %v3329, 4
      %v3332 = vor.u32 %v3331, %v3327
      %v3333 = vrot.slane %v3332, 4
      %v3335 = vshll.u32 %v3206, 16
      %v3337 = vrot.slane %v3335, 5
      %v3338 = vsel %vm387, %v3333, %v3337
      %v3340 = vshrl.u32 %v3207, 16
      %v3342 = vrot.slane %v3340, 4
      %v3343 = vshll.u32 %v3207, 16
      %v3345 = vrot.slane %v3343, 5
      %v3346 = vor.u32 %v3342, %v3345
      %v3347 = vrot.slane %v3346, 4
      %v3349 = vshll.u32 %v3208, 16
      %v3351 = vrot.slane %v3349, 5
      %v3352 = vsel %vm387, %v3347, %v3351
      %v3353 = vshrl.u32 %v3208, 16
      %v3355 = vrot.slane %v3353, 4
      %v3356 = vor.u32 %v3355, %v3351
      %v3357 = vrot.slane %v3356, 4
      %v3359 = vshll.u32 %v3209, 16
      %v3361 = vrot.slane %v3359, 5
      %v3362 = vsel %vm387, %v3357, %v3361
      %v3364 = vshrl.u32 %v3210, 16
      %v3366 = vrot.slane %v3364, 4
      %v3367 = vshll.u32 %v3210, 16
      %v3369 = vrot.slane %v3367, 5
      %v3370 = vor.u32 %v3366, %v3369
      %v3371 = vrot.slane %v3370, 4
      %v3373 = vshll.u32 %v3211, 16
      %v3375 = vrot.slane %v3373, 5
      %v3376 = vsel %vm387, %v3371, %v3375
      %v3377 = vshrl.u32 %v3211, 16
      %v3379 = vrot.slane %v3377, 4
      %v3380 = vor.u32 %v3379, %v3375
      %v3381 = vrot.slane %v3380, 4
      %v3383 = vshll.u32 %v3212, 16
      %v3385 = vrot.slane %v3383, 5
      %v3386 = vsel %vm387, %v3381, %v3385
      %v3388 = vshrl.u32 %v3213, 16
      %v3390 = vrot.slane %v3388, 4
      %v3391 = vshll.u32 %v3213, 16
      %v3393 = vrot.slane %v3391, 5
      %v3394 = vor.u32 %v3390, %v3393
      %v3395 = vrot.slane %v3394, 4
      %v3397 = vshll.u32 %v3214, 16
      %v3399 = vrot.slane %v3397, 5
      %v3400 = vsel %vm387, %v3395, %v3399
      %v3401 = vshrl.u32 %v3214, 16
      %v3403 = vrot.slane %v3401, 4
      %v3404 = vor.u32 %v3403, %v3399
      %v3405 = vrot.slane %v3404, 4
      %v3407 = vshll.u32 %v3215, 16
      %v3409 = vrot.slane %v3407, 5
      %v3410 = vsel %vm387, %v3405, %v3409
      %v3412 = vshrl.u32 %v3216, 16
      %v3414 = vrot.slane %v3412, 4
      %v3415 = vshll.u32 %v3216, 16
      %v3417 = vrot.slane %v3415, 5
      %v3418 = vor.u32 %v3414, %v3417
      %v3419 = vrot.slane %v3418, 4
      %v3421 = vshll.u32 %v3217, 16
      %v3423 = vrot.slane %v3421, 5
      %v3424 = vsel %vm387, %v3419, %v3423
      %v3425 = vshrl.u32 %v3217, 16
      %v3427 = vrot.slane %v3425, 4
      %v3428 = vor.u32 %v3427, %v3423
      %v3429 = vrot.slane %v3428, 4
      %v3431 = vshll.u32 %v3218, 16
      %v3433 = vrot.slane %v3431, 5
      %v3434 = vsel %vm387, %v3429, %v3433
      %v3436 = vshrl.u32 %v3219, 16
      %v3438 = vrot.slane %v3436, 4
      %v3439 = vshll.u32 %v3219, 16
      %v3441 = vrot.slane %v3439, 5
      %v3442 = vor.u32 %v3438, %v3441
      %v3443 = vrot.slane %v3442, 4
      %v3445 = vshll.u32 %v3220, 16
      %v3447 = vrot.slane %v3445, 5
      %v3448 = vsel %vm387, %v3443, %v3447
      %v3449 = vshrl.u32 %v3220, 16
      %v3451 = vrot.slane %v3449, 4
      %v3452 = vor.u32 %v3451, %v3447
      %v3453 = vrot.slane %v3452, 4
      %v3455 = vshll.u32 %v3221, 16
      %v3457 = vrot.slane %v3455, 5
      %v3458 = vsel %vm387, %v3453, %v3457
      %v3460 = vshrl.u32 %v3222, 16
      %v3462 = vrot.slane %v3460, 4
      %v3463 = vshll.u32 %v3222, 16
      %v3465 = vrot.slane %v3463, 5
      %v3466 = vor.u32 %v3462, %v3465
      %v3467 = vrot.slane %v3466, 4
      %v3469 = vshll.u32 %v3223, 16
      %v3471 = vrot.slane %v3469, 5
      %v3472 = vsel %vm387, %v3467, %v3471
      %v3473 = vshrl.u32 %v3223, 16
      %v3475 = vrot.slane %v3473, 4
      %v3476 = vor.u32 %v3475, %v3471
      %v3477 = vrot.slane %v3476, 4
      %v3479 = vshll.u32 %v3224, 16
      %v3481 = vrot.slane %v3479, 5
      %v3482 = vsel %vm387, %v3477, %v3481
      %v3484 = vshrl.u32 %v3225, 16
      %v3486 = vrot.slane %v3484, 4
      %v3487 = vshll.u32 %v3225, 16
      %v3489 = vrot.slane %v3487, 5
      %v3490 = vor.u32 %v3486, %v3489
      %v3491 = vrot.slane %v3490, 4
      %v3493 = vshll.u32 %v3226, 16
      %v3495 = vrot.slane %v3493, 5
      %v3496 = vsel %vm387, %v3491, %v3495
      %v3497 = vshrl.u32 %v3226, 16
      %v3499 = vrot.slane %v3497, 4
      %v3500 = vor.u32 %v3499, %v3495
      %v3501 = vrot.slane %v3500, 4
      %v3503 = vshll.u32 %v3227, 16
      %v3505 = vrot.slane %v3503, 5
      %v3506 = vsel %vm387, %v3501, %v3505
      %v3508 = vshrl.u32 %v3228, 16
      %v3510 = vrot.slane %v3508, 4
      %v3511 = vshll.u32 %v3228, 16
      %v3513 = vrot.slane %v3511, 5
      %v3514 = vor.u32 %v3510, %v3513
      %v3515 = vrot.slane %v3514, 4
      %v3517 = vshll.u32 %v3229, 16
      %v3519 = vrot.slane %v3517, 5
      %v3520 = vsel %vm387, %v3515, %v3519
      %v3521 = vshrl.u32 %v3229, 16
      %v3523 = vrot.slane %v3521, 4
      %v3524 = vor.u32 %v3523, %v3519
      %v3525 = vrot.slane %v3524, 4
      %v3527 = vshll.u32 %v3230, 16
      %v3529 = vrot.slane %v3527, 5
      %v3530 = vsel %vm387, %v3525, %v3529
      %v3532 = vshrl.u32 %v3231, 16
      %v3534 = vrot.slane %v3532, 4
      %v3535 = vshll.u32 %v3231, 16
      %v3537 = vrot.slane %v3535, 5
      %v3538 = vor.u32 %v3534, %v3537
      %v3539 = vrot.slane %v3538, 4
      %v3541 = vshll.u32 %v3232, 16
      %v3543 = vrot.slane %v3541, 5
      %v3544 = vsel %vm387, %v3539, %v3543
      %v3545 = vshrl.u32 %v3232, 16
      %v3547 = vrot.slane %v3545, 4
      %v3548 = vor.u32 %v3547, %v3543
      %v3549 = vrot.slane %v3548, 4
      %v3551 = vshll.u32 %v3233, 16
      %v3553 = vrot.slane %v3551, 5
      %v3554 = vsel %vm387, %v3549, %v3553
      %v3556 = vshrl.u32 %v3234, 16
      %v3558 = vrot.slane %v3556, 4
      %v3559 = vshll.u32 %v3234, 16
      %v3561 = vrot.slane %v3559, 5
      %v3562 = vor.u32 %v3558, %v3561
      %v3563 = vrot.slane %v3562, 4
      %v3565 = vshll.u32 %v3235, 16
      %v3567 = vrot.slane %v3565, 5
      %v3568 = vsel %vm387, %v3563, %v3567
      %v3569 = vshrl.u32 %v3235, 16
      %v3571 = vrot.slane %v3569, 4
      %v3572 = vor.u32 %v3571, %v3567
      %v3573 = vrot.slane %v3572, 4
      %v3575 = vshll.u32 %v3236, 16
      %v3577 = vrot.slane %v3575, 5
      %v3578 = vsel %vm387, %v3573, %v3577
      %v3580 = vshrl.u32 %v3237, 16
      %v3582 = vrot.slane %v3580, 4
      %v3583 = vshll.u32 %v3237, 16
      %v3585 = vrot.slane %v3583, 5
      %v3586 = vor.u32 %v3582, %v3585
      %v3587 = vrot.slane %v3586, 4
      %v3589 = vshll.u32 %v3238, 16
      %v3591 = vrot.slane %v3589, 5
      %v3592 = vsel %vm387, %v3587, %v3591
      %v3593 = vshrl.u32 %v3238, 16
      %v3595 = vrot.slane %v3593, 4
      %v3596 = vor.u32 %v3595, %v3591
      %v3597 = vrot.slane %v3596, 4
      %v3599 = vshll.u32 %v3239, 16
      %v3601 = vrot.slane %v3599, 5
      %v3602 = vsel %vm387, %v3597, %v3601
      %v3604 = vshrl.u32 %v3240, 16
      %v3606 = vrot.slane %v3604, 4
      %v3607 = vshll.u32 %v3240, 16
      %v3609 = vrot.slane %v3607, 5
      %v3610 = vor.u32 %v3606, %v3609
      %v3611 = vrot.slane %v3610, 4
      %v3613 = vshll.u32 %v3241, 16
      %v3615 = vrot.slane %v3613, 5
      %v3616 = vsel %vm387, %v3611, %v3615
      %v3617 = vshrl.u32 %v3241, 16
      %v3619 = vrot.slane %v3617, 4
      %v3620 = vor.u32 %v3619, %v3615
      %v3621 = vrot.slane %v3620, 4
      %v3623 = vshll.u32 %v3242, 16
      %v3625 = vrot.slane %v3623, 5
      %v3626 = vsel %vm387, %v3621, %v3625
      %s3627 = scalar_lea.vmem %s325, 14
      %v3628 = vld [vmem:[%s3627] sm:$0x3]
      %v3629 = vunpack.c.l.b16 %v3256
      %v3630 = vunpack.c.l.b16 %v3266
      %v3631 = vunpack.c.l.b16 %v3280
      %v3632 = vunpack.c.l.b16 %v3290
      %v3633 = vunpack.c.l.b16 %v3304
      %v3634 = vunpack.c.l.b16 %v3314
      %v3635 = vunpack.c.l.b16 %v3328
      %v3636 = vunpack.c.l.b16 %v3338
      %v3637 = vunpack.c.l.b16 %v3352
      %v3638 = vunpack.c.l.b16 %v3362
      %v3639 = vunpack.c.l.b16 %v3376
      %v3640 = vunpack.c.l.b16 %v3386
      %v3641 = vunpack.c.l.b16 %v3400
      %v3642 = vunpack.c.l.b16 %v3410
      %v3643 = vunpack.c.l.b16 %v3424
      %v3644 = vunpack.c.l.b16 %v3434
      %v3645 = vunpack.c.l.b16 %v3448
      %v3646 = vunpack.c.l.b16 %v3458
      %v3647 = vunpack.c.l.b16 %v3472
      %v3648 = vunpack.c.l.b16 %v3482
      %v3649 = vunpack.c.l.b16 %v3496
      %v3650 = vunpack.c.l.b16 %v3506
      %v3651 = vunpack.c.l.b16 %v3520
      %v3652 = vunpack.c.l.b16 %v3530
      %v3653 = vunpack.c.l.b16 %v3544
      %v3654 = vunpack.c.l.b16 %v3554
      %v3655 = vunpack.c.l.b16 %v3568
      %v3656 = vunpack.c.l.b16 %v3578
      %v3657 = vunpack.c.l.b16 %v3592
      %v3658 = vunpack.c.l.b16 %v3602
      %v3659 = vunpack.c.l.b16 %v3616
      %v3660 = vunpack.c.l.b16 %v3626
      %v3661 = vpack.c.b16 %v3630, %v3629
      %v3662 = vpack.c.b16 %v3632, %v3631
      %v3663 = vpack.c.b16 %v3634, %v3633
      %v3664 = vpack.c.b16 %v3636, %v3635
      %v3665 = vpack.c.b16 %v3638, %v3637
      %v3666 = vpack.c.b16 %v3640, %v3639
      %v3667 = vpack.c.b16 %v3642, %v3641
      %v3668 = vpack.c.b16 %v3644, %v3643
      %v3669 = vpack.c.b16 %v3646, %v3645
      %v3670 = vpack.c.b16 %v3648, %v3647
      %v3671 = vpack.c.b16 %v3650, %v3649
      %v3672 = vpack.c.b16 %v3652, %v3651
      %v3673 = vpack.c.b16 %v3654, %v3653
      %v3674 = vpack.c.b16 %v3656, %v3655
      %v3675 = vpack.c.b16 %v3658, %v3657
      %v3676 = vpack.c.b16 %v3660, %v3659
      %v3678 = vsel %vm822, %v3661, 0
      %v3681 = vsel %vm822, %v3662, 0
      %v3684 = vsel %vm822, %v3663, 0
      %v3687 = vsel %vm822, %v3664, 0
      %v3690 = vsel %vm822, %v3665, 0
      %v3693 = vsel %vm822, %v3666, 0
      %v3696 = vsel %vm822, %v3667, 0
      %v3699 = vsel %vm822, %v3668, 0
      %v3702 = vsel %vm822, %v3669, 0
      %v3705 = vsel %vm822, %v3670, 0
      %v3708 = vsel %vm822, %v3671, 0
      %v3711 = vsel %vm822, %v3672, 0
      %v3714 = vsel %vm822, %v3673, 0
      %v3717 = vsel %vm822, %v3674, 0
      %v3720 = vsel %vm822, %v3675, 0
      %v3723 = vsel %vm822, %v3676, 0
      %v3726 = vsel %vm871, %v3628, 0
      %3728 = vmatpush.bf16.msra.mxu0 0
      %3729 = vmatpush.bf16.msra.mxu0 0
      %3730 = vmatpush.bf16.msra.mxu0 0
      %3731 = vmatpush.bf16.msra.mxu0 0
      %3732 = vmatpush.bf16.msra.mxu0 0
      %3733 = vmatpush.bf16.msra.mxu0 0
      %3734 = vmatpush.bf16.msra.mxu0 0
      %3735 = vmatpush.bf16.msra.mxu0 %v3726
      %3736 = vmatmul.bf16.gmra.mxu0 %v3678
      %v3737 = vpop.f32.mrf.mxu0
      %v3738 = vadd.f32 0.0, %v3737
      %v3739 = vpop.f32.mrf.mxu0
      %v3740 = vadd.f32 0.0, %v3739
      %3741 = vmatmul.bf16.gmra.mxu0 %v3681
      %v3742 = vpop.f32.mrf.mxu0
      %v3743 = vadd.f32 0.0, %v3742
      %v3744 = vpop.f32.mrf.mxu0
      %v3745 = vadd.f32 0.0, %v3744
      %3746 = vmatmul.bf16.gmra.mxu0 %v3684
      %v3747 = vpop.f32.mrf.mxu0
      %v3748 = vadd.f32 0.0, %v3747
      %v3749 = vpop.f32.mrf.mxu0
      %v3750 = vadd.f32 0.0, %v3749
      %3751 = vmatmul.bf16.gmra.mxu0 %v3687
      %v3752 = vpop.f32.mrf.mxu0
      %v3753 = vadd.f32 0.0, %v3752
      %v3754 = vpop.f32.mrf.mxu0
      %v3755 = vadd.f32 0.0, %v3754
      %3756 = vmatmul.bf16.gmra.mxu0 %v3690
      %v3757 = vpop.f32.mrf.mxu0
      %v3758 = vadd.f32 0.0, %v3757
      %v3759 = vpop.f32.mrf.mxu0
      %v3760 = vadd.f32 0.0, %v3759
      %3761 = vmatmul.bf16.gmra.mxu0 %v3693
      %v3762 = vpop.f32.mrf.mxu0
      %v3763 = vadd.f32 0.0, %v3762
      %v3764 = vpop.f32.mrf.mxu0
      %v3765 = vadd.f32 0.0, %v3764
      %3766 = vmatmul.bf16.gmra.mxu0 %v3696
      %v3767 = vpop.f32.mrf.mxu0
      %v3768 = vadd.f32 0.0, %v3767
      %v3769 = vpop.f32.mrf.mxu0
      %v3770 = vadd.f32 0.0, %v3769
      %3771 = vmatmul.bf16.gmra.mxu0 %v3699
      %v3772 = vpop.f32.mrf.mxu0
      %v3773 = vadd.f32 0.0, %v3772
      %v3774 = vpop.f32.mrf.mxu0
      %v3775 = vadd.f32 0.0, %v3774
      %3776 = vmatmul.bf16.gmra.mxu0 %v3702
      %v3777 = vpop.f32.mrf.mxu0
      %v3778 = vadd.f32 0.0, %v3777
      %v3779 = vpop.f32.mrf.mxu0
      %v3780 = vadd.f32 0.0, %v3779
      %3781 = vmatmul.bf16.gmra.mxu0 %v3705
      %v3782 = vpop.f32.mrf.mxu0
      %v3783 = vadd.f32 0.0, %v3782
      %v3784 = vpop.f32.mrf.mxu0
      %v3785 = vadd.f32 0.0, %v3784
      %3786 = vmatmul.bf16.gmra.mxu0 %v3708
      %v3787 = vpop.f32.mrf.mxu0
      %v3788 = vadd.f32 0.0, %v3787
      %v3789 = vpop.f32.mrf.mxu0
      %v3790 = vadd.f32 0.0, %v3789
      %3791 = vmatmul.bf16.gmra.mxu0 %v3711
      %v3792 = vpop.f32.mrf.mxu0
      %v3793 = vadd.f32 0.0, %v3792
      %v3794 = vpop.f32.mrf.mxu0
      %v3795 = vadd.f32 0.0, %v3794
      %3796 = vmatmul.bf16.gmra.mxu0 %v3714
      %v3797 = vpop.f32.mrf.mxu0
      %v3798 = vadd.f32 0.0, %v3797
      %v3799 = vpop.f32.mrf.mxu0
      %v3800 = vadd.f32 0.0, %v3799
      %3801 = vmatmul.bf16.gmra.mxu0 %v3717
      %v3802 = vpop.f32.mrf.mxu0
      %v3803 = vadd.f32 0.0, %v3802
      %v3804 = vpop.f32.mrf.mxu0
      %v3805 = vadd.f32 0.0, %v3804
      %3806 = vmatmul.bf16.gmra.mxu0 %v3720
      %v3807 = vpop.f32.mrf.mxu0
      %v3808 = vadd.f32 0.0, %v3807
      %v3809 = vpop.f32.mrf.mxu0
      %v3810 = vadd.f32 0.0, %v3809
      %3811 = vmatmul.bf16.gmra.mxu0 %v3723
      %v3812 = vpop.f32.mrf.mxu0
      %v3813 = vadd.f32 0.0, %v3812
      %v3814 = vpop.f32.mrf.mxu0
      %v3815 = vadd.f32 0.0, %v3814
      %3816 = vdwg.mxu0
      %v3817 = vadd.f32 %v3163, %v3738
      %v3818 = vadd.f32 %v3164, %v3740
      %v3819 = vadd.f32 %v3165, %v3743
      %v3820 = vadd.f32 %v3166, %v3745
      %v3821 = vadd.f32 %v3167, %v3748
      %v3822 = vadd.f32 %v3168, %v3750
      %v3823 = vadd.f32 %v3169, %v3753
      %v3824 = vadd.f32 %v3170, %v3755
      %v3825 = vadd.f32 %v3171, %v3758
      %v3826 = vadd.f32 %v3172, %v3760
      %v3827 = vadd.f32 %v3173, %v3763
      %v3828 = vadd.f32 %v3174, %v3765
      %v3829 = vadd.f32 %v3175, %v3768
      %v3830 = vadd.f32 %v3176, %v3770
      %v3831 = vadd.f32 %v3177, %v3773
      %v3832 = vadd.f32 %v3178, %v3775
      %v3833 = vadd.f32 %v3179, %v3778
      %v3834 = vadd.f32 %v3180, %v3780
      %v3835 = vadd.f32 %v3181, %v3783
      %v3836 = vadd.f32 %v3182, %v3785
      %v3837 = vadd.f32 %v3183, %v3788
      %v3838 = vadd.f32 %v3184, %v3790
      %v3839 = vadd.f32 %v3185, %v3793
      %v3840 = vadd.f32 %v3186, %v3795
      %v3841 = vadd.f32 %v3187, %v3798
      %v3842 = vadd.f32 %v3188, %v3800
      %v3843 = vadd.f32 %v3189, %v3803
      %v3844 = vadd.f32 %v3190, %v3805
      %v3845 = vadd.f32 %v3191, %v3808
      %v3846 = vadd.f32 %v3192, %v3810
      %v3847 = vadd.f32 %v3193, %v3813
      %v3848 = vadd.f32 %v3194, %v3815
      %v3849 = vld [vmem:[%s2908] sm:$0xe]
      %v3850 = vld [vmem:[%s2908 + $0xc] sm:$0xe]
      %v3851 = vld [vmem:[%s2908 + $0x18] sm:$0xe]
      %v3852 = vld [vmem:[%s2908 + $0x24] sm:$0xe]
      %v3853 = vld [vmem:[%s2908 + $0x30] sm:$0xe]
      %v3854 = vld [vmem:[%s2908 + $0x3c] sm:$0xe]
      %v3855 = vld [vmem:[%s2908 + $0x48] sm:$0xe]
      %v3856 = vld [vmem:[%s2908 + $0x54] sm:$0xe]
      %v3857 = vld [vmem:[%s2908 + $0x60] sm:$0xe]
      %v3858 = vld [vmem:[%s2908 + $0x6c] sm:$0xe]
      %v3859 = vld [vmem:[%s2908 + $0x78] sm:$0xe]
      %v3860 = vld [vmem:[%s2908 + $0x84] sm:$0xe]
      %v3861 = vld [vmem:[%s2908 + $0x90] sm:$0xe]
      %v3862 = vld [vmem:[%s2908 + $0x9c] sm:$0xe]
      %v3863 = vld [vmem:[%s2908 + $0xa8] sm:$0xe]
      %v3864 = vld [vmem:[%s2908 + $0xb4] sm:$0xe]
      %v3913 = vrot.slane %v3849, 5
      %v3914 = vrot.slane %v3913, 4
      %v3915 = vrot.slane %v3196, 5
      %v3916 = vsel %vm1234, %v3914, %v3915
      %v3917 = vrot.slane %v3915, 4
      %v3918 = vrot.slane %v3197, 5
      %v3919 = vsel %vm1234, %v3917, %v3918
      %v3920 = vrot.slane %v3850, 5
      %v3921 = vrot.slane %v3920, 4
      %v3922 = vrot.slane %v3199, 5
      %v3923 = vsel %vm1234, %v3921, %v3922
      %v3924 = vrot.slane %v3922, 4
      %v3925 = vrot.slane %v3200, 5
      %v3926 = vsel %vm1234, %v3924, %v3925
      %v3927 = vrot.slane %v3851, 5
      %v3928 = vrot.slane %v3927, 4
      %v3929 = vrot.slane %v3202, 5
      %v3930 = vsel %vm1234, %v3928, %v3929
      %v3931 = vrot.slane %v3929, 4
      %v3932 = vrot.slane %v3203, 5
      %v3933 = vsel %vm1234, %v3931, %v3932
      %v3934 = vrot.slane %v3852, 5
      %v3935 = vrot.slane %v3934, 4
      %v3936 = vrot.slane %v3205, 5
      %v3937 = vsel %vm1234, %v3935, %v3936
      %v3938 = vrot.slane %v3936, 4
      %v3939 = vrot.slane %v3206, 5
      %v3940 = vsel %vm1234, %v3938, %v3939
      %v3941 = vrot.slane %v3853, 5
      %v3942 = vrot.slane %v3941, 4
      %v3943 = vrot.slane %v3208, 5
      %v3944 = vsel %vm1234, %v3942, %v3943
      %v3945 = vrot.slane %v3943, 4
      %v3946 = vrot.slane %v3209, 5
      %v3947 = vsel %vm1234, %v3945, %v3946
      %v3948 = vrot.slane %v3854, 5
      %v3949 = vrot.slane %v3948, 4
      %v3950 = vrot.slane %v3211, 5
      %v3951 = vsel %vm1234, %v3949, %v3950
      %v3952 = vrot.slane %v3950, 4
      %v3953 = vrot.slane %v3212, 5
      %v3954 = vsel %vm1234, %v3952, %v3953
      %v3955 = vrot.slane %v3855, 5
      %v3956 = vrot.slane %v3955, 4
      %v3957 = vrot.slane %v3214, 5
      %v3958 = vsel %vm1234, %v3956, %v3957
      %v3959 = vrot.slane %v3957, 4
      %v3960 = vrot.slane %v3215, 5
      %v3961 = vsel %vm1234, %v3959, %v3960
      %v3962 = vrot.slane %v3856, 5
      %v3963 = vrot.slane %v3962, 4
      %v3964 = vrot.slane %v3217, 5
      %v3965 = vsel %vm1234, %v3963, %v3964
      %v3966 = vrot.slane %v3964, 4
      %v3967 = vrot.slane %v3218, 5
      %v3968 = vsel %vm1234, %v3966, %v3967
      %v3969 = vrot.slane %v3857, 5
      %v3970 = vrot.slane %v3969, 4
      %v3971 = vrot.slane %v3220, 5
      %v3972 = vsel %vm1234, %v3970, %v3971
      %v3973 = vrot.slane %v3971, 4
      %v3974 = vrot.slane %v3221, 5
      %v3975 = vsel %vm1234, %v3973, %v3974
      %v3976 = vrot.slane %v3858, 5
      %v3977 = vrot.slane %v3976, 4
      %v3978 = vrot.slane %v3223, 5
      %v3979 = vsel %vm1234, %v3977, %v3978
      %v3980 = vrot.slane %v3978, 4
      %v3981 = vrot.slane %v3224, 5
      %v3982 = vsel %vm1234, %v3980, %v3981
      %v3983 = vrot.slane %v3859, 5
      %v3984 = vrot.slane %v3983, 4
      %v3985 = vrot.slane %v3226, 5
      %v3986 = vsel %vm1234, %v3984, %v3985
      %v3987 = vrot.slane %v3985, 4
      %v3988 = vrot.slane %v3227, 5
      %v3989 = vsel %vm1234, %v3987, %v3988
      %v3990 = vrot.slane %v3860, 5
      %v3991 = vrot.slane %v3990, 4
      %v3992 = vrot.slane %v3229, 5
      %v3993 = vsel %vm1234, %v3991, %v3992
      %v3994 = vrot.slane %v3992, 4
      %v3995 = vrot.slane %v3230, 5
      %v3996 = vsel %vm1234, %v3994, %v3995
      %v3997 = vrot.slane %v3861, 5
      %v3998 = vrot.slane %v3997, 4
      %v3999 = vrot.slane %v3232, 5
      %v4000 = vsel %vm1234, %v3998, %v3999
      %v4001 = vrot.slane %v3999, 4
      %v4002 = vrot.slane %v3233, 5
      %v4003 = vsel %vm1234, %v4001, %v4002
      %v4004 = vrot.slane %v3862, 5
      %v4005 = vrot.slane %v4004, 4
      %v4006 = vrot.slane %v3235, 5
      %v4007 = vsel %vm1234, %v4005, %v4006
      %v4008 = vrot.slane %v4006, 4
      %v4009 = vrot.slane %v3236, 5
      %v4010 = vsel %vm1234, %v4008, %v4009
      %v4011 = vrot.slane %v3863, 5
      %v4012 = vrot.slane %v4011, 4
      %v4013 = vrot.slane %v3238, 5
      %v4014 = vsel %vm1234, %v4012, %v4013
      %v4015 = vrot.slane %v4013, 4
      %v4016 = vrot.slane %v3239, 5
      %v4017 = vsel %vm1234, %v4015, %v4016
      %v4018 = vrot.slane %v3864, 5
      %v4019 = vrot.slane %v4018, 4
      %v4020 = vrot.slane %v3241, 5
      %v4021 = vsel %vm1234, %v4019, %v4020
      %v4022 = vrot.slane %v4020, 4
      %v4023 = vrot.slane %v3242, 5
      %v4024 = vsel %vm1234, %v4022, %v4023
      %s4025 = scalar_lea.vmem %s325, 16
      %v4026 = vld [vmem:[%s4025] sm:$0x3]
      %v4027 = vunpack.c.l.b16 %v3916
      %v4028 = vunpack.c.l.b16 %v3919
      %v4029 = vunpack.c.l.b16 %v3923
      %v4030 = vunpack.c.l.b16 %v3926
      %v4031 = vunpack.c.l.b16 %v3930
      %v4032 = vunpack.c.l.b16 %v3933
      %v4033 = vunpack.c.l.b16 %v3937
      %v4034 = vunpack.c.l.b16 %v3940
      %v4035 = vunpack.c.l.b16 %v3944
      %v4036 = vunpack.c.l.b16 %v3947
      %v4037 = vunpack.c.l.b16 %v3951
      %v4038 = vunpack.c.l.b16 %v3954
      %v4039 = vunpack.c.l.b16 %v3958
      %v4040 = vunpack.c.l.b16 %v3961
      %v4041 = vunpack.c.l.b16 %v3965
      %v4042 = vunpack.c.l.b16 %v3968
      %v4043 = vunpack.c.l.b16 %v3972
      %v4044 = vunpack.c.l.b16 %v3975
      %v4045 = vunpack.c.l.b16 %v3979
      %v4046 = vunpack.c.l.b16 %v3982
      %v4047 = vunpack.c.l.b16 %v3986
      %v4048 = vunpack.c.l.b16 %v3989
      %v4049 = vunpack.c.l.b16 %v3993
      %v4050 = vunpack.c.l.b16 %v3996
      %v4051 = vunpack.c.l.b16 %v4000
      %v4052 = vunpack.c.l.b16 %v4003
      %v4053 = vunpack.c.l.b16 %v4007
      %v4054 = vunpack.c.l.b16 %v4010
      %v4055 = vunpack.c.l.b16 %v4014
      %v4056 = vunpack.c.l.b16 %v4017
      %v4057 = vunpack.c.l.b16 %v4021
      %v4058 = vunpack.c.l.b16 %v4024
      %v4059 = vpack.c.b16 %v4028, %v4027
      %v4060 = vpack.c.b16 %v4030, %v4029
      %v4061 = vpack.c.b16 %v4032, %v4031
      %v4062 = vpack.c.b16 %v4034, %v4033
      %v4063 = vpack.c.b16 %v4036, %v4035
      %v4064 = vpack.c.b16 %v4038, %v4037
      %v4065 = vpack.c.b16 %v4040, %v4039
      %v4066 = vpack.c.b16 %v4042, %v4041
      %v4067 = vpack.c.b16 %v4044, %v4043
      %v4068 = vpack.c.b16 %v4046, %v4045
      %v4069 = vpack.c.b16 %v4048, %v4047
      %v4070 = vpack.c.b16 %v4050, %v4049
      %v4071 = vpack.c.b16 %v4052, %v4051
      %v4072 = vpack.c.b16 %v4054, %v4053
      %v4073 = vpack.c.b16 %v4056, %v4055
      %v4074 = vpack.c.b16 %v4058, %v4057
      %v4076 = vsel %vm822, %v4059, 0
      %v4079 = vsel %vm822, %v4060, 0
      %v4082 = vsel %vm822, %v4061, 0
      %v4085 = vsel %vm822, %v4062, 0
      %v4088 = vsel %vm822, %v4063, 0
      %v4091 = vsel %vm822, %v4064, 0
      %v4094 = vsel %vm822, %v4065, 0
      %v4097 = vsel %vm822, %v4066, 0
      %v4100 = vsel %vm822, %v4067, 0
      %v4103 = vsel %vm822, %v4068, 0
      %v4106 = vsel %vm822, %v4069, 0
      %v4109 = vsel %vm822, %v4070, 0
      %v4112 = vsel %vm822, %v4071, 0
      %v4115 = vsel %vm822, %v4072, 0
      %v4118 = vsel %vm822, %v4073, 0
      %v4121 = vsel %vm822, %v4074, 0
      %v4124 = vsel %vm871, %v4026, 0
      %4126 = vmatpush.bf16.msra.mxu0 0
      %4127 = vmatpush.bf16.msra.mxu0 0
      %4128 = vmatpush.bf16.msra.mxu0 0
      %4129 = vmatpush.bf16.msra.mxu0 0
      %4130 = vmatpush.bf16.msra.mxu0 0
      %4131 = vmatpush.bf16.msra.mxu0 0
      %4132 = vmatpush.bf16.msra.mxu0 0
      %4133 = vmatpush.bf16.msra.mxu0 %v4124
      %4134 = vmatmul.bf16.gmra.mxu0 %v4076
      %v4135 = vpop.f32.mrf.mxu0
      %v4136 = vadd.f32 0.0, %v4135
      %v4137 = vpop.f32.mrf.mxu0
      %v4138 = vadd.f32 0.0, %v4137
      %4139 = vmatmul.bf16.gmra.mxu0 %v4079
      %v4140 = vpop.f32.mrf.mxu0
      %v4141 = vadd.f32 0.0, %v4140
      %v4142 = vpop.f32.mrf.mxu0
      %v4143 = vadd.f32 0.0, %v4142
      %4144 = vmatmul.bf16.gmra.mxu0 %v4082
      %v4145 = vpop.f32.mrf.mxu0
      %v4146 = vadd.f32 0.0, %v4145
      %v4147 = vpop.f32.mrf.mxu0
      %v4148 = vadd.f32 0.0, %v4147
      %4149 = vmatmul.bf16.gmra.mxu0 %v4085
      %v4150 = vpop.f32.mrf.mxu0
      %v4151 = vadd.f32 0.0, %v4150
      %v4152 = vpop.f32.mrf.mxu0
      %v4153 = vadd.f32 0.0, %v4152
      %4154 = vmatmul.bf16.gmra.mxu0 %v4088
      %v4155 = vpop.f32.mrf.mxu0
      %v4156 = vadd.f32 0.0, %v4155
      %v4157 = vpop.f32.mrf.mxu0
      %v4158 = vadd.f32 0.0, %v4157
      %4159 = vmatmul.bf16.gmra.mxu0 %v4091
      %v4160 = vpop.f32.mrf.mxu0
      %v4161 = vadd.f32 0.0, %v4160
      %v4162 = vpop.f32.mrf.mxu0
      %v4163 = vadd.f32 0.0, %v4162
      %4164 = vmatmul.bf16.gmra.mxu0 %v4094
      %v4165 = vpop.f32.mrf.mxu0
      %v4166 = vadd.f32 0.0, %v4165
      %v4167 = vpop.f32.mrf.mxu0
      %v4168 = vadd.f32 0.0, %v4167
      %4169 = vmatmul.bf16.gmra.mxu0 %v4097
      %v4170 = vpop.f32.mrf.mxu0
      %v4171 = vadd.f32 0.0, %v4170
      %v4172 = vpop.f32.mrf.mxu0
      %v4173 = vadd.f32 0.0, %v4172
      %4174 = vmatmul.bf16.gmra.mxu0 %v4100
      %v4175 = vpop.f32.mrf.mxu0
      %v4176 = vadd.f32 0.0, %v4175
      %v4177 = vpop.f32.mrf.mxu0
      %v4178 = vadd.f32 0.0, %v4177
      %4179 = vmatmul.bf16.gmra.mxu0 %v4103
      %v4180 = vpop.f32.mrf.mxu0
      %v4181 = vadd.f32 0.0, %v4180
      %v4182 = vpop.f32.mrf.mxu0
      %v4183 = vadd.f32 0.0, %v4182
      %4184 = vmatmul.bf16.gmra.mxu0 %v4106
      %v4185 = vpop.f32.mrf.mxu0
      %v4186 = vadd.f32 0.0, %v4185
      %v4187 = vpop.f32.mrf.mxu0
      %v4188 = vadd.f32 0.0, %v4187
      %4189 = vmatmul.bf16.gmra.mxu0 %v4109
      %v4190 = vpop.f32.mrf.mxu0
      %v4191 = vadd.f32 0.0, %v4190
      %v4192 = vpop.f32.mrf.mxu0
      %v4193 = vadd.f32 0.0, %v4192
      %4194 = vmatmul.bf16.gmra.mxu0 %v4112
      %v4195 = vpop.f32.mrf.mxu0
      %v4196 = vadd.f32 0.0, %v4195
      %v4197 = vpop.f32.mrf.mxu0
      %v4198 = vadd.f32 0.0, %v4197
      %4199 = vmatmul.bf16.gmra.mxu0 %v4115
      %v4200 = vpop.f32.mrf.mxu0
      %v4201 = vadd.f32 0.0, %v4200
      %v4202 = vpop.f32.mrf.mxu0
      %v4203 = vadd.f32 0.0, %v4202
      %4204 = vmatmul.bf16.gmra.mxu0 %v4118
      %v4205 = vpop.f32.mrf.mxu0
      %v4206 = vadd.f32 0.0, %v4205
      %v4207 = vpop.f32.mrf.mxu0
      %v4208 = vadd.f32 0.0, %v4207
      %4209 = vmatmul.bf16.gmra.mxu0 %v4121
      %v4210 = vpop.f32.mrf.mxu0
      %v4211 = vadd.f32 0.0, %v4210
      %v4212 = vpop.f32.mrf.mxu0
      %v4213 = vadd.f32 0.0, %v4212
      %4214 = vdwg.mxu0
      %v4215 = vadd.f32 %v3817, %v4136
      %v4216 = vadd.f32 %v3818, %v4138
      %v4217 = vadd.f32 %v3819, %v4141
      %v4218 = vadd.f32 %v3820, %v4143
      %v4219 = vadd.f32 %v3821, %v4146
      %v4220 = vadd.f32 %v3822, %v4148
      %v4221 = vadd.f32 %v3823, %v4151
      %v4222 = vadd.f32 %v3824, %v4153
      %v4223 = vadd.f32 %v3825, %v4156
      %v4224 = vadd.f32 %v3826, %v4158
      %v4225 = vadd.f32 %v3827, %v4161
      %v4226 = vadd.f32 %v3828, %v4163
      %v4227 = vadd.f32 %v3829, %v4166
      %v4228 = vadd.f32 %v3830, %v4168
      %v4229 = vadd.f32 %v3831, %v4171
      %v4230 = vadd.f32 %v3832, %v4173
      %v4231 = vadd.f32 %v3833, %v4176
      %v4232 = vadd.f32 %v3834, %v4178
      %v4233 = vadd.f32 %v3835, %v4181
      %v4234 = vadd.f32 %v3836, %v4183
      %v4235 = vadd.f32 %v3837, %v4186
      %v4236 = vadd.f32 %v3838, %v4188
      %v4237 = vadd.f32 %v3839, %v4191
      %v4238 = vadd.f32 %v3840, %v4193
      %v4239 = vadd.f32 %v3841, %v4196
      %v4240 = vadd.f32 %v3842, %v4198
      %v4241 = vadd.f32 %v3843, %v4201
      %v4242 = vadd.f32 %v3844, %v4203
      %v4243 = vadd.f32 %v3845, %v4206
      %v4244 = vadd.f32 %v3846, %v4208
      %v4245 = vadd.f32 %v3847, %v4211
      %v4246 = vadd.f32 %v3848, %v4213
      %v4247 = vld [vmem:[%s2] sm:$0x1]
      %v4249 = vperm.slane %v4247, 0
      %v4251 = vmul.f32 %v4215, %v4249
      %v4252 = vmul.f32 %v4216, %v4249
      %v4253 = vmul.f32 %v4217, %v4249
      %v4254 = vmul.f32 %v4218, %v4249
      %v4255 = vmul.f32 %v4219, %v4249
      %v4256 = vmul.f32 %v4220, %v4249
      %v4257 = vmul.f32 %v4221, %v4249
      %v4258 = vmul.f32 %v4222, %v4249
      %v4259 = vmul.f32 %v4223, %v4249
      %v4260 = vmul.f32 %v4224, %v4249
      %v4261 = vmul.f32 %v4225, %v4249
      %v4262 = vmul.f32 %v4226, %v4249
      %v4263 = vmul.f32 %v4227, %v4249
      %v4264 = vmul.f32 %v4228, %v4249
      %v4265 = vmul.f32 %v4229, %v4249
      %v4266 = vmul.f32 %v4230, %v4249
      %v4267 = vmul.f32 %v4231, %v4249
      %v4268 = vmul.f32 %v4232, %v4249
      %v4269 = vmul.f32 %v4233, %v4249
      %v4270 = vmul.f32 %v4234, %v4249
      %v4271 = vmul.f32 %v4235, %v4249
      %v4272 = vmul.f32 %v4236, %v4249
      %v4273 = vmul.f32 %v4237, %v4249
      %v4274 = vmul.f32 %v4238, %v4249
      %v4275 = vmul.f32 %v4239, %v4249
      %v4276 = vmul.f32 %v4240, %v4249
      %v4277 = vmul.f32 %v4241, %v4249
      %v4278 = vmul.f32 %v4242, %v4249
      %v4279 = vmul.f32 %v4243, %v4249
      %v4280 = vmul.f32 %v4244, %v4249
      %v4281 = vmul.f32 %v4245, %v4249
      %v4282 = vmul.f32 %v4246, %v4249
      %v4283 = vld [vmem:[%s3] sm:$0x1]
      %v4285 = vperm.slane %v4283, 0
      %v4287 = vadd.f32 %v4251, %v4285
      %v4288 = vadd.f32 %v4252, %v4285
      %v4289 = vadd.f32 %v4253, %v4285
      %v4290 = vadd.f32 %v4254, %v4285
      %v4291 = vadd.f32 %v4255, %v4285
      %v4292 = vadd.f32 %v4256, %v4285
      %v4293 = vadd.f32 %v4257, %v4285
      %v4294 = vadd.f32 %v4258, %v4285
      %v4295 = vadd.f32 %v4259, %v4285
      %v4296 = vadd.f32 %v4260, %v4285
      %v4297 = vadd.f32 %v4261, %v4285
      %v4298 = vadd.f32 %v4262, %v4285
      %v4299 = vadd.f32 %v4263, %v4285
      %v4300 = vadd.f32 %v4264, %v4285
      %v4301 = vadd.f32 %v4265, %v4285
      %v4302 = vadd.f32 %v4266, %v4285
      %v4303 = vadd.f32 %v4267, %v4285
      %v4304 = vadd.f32 %v4268, %v4285
      %v4305 = vadd.f32 %v4269, %v4285
      %v4306 = vadd.f32 %v4270, %v4285
      %v4307 = vadd.f32 %v4271, %v4285
      %v4308 = vadd.f32 %v4272, %v4285
      %v4309 = vadd.f32 %v4273, %v4285
      %v4310 = vadd.f32 %v4274, %v4285
      %v4311 = vadd.f32 %v4275, %v4285
      %v4312 = vadd.f32 %v4276, %v4285
      %v4313 = vadd.f32 %v4277, %v4285
      %v4314 = vadd.f32 %v4278, %v4285
      %v4315 = vadd.f32 %v4279, %v4285
      %v4316 = vadd.f32 %v4280, %v4285
      %v4317 = vadd.f32 %v4281, %v4285
      %v4318 = vadd.f32 %v4282, %v4285
      %v4319 = vmax.f32 %v4287, 0.0
      %v4320 = vmax.f32 %v4288, 0.0
      %v4321 = vmax.f32 %v4289, 0.0
      %v4322 = vmax.f32 %v4290, 0.0
      %v4323 = vmax.f32 %v4291, 0.0
      %v4324 = vmax.f32 %v4292, 0.0
      %v4325 = vmax.f32 %v4293, 0.0
      %v4326 = vmax.f32 %v4294, 0.0
      %v4327 = vmax.f32 %v4295, 0.0
      %v4328 = vmax.f32 %v4296, 0.0
      %v4329 = vmax.f32 %v4297, 0.0
      %v4330 = vmax.f32 %v4298, 0.0
      %v4331 = vmax.f32 %v4299, 0.0
      %v4332 = vmax.f32 %v4300, 0.0
      %v4333 = vmax.f32 %v4301, 0.0
      %v4334 = vmax.f32 %v4302, 0.0
      %v4335 = vmax.f32 %v4303, 0.0
      %v4336 = vmax.f32 %v4304, 0.0
      %v4337 = vmax.f32 %v4305, 0.0
      %v4338 = vmax.f32 %v4306, 0.0
      %v4339 = vmax.f32 %v4307, 0.0
      %v4340 = vmax.f32 %v4308, 0.0
      %v4341 = vmax.f32 %v4309, 0.0
      %v4342 = vmax.f32 %v4310, 0.0
      %v4343 = vmax.f32 %v4311, 0.0
      %v4344 = vmax.f32 %v4312, 0.0
      %v4345 = vmax.f32 %v4313, 0.0
      %v4346 = vmax.f32 %v4314, 0.0
      %v4347 = vmax.f32 %v4315, 0.0
      %v4348 = vmax.f32 %v4316, 0.0
      %v4349 = vmax.f32 %v4317, 0.0
      %v4350 = vmax.f32 %v4318, 0.0
      %v4351 = vld [vmem:[%s4] sm:$0xf]
      %v4352 = vpack.c.bf16 %v4320, %v4319
      %v4353 = vpack.c.bf16 %v4322, %v4321
      %v4354 = vpack.c.bf16 %v4324, %v4323
      %v4355 = vpack.c.bf16 %v4326, %v4325
      %v4356 = vpack.c.bf16 %v4328, %v4327
      %v4357 = vpack.c.bf16 %v4330, %v4329
      %v4358 = vpack.c.bf16 %v4332, %v4331
      %v4359 = vpack.c.bf16 %v4334, %v4333
      %v4360 = vpack.c.bf16 %v4336, %v4335
      %v4361 = vpack.c.bf16 %v4338, %v4337
      %v4362 = vpack.c.bf16 %v4340, %v4339
      %v4363 = vpack.c.bf16 %v4342, %v4341
      %v4364 = vpack.c.bf16 %v4344, %v4343
      %v4365 = vpack.c.bf16 %v4346, %v4345
      %v4366 = vpack.c.bf16 %v4348, %v4347
      %v4367 = vpack.c.bf16 %v4350, %v4349
      %v4369 = vsel %vm822, %v4351, 0
      %v4372 = vsel %vm822, %v4352, 0
      %v4375 = vsel %vm822, %v4353, 0
      %v4378 = vsel %vm822, %v4354, 0
      %v4381 = vsel %vm822, %v4355, 0
      %v4384 = vsel %vm822, %v4356, 0
      %v4387 = vsel %vm822, %v4357, 0
      %v4390 = vsel %vm822, %v4358, 0
      %v4393 = vsel %vm822, %v4359, 0
      %v4396 = vsel %vm822, %v4360, 0
      %v4399 = vsel %vm822, %v4361, 0
      %v4402 = vsel %vm822, %v4362, 0
      %v4405 = vsel %vm822, %v4363, 0
      %v4408 = vsel %vm822, %v4364, 0
      %v4411 = vsel %vm822, %v4365, 0
      %v4414 = vsel %vm822, %v4366, 0
      %v4417 = vsel %vm822, %v4367, 0
      %4419 = vmatpush.bf16.xpose.msra.mxu0 %v4393
      %4420 = vmatpush.bf16.xpose.msra.mxu0 %v4390
      %4421 = vmatpush.bf16.xpose.msra.mxu0 %v4387
      %4422 = vmatpush.bf16.xpose.msra.mxu0 %v4384
      %4423 = vmatpush.bf16.xpose.msra.mxu0 %v4381
      %4424 = vmatpush.bf16.xpose.msra.mxu0 %v4378
      %4425 = vmatpush.bf16.xpose.msra.mxu0 %v4375
      %4426 = vmatpush.bf16.xpose.msra.mxu0 %v4372
      %4427 = vmatmul.bf16.gmra.mxu0 %v4369
      %v4428 = vpop.f32.mrf.mxu0
      %v4429 = vadd.f32 0.0, %v4428
      %v4430 = vpop.f32.mrf.mxu0
      %4431 = vdwg.mxu0
      %4432 = vmatpush.bf16.xpose.msra.mxu0 %v4417
      %4433 = vmatpush.bf16.xpose.msra.mxu0 %v4414
      %4434 = vmatpush.bf16.xpose.msra.mxu0 %v4411
      %4435 = vmatpush.bf16.xpose.msra.mxu0 %v4408
      %4436 = vmatpush.bf16.xpose.msra.mxu0 %v4405
      %4437 = vmatpush.bf16.xpose.msra.mxu0 %v4402
      %4438 = vmatpush.bf16.xpose.msra.mxu0 %v4399
      %4439 = vmatpush.bf16.xpose.msra.mxu0 %v4396
      %4440 = vmatmul.bf16.gmra.mxu0 %v4369
      %v4441 = vpop.f32.mrf.mxu0
      %v4442 = vadd.f32 0.0, %v4441
      %v4443 = vpop.f32.mrf.mxu0
      %4444 = vdwg.mxu0
      %v4445 = vld [vmem:[%s5] sm:$0xff]
      %4447 = vset.pattern.permute.xlu0 0
      %4448 = vperm.xlu0 %4447, %v4445
      %v4449 = vpop.permute.xlu0 %4448
      %v4451 = vmul.f32 %v4429, %v4449
      %v4452 = vmul.f32 %v4442, %v4449
      %v4453 = vld [vmem:[%s6] sm:$0xff]
      %4455 = vset.pattern.permute.xlu0 0
      %4456 = vperm.xlu0 %4455, %v4453
      %v4457 = vpop.permute.xlu0 %4456
      %v4459 = vadd.f32 %v4451, %v4457
      %v4460 = vadd.f32 %v4452, %v4457
      %v4461 = vmax.f32 %v4459, 0.0
      %v4462 = vmax.f32 %v4460, 0.0
      %4463 = vst [vmem:[%s334] sm:$0xff] %v4461
      %4464 = vst [vmem:[%s334 + $0x8] sm:$0xff] %v4462
      %p4465 = scmp.lt.s32.totalorder %s22, 1
      %s4466 = scalar_select %p4465, %s22, 1
      %p4467 = scmp.lt.s32.totalorder %s23, 0
      %s4468 = scalar_select %p4467, %s23, 0
      %s4469 = smul.addr %s4468, 2
      %s4470 = smul.addr %s4466, 2
      %s4471 = sadd.s32 %s4469, %s4470
      %s4472 = smul.addr %s4471, 8
      %s4473 = scalar_lea.vmem %s7, %s4472
      // Predicated region
      $region49: #{intensity_position_module_forward.1} parent=47 // pred_check
        %p4474 = pneg %p209
      $region50: #{intensity_position_module_forward.1} parent=47 // pred_check_branch
        %4476 = sbr.rel (%p4474) target = $region52
      $region51: #{intensity_position_module_forward.1} parent=47 // pred_region
        _
      $region52: #{intensity_position_module_forward.1} parent=47 // pred_fallthru
        _
    $region48: #{intensity_position_module_forward.1} parent=5 // pred_fallthru
      _
    %p4477 = scmp.le.s32.totalorder 2, %s13
    // Predicated region
    $region53: #{intensity_position_module_forward.1} parent=5 // pred_check
      %p4478 = pneg %p4477
    $region54: #{intensity_position_module_forward.1} parent=5 // pred_check_branch
      %4480 = sbr.rel (%p4478) target = $region56
    $region55: #{intensity_position_module_forward.1} parent=5 // pred_region
      %s4481 = ssub.s32 %s13, 2
      // Predicated region
      $region57: #{intensity_position_module_forward.1} parent=55 // pred_check
        %p4482 = pneg %p215
      $region58: #{intensity_position_module_forward.1} parent=55 // pred_check_branch
        %4484 = sbr.rel (%p4482) target = $region60
      $region59: #{intensity_position_module_forward.1} parent=55 // pred_region
        %p4485 = scmp.lt.s32.totalorder %s24, 1
        %s4486 = scalar_select %p4485, %s24, 1
        %p4487 = scmp.lt.s32.totalorder %s25, 0
        %s4488 = scalar_select %p4487, %s25, 0
        %s4489 = smul.addr %s4488, 2
        %s4490 = smul.addr %s4486, 2
        %s4491 = sadd.s32 %s4489, %s4490
        %s4492 = smul.addr %s4491, 8
        %s4493 = scalar_lea.vmem %s7, %s4492
      $region60: #{intensity_position_module_forward.1} parent=55 // pred_fallthru
        _
    $region56: #{intensity_position_module_forward.1} parent=5 // pred_fallthru
      _
  $region6: #{intensity_position_module_forward.1} parent=0 // loop_footer
    %s17 = sadd.s32 1, %s13
  $region7: #{intensity_position_module_forward.1} parent=0 // loop_footer_branch
    %12 = sbr.rel target = $region3
  $region8: #{intensity_position_module_forward.1} parent=0 // loop_exit
    _

</llo_original>
